<compile_context>
chip_gen: v7x
topology: tpu7x:2x2x1
jax: 0.10.0
libtpu: 0.0.40
codegen_flags: <defaults>
</compile_context>

<pallas_src>
import jax
import jax.numpy as jnp
from jax.experimental import pallas as pl
from jax.experimental.pallas import tpu as pltpu


# ------------------------------ helpers --------------------------------------
def _round_up(v, m):
    return ((v + m - 1) // m) * m


def _vmem_capacity_bytes():
    try:
        cap = int(pltpu.get_tpu_info().vmem_capacity_bytes)
        if cap > 0:
            return cap
    except Exception:
        pass
    return 64 * 1024 * 1024          # conservative fallback (v7x-sized)


def _plan_tiles(N, HD, H, *, tile=None):
    """Choose (Np, TN): padded node count and target-node tile (multiple of 128).
    Budgets ~75% of this chip's VMEM for the attention working set."""
    budget = int(_vmem_capacity_bytes() * 0.75)
    Np0 = _round_up(N, 128)
    resident = 2 * HD * Np0 + 8 * H * Np0 + (2 << 20)     # hT(bf16) + a_src/a_dst + slack
    per_col = 28 * Np0 + 4096    # ~4 f32 (Np,) temps + bf16 alpha + int8 adj dbl-buf + out/scr
    tn = (budget - resident) // per_col
    tn = max(128, min(1024, int(tn)))
    tn = (tn // 128) * 128
    if tile is not None:
        assert tile % 128 == 0, "tile must be a multiple of 128"
        tn = tile
    tn = min(tn, Np0)
    Np = _round_up(N, tn)
    return Np, tn


# --------------------------- projection kernel --------------------------------
def _projection(x_bf16, w_bf16, *, vmem_limit):
    """proj = x @ w_packed  (bf16 MXU, f32 accumulation), row-tiled over nodes."""
    Np, Fin = x_bf16.shape
    _, WP = w_bf16.shape
    tm = 512 if Np % 512 == 0 else (256 if Np % 256 == 0 else 128)

    def kernel(x_ref, w_ref, o_ref):
        o_ref[...] = jnp.dot(x_ref[...], w_ref[...],
                             preferred_element_type=jnp.float32)

    return pl.pallas_call(
        kernel,
        out_shape=jax.ShapeDtypeStruct((Np, WP), jnp.float32),
        grid_spec=pltpu.PrefetchScalarGridSpec(
            num_scalar_prefetch=0,
            grid=(Np // tm,),
            in_specs=[pl.BlockSpec((tm, Fin), lambda i: (i, 0)),
                      pl.BlockSpec((Fin, WP), lambda i: (0, 0))],
            out_specs=pl.BlockSpec((tm, WP), lambda i: (i, 0)),
        ),
        compiler_params=pltpu.CompilerParams(
            dimension_semantics=("parallel",),
            vmem_limit_bytes=vmem_limit),
    )(x_bf16, w_bf16)


# ---------------------------- attention kernel ---------------------------------
def _make_attn_kernel(*, H, D, OP, concat, final_act, nvalid):
    """Per-row-tile GAT attention + aggregation (transposed orientation)."""

    def kernel(hH_ref, asrcH_ref, adstH_ref, adjT_ref, bias_ref, out_ref, aggT_scr):
        # hH_ref:    (H, D, Np) bf16   per-head projected features, transposed
        # asrcH_ref: (H, Np, 1) f32    a_src score per source node, per head
        # adstH_ref: (H, 1, TN) f32    a_dst score per target node (this tile)
        # adjT_ref:  (Np, TN)  int8    adjT[j, i] = 1 iff edge j -> i (self-loops incl.)
        # bias_ref:  (1, OP)   f32     bias, zero-padded to OP lanes
        # out_ref:   (TN, OP)          lane-dense output tile
        # aggT_scr:  (OP, TN)  f32     per-head aggregation accumulator (transposed)

        # additive edge mask: 0 for edges, -1e9 for non-edges / padded nodes
        adj_bias = (adjT_ref[...].astype(jnp.float32) - 1.0) * 1e9   # (Np, TN)
        aggT_scr[...] = jnp.zeros_like(aggT_scr)

        def attend(asrc_col, adst_row, hT_slice):
            # transposed: rows = source nodes j, cols = target-tile nodes i
            e = asrc_col + adst_row                          # (Np, TN)
            e = jnp.where(e > 0, e, 0.2 * e)                 # LeakyReLU(0.2)
            e = e + adj_bias
            m = jnp.max(e, axis=0, keepdims=True)            # (1, TN) cheap axis-0 reduce
            p = jnp.exp(e - m)
            denom = jnp.sum(p, axis=0, keepdims=True)
            alphaT = p * pl.reciprocal(denom, approx=True)   # (Np, TN)
            # MXU: (D, Np) @ (Np, TN) -> (D, TN): push count ~ ceil(D/8)
            return jnp.dot(hT_slice, alphaT.astype(jnp.bfloat16),
                           preferred_element_type=jnp.float32)

        if H == 1:
            agg = attend(asrcH_ref[0], adstH_ref[0], hH_ref[0])       # (D, TN)
            aggT_scr[0:D, :] = agg
        else:
            def head_body(hh, carry):
                agg = attend(asrcH_ref[hh], adstH_ref[hh], hH_ref[hh])
                if concat:
                    r0 = pl.multiple_of(hh * D, D)
                    aggT_scr[pl.ds(r0, D), :] = agg
                else:
                    aggT_scr[0:D, :] = aggT_scr[0:D, :] + agg
                return carry
            # real loop (not unrolled): bounds the (Np, TN) temporaries' live ranges
            jax.lax.fori_loop(0, H, head_body, 0)

        y = jnp.transpose(aggT_scr[...])                     # (TN, OP), lane-dense
        if (not concat) and H > 1:
            y = y * (1.0 / H)
        y = y + bias_ref[...]
        if final_act:
            # fused epilogue: ELU(alpha=1) then log_softmax over the real classes
            y = jnp.where(y > 0.0, y, jnp.exp(y) - 1.0)
            col = jax.lax.broadcasted_iota(jnp.int32, (1, OP), 1)
            y = jnp.where(col < nvalid, y, -1e30)            # mask lane padding
            mx = jnp.max(y, axis=1, keepdims=True)
            z = y - mx
            lse = jnp.log(jnp.sum(jnp.exp(z), axis=1, keepdims=True))
            y = z - lse
        out_ref[...] = y.astype(out_ref.dtype)

    return kernel


# ------------------------------- GAT layer ------------------------------------
def gat_layer(x, w, att_src, att_dst, bias, adjT, *, tn, concat=True,
              final_act=False, out_dtype=jnp.float32, vmem_limit=None):
    """One GATConv layer (eval mode) on a node-padded graph.

    x:    (Np, Fin)            node features (padded rows are zero)
    w:    (H, Fin, D)          per-head projection
    att_src, att_dst: (H, D)
    bias: (H*D,) if concat else (D,)
    adjT: (Np, Np) int8        adjT[j, i] = 1 iff edge j -> i (self-loops incl.)
    returns: (Np, OP) with real channels in columns [0, out_dim)
    """
    Np, Fin = x.shape
    H, Fin_w, D = w.shape
    assert Fin_w == Fin
    assert Np % tn == 0 and (tn % 128 == 0 or tn == Np)
    HD = H * D
    out_dim = HD if concat else D
    OP = _round_up(out_dim, 128)
    WP = _round_up(HD + 2 * H, 128)
    if vmem_limit is None:
        vmem_limit = int(_vmem_capacity_bytes() * 0.9)

    # Pack [W_all | W·a_src | W·a_dst | 0-pad to WP]: the projection AND both
    # attention reductions come out of a single lane-dense MXU matmul.
    w_flat = jnp.transpose(w, (1, 0, 2)).reshape(Fin, HD)            # (Fin, HD) head-major
    w_asrc = jnp.einsum("hfd,hd->fh", w, att_src)                    # (Fin, H)
    w_adst = jnp.einsum("hfd,hd->fh", w, att_dst)                    # (Fin, H)
    w_packed = jnp.concatenate(
        [w_flat, w_asrc, w_adst,
         jnp.zeros((Fin, WP - HD - 2 * H), jnp.float32)], axis=1)    # (Fin, WP)

    proj = _projection(x.astype(jnp.bfloat16), w_packed.astype(jnp.bfloat16),
                       vmem_limit=vmem_limit)                        # (Np, WP) f32

    hH = jnp.transpose(proj[:, :HD]).reshape(H, D, Np).astype(jnp.bfloat16)
    asrcH = jnp.transpose(proj[:, HD:HD + H]).reshape(H, Np, 1)
    adstH = jnp.transpose(proj[:, HD + H:HD + 2 * H]).reshape(H, 1, Np)
    bias_p = jnp.zeros((1, OP), jnp.float32).at[0, :out_dim].set(
        bias.astype(jnp.float32))

    kernel = _make_attn_kernel(H=H, D=D, OP=OP, concat=concat,
                               final_act=final_act, nvalid=out_dim)

    return pl.pallas_call(
        kernel,
        out_shape=jax.ShapeDtypeStruct((Np, OP), out_dtype),
        grid_spec=pltpu.PrefetchScalarGridSpec(
            num_scalar_prefetch=0,
            grid=(Np // tn,),
            in_specs=[
                pl.BlockSpec((H, D, Np), lambda i: (0, 0, 0)),   # hH (resident)
                pl.BlockSpec((H, Np, 1), lambda i: (0, 0, 0)),   # a_src (resident)
                pl.BlockSpec((H, 1, tn), lambda i: (0, 0, i)),   # a_dst tile
                pl.BlockSpec((Np, tn), lambda i: (0, i)),        # adjT tile (int8)
                pl.BlockSpec((1, OP), lambda i: (0, 0)),         # bias
            ],
            out_specs=pl.BlockSpec((tn, OP), lambda i: (i, 0)),  # lane-dense out
            scratch_shapes=[pltpu.VMEM((OP, tn), jnp.float32)],
        ),
        compiler_params=pltpu.CompilerParams(
            # Row tiles are independent: parallel so v7x's 2 TCs split them.
            dimension_semantics=("parallel",),
            vmem_limit_bytes=vmem_limit,
        ),
    )(hH, asrcH, adstH, adjT, bias_p)


# --------------------------------- GATNet -------------------------------------
def gatnet_forward(params, x, adj_i8, *, tile=None):
    """Eval-mode GATNet forward ('Cora'/'CiteSeer' branch).

    x:      (N, nfeat) f32
    adj_i8: (N, N) int8, adj[i, j] = 1 iff edge j -> i (self-loops included)
    """
    # F.dropout(..., training=False) is the identity.
    N, nfeat = x.shape
    H1, _, D1 = params["w1"].shape
    H2, Fin2, D2 = params["w2"].shape
    HD1 = H1 * D1
    assert Fin2 == HD1
    out_dim2 = H2 * D2

    Np, tn = _plan_tiles(N, HD=HD1, H=H1, tile=tile)
    vmem_limit = int(_vmem_capacity_bytes() * 0.9)

    # Pad nodes to Np (zero features, zero adjacency => fully masked) and
    # pre-transpose the adjacency once (kernel works in source-major layout).
    x_p = jnp.zeros((Np, nfeat), x.dtype).at[:N, :].set(x)
    adjT = jnp.zeros((Np, Np), jnp.int8).at[:N, :N].set(jnp.transpose(adj_i8))

    # layer 1: heads=H1, concat=True — bf16 lane-dense activation handoff
    y1 = gat_layer(x_p, params["w1"], params["asrc1"], params["adst1"],
                   params["b1"], adjT, tn=tn, concat=True, final_act=False,
                   out_dtype=jnp.bfloat16, vmem_limit=vmem_limit)    # (Np, OP1) bf16
    OP1 = y1.shape[1]

    # layer 2 consumes the 128-lane-padded activation directly; pad its
    # projection weight rows with zeros to match.
    w2 = params["w2"]
    if OP1 > Fin2:
        w2 = jnp.concatenate(
            [w2, jnp.zeros((H2, OP1 - Fin2, D2), w2.dtype)], axis=1)

    # layer 2: heads=1, concat=True; ELU + log_softmax fused into the epilogue.
    y2 = gat_layer(y1, w2, params["asrc2"], params["adst2"], params["b2"],
                   adjT, tn=tn, concat=True, final_act=True,
                   out_dtype=jnp.float32, vmem_limit=vmem_limit)     # (Np, OP2) f32

    return y2[:N, :out_dim2]


def init_params(key, nfeat, nhid, nclass, nheads):
    ks = jax.random.split(key, 8)
    s = 0.1
    return {
        "w1":    s * jax.random.normal(ks[0], (nheads, nfeat, nhid), jnp.float32),
        "asrc1": s * jax.random.normal(ks[1], (nheads, nhid), jnp.float32),
        "adst1": s * jax.random.normal(ks[2], (nheads, nhid), jnp.float32),
        "b1":    jnp.zeros((nheads * nhid,), jnp.float32),
        "w2":    s * jax.random.normal(ks[3], (1, nheads * nhid, nclass), jnp.float32),
        "asrc2": s * jax.random.normal(ks[4], (1, nclass), jnp.float32),
        "adst2": s * jax.random.normal(ks[5], (1, nclass), jnp.float32),
        "b2":    jnp.zeros((nclass,), jnp.float32),
    }


if __name__ == "__main__":
    # N=200 is deliberately NOT a multiple of the tile: exercises node padding
    # plus a 2-step (tile=128) attention grid.
    N, nfeat, nhid, nclass, nheads = 200, 48, 16, 8, 4

    key = jax.random.PRNGKey(0)
    kx, kadj, kp = jax.random.split(key, 3)

    x = jax.random.normal(kx, (N, nfeat), jnp.float32)

    # deterministic symmetric adjacency + self-loops (GATConv adds self-loops),
    # stored as int8 (4x less DMA/VMEM than f32 for a boolean mask).
    a = jax.random.bernoulli(kadj, 0.15, (N, N))
    adj = jnp.logical_or(jnp.logical_or(a, a.T), jnp.eye(N, dtype=bool))
    adj_i8 = adj.astype(jnp.int8)

    params = init_params(kp, nfeat, nhid, nclass, nheads)

    fwd = jax.jit(lambda p, xx, aa: gatnet_forward(p, xx, aa, tile=128))
    out = jax.block_until_ready(fwd(params, x, adj_i8))

    assert out.shape == (N, nclass)
    assert bool(jnp.all(jnp.isfinite(out)))
    # log_softmax rows must exponentiate-sum to ~1
    row_sums = jnp.exp(out).sum(axis=1)
    assert bool(jnp.all(jnp.abs(row_sums - 1.0) < 1e-2))
    print("KERNEL_OK")
</pallas_src>

<mosaic_0001>
module attributes {stable_mosaic.version = 11 : i64} {
  func.func @kernel(%arg0: i32, %arg1: memref<256x48xbf16, #tpu.memory_space<vmem>>, %arg2: memref<48x128xbf16, #tpu.memory_space<vmem>>, %arg3: memref<256x128xf32, #tpu.memory_space<vmem>>) attributes {dimension_semantics = [#tpu.dimension_semantics<parallel>], iteration_bounds = array<i64: 1>, scalar_prefetch = 0 : i64, scratch_operands = 0 : i64, tpu.core_type = #tpu.core_type<tc>, window_params = [{transform_indices = @transform_0, window_bounds = array<i64: 256, 48>}, {pipeline_mode = #tpu.pipeline_mode<synchronous>, transform_indices = @transform_1, window_bounds = array<i64: 48, 128>}, {transform_indices = @transform_2, window_bounds = array<i64: 256, 128>}]} {
    %c0 = arith.constant 0 : index
    %c0_0 = arith.constant 0 : index
    %0 = vector.load %arg1[%c0, %c0_0] : memref<256x48xbf16, #tpu.memory_space<vmem>>, vector<256x48xbf16>
    %c0_1 = arith.constant 0 : index
    %c0_2 = arith.constant 0 : index
    %1 = vector.load %arg2[%c0_1, %c0_2] : memref<48x128xbf16, #tpu.memory_space<vmem>>, vector<48x128xbf16>
    %cst = arith.constant dense<0.000000e+00> : vector<256x128xf32>
    %2 = tpu.matmul %0, %1, %cst {dimension_numbers = #tpu.dot_dimension_numbers<[1], [0], [0], [1], [0, 0, 1, 1], [], []>} : vector<256x48xbf16>, vector<48x128xbf16>, vector<256x128xf32> -> vector<256x128xf32>
    %c0_3 = arith.constant 0 : index
    %c0_4 = arith.constant 0 : index
    %3 = vector.load %arg3[%c0_3, %c0_4] : memref<256x128xf32, #tpu.memory_space<vmem>>, vector<256x128xf32>
    tpu.vector_store %arg3[%c0_3, %c0_4], %2 {strides = array<i32>} : memref<256x128xf32, #tpu.memory_space<vmem>>, vector<256x128xf32>,
    return
  }
  func.func @transform_0(%arg0: i32) -> (i32, i32) {
    %c0_i32 = arith.constant 0 : i32
    %c0_i32_0 = arith.constant 0 : i32
    return %arg0, %c0_i32 : i32, i32
  }
  func.func @transform_1(%arg0: i32) -> (i32, i32) {
    %c0_i32 = arith.constant 0 : i32
    %c0_i32_0 = arith.constant 0 : i32
    %c0_i32_1 = arith.constant 0 : i32
    return %c0_i32, %c0_i32_0 : i32, i32
  }
  func.func @transform_2(%arg0: i32) -> (i32, i32) {
    %c0_i32 = arith.constant 0 : i32
    %c0_i32_0 = arith.constant 0 : i32
    return %arg0, %c0_i32 : i32, i32
  }
}

module attributes {stable_mosaic.version = 11 : i64} {
  func.func @kernel(%arg0: i32, %arg1: memref<256x128xbf16, #tpu.memory_space<vmem>>, %arg2: memref<128x128xbf16, #tpu.memory_space<vmem>>, %arg3: memref<256x128xf32, #tpu.memory_space<vmem>>) attributes {dimension_semantics = [#tpu.dimension_semantics<parallel>], iteration_bounds = array<i64: 1>, scalar_prefetch = 0 : i64, scratch_operands = 0 : i64, tpu.core_type = #tpu.core_type<tc>, window_params = [{transform_indices = @transform_0, window_bounds = array<i64: 256, 128>}, {pipeline_mode = #tpu.pipeline_mode<synchronous>, transform_indices = @transform_1, window_bounds = array<i64: 128, 128>}, {transform_indices = @transform_2, window_bounds = array<i64: 256, 128>}]} {
    %c0 = arith.constant 0 : index
    %c0_0 = arith.constant 0 : index
    %0 = vector.load %arg1[%c0, %c0_0] : memref<256x128xbf16, #tpu.memory_space<vmem>>, vector<256x128xbf16>
    %c0_1 = arith.constant 0 : index
    %c0_2 = arith.constant 0 : index
    %1 = vector.load %arg2[%c0_1, %c0_2] : memref<128x128xbf16, #tpu.memory_space<vmem>>, vector<128x128xbf16>
    %cst = arith.constant dense<0.000000e+00> : vector<256x128xf32>
    %2 = tpu.matmul %0, %1, %cst {dimension_numbers = #tpu.dot_dimension_numbers<[1], [0], [0], [1], [0, 0, 1, 1], [], []>} : vector<256x128xbf16>, vector<128x128xbf16>, vector<256x128xf32> -> vector<256x128xf32>
    %c0_3 = arith.constant 0 : index
    %c0_4 = arith.constant 0 : index
    %3 = vector.load %arg3[%c0_3, %c0_4] : memref<256x128xf32, #tpu.memory_space<vmem>>, vector<256x128xf32>
    tpu.vector_store %arg3[%c0_3, %c0_4], %2 {strides = array<i32>} : memref<256x128xf32, #tpu.memory_space<vmem>>, vector<256x128xf32>,
    return
  }
  func.func @transform_0(%arg0: i32) -> (i32, i32) {
    %c0_i32 = arith.constant 0 : i32
    %c0_i32_0 = arith.constant 0 : i32
    return %arg0, %c0_i32 : i32, i32
  }
  func.func @transform_1(%arg0: i32) -> (i32, i32) {
    %c0_i32 = arith.constant 0 : i32
    %c0_i32_0 = arith.constant 0 : i32
    %c0_i32_1 = arith.constant 0 : i32
    return %c0_i32, %c0_i32_0 : i32, i32
  }
  func.func @transform_2(%arg0: i32) -> (i32, i32) {
    %c0_i32 = arith.constant 0 : i32
    %c0_i32_0 = arith.constant 0 : i32
    return %arg0, %c0_i32 : i32, i32
  }
}

module attributes {stable_mosaic.version = 11 : i64} {
  func.func @kernel(%arg0: i32, %arg1: memref<4x16x256xbf16, #tpu.memory_space<vmem>>, %arg2: memref<4x256x1xf32, #tpu.memory_space<vmem>>, %arg3: memref<4x1x128xf32, #tpu.memory_space<vmem>>, %arg4: memref<256x128xi8, #tpu.memory_space<vmem>>, %arg5: memref<1x128xf32, #tpu.memory_space<vmem>>, %arg6: memref<128x128xbf16, #tpu.memory_space<vmem>>, %arg7: memref<128x128xf32, #tpu.memory_space<vmem>>) attributes {dimension_semantics = [#tpu.dimension_semantics<parallel>], iteration_bounds = array<i64: 2>, scalar_prefetch = 0 : i64, scratch_operands = 1 : i64, tpu.core_type = #tpu.core_type<tc>, window_params = [{pipeline_mode = #tpu.pipeline_mode<synchronous>, transform_indices = @transform_0, window_bounds = array<i64: 4, 16, 256>}, {pipeline_mode = #tpu.pipeline_mode<synchronous>, transform_indices = @transform_1, window_bounds = array<i64: 4, 256, 1>}, {transform_indices = @transform_2, window_bounds = array<i64: 4, 1, 128>}, {transform_indices = @transform_3, window_bounds = array<i64: 256, 128>}, {pipeline_mode = #tpu.pipeline_mode<synchronous>, transform_indices = @transform_4, window_bounds = array<i64: 1, 128>}, {transform_indices = @transform_5, window_bounds = array<i64: 128, 128>}]} {
    %c0 = arith.constant 0 : index
    %c0_0 = arith.constant 0 : index
    %0 = vector.load %arg4[%c0, %c0_0] : memref<256x128xi8, #tpu.memory_space<vmem>>, vector<256x128xi8>
    %1 = arith.sitofp %0 : vector<256x128xi8> to vector<256x128xf32>
    %cst = arith.constant 1.000000e+00 : f32
    %2 = vector.broadcast %cst : f32 to vector<256x128xf32>
    %3 = arith.subf %1, %2 : vector<256x128xf32>
    %cst_1 = arith.constant 1.000000e+09 : f32
    %4 = vector.broadcast %cst_1 : f32 to vector<256x128xf32>
    %5 = arith.mulf %3, %4 : vector<256x128xf32>
    %cst_2 = arith.constant 0.000000e+00 : f32
    %6 = vector.broadcast %cst_2 : f32 to vector<128x128xf32>
    %c0_3 = arith.constant 0 : index
    %c0_4 = arith.constant 0 : index
    %7 = vector.load %arg7[%c0_3, %c0_4] : memref<128x128xf32, #tpu.memory_space<vmem>>, vector<128x128xf32>
    tpu.vector_store %arg7[%c0_3, %c0_4], %6 {strides = array<i32>} : memref<128x128xf32, #tpu.memory_space<vmem>>, vector<128x128xf32>,
    %c0_i32 = arith.constant 0 : i32
    %c4_i32 = arith.constant 4 : i32
    %8 = arith.addi %c0_i32, %c4_i32 : i32
    %c1_i32 = arith.constant 1 : i32
    scf.for %arg8 = %c0_i32 to %8 step %c1_i32  : i32 {
      %16 = arith.index_cast %arg8 : i32 to index
      %c0_12 = arith.constant 0 : index
      %c0_13 = arith.constant 0 : index
      %17 = vector.load %arg2[%16, %c0_12, %c0_13] : memref<4x256x1xf32, #tpu.memory_space<vmem>>, vector<1x256x1xf32>
      %18 = vector.shape_cast %17 : vector<1x256x1xf32> to vector<256x1xf32>
      %19 = arith.index_cast %arg8 : i32 to index
      %c0_14 = arith.constant 0 : index
      %c0_15 = arith.constant 0 : index
      %20 = vector.load %arg3[%19, %c0_14, %c0_15] : memref<4x1x128xf32, #tpu.memory_space<vmem>>, vector<1x1x128xf32>
      %21 = vector.shape_cast %20 : vector<1x1x128xf32> to vector<1x128xf32>
      %22 = arith.index_cast %arg8 : i32 to index
      %c0_16 = arith.constant 0 : index
      %c0_17 = arith.constant 0 : index
      %23 = vector.load %arg1[%22, %c0_16, %c0_17] : memref<4x16x256xbf16, #tpu.memory_space<vmem>>, vector<1x16x256xbf16>
      %24 = vector.shape_cast %23 : vector<1x16x256xbf16> to vector<16x256xbf16>
      %25 = vector.broadcast %18 : vector<256x1xf32> to vector<256x128xf32>
      %26 = vector.broadcast %21 : vector<1x128xf32> to vector<256x128xf32>
      %27 = arith.addf %25, %26 : vector<256x128xf32>
      %cst_18 = arith.constant 0.000000e+00 : f32
      %28 = vector.broadcast %cst_18 : f32 to vector<256x128xf32>
      %29 = arith.cmpf ogt, %27, %28 : vector<256x128xf32>
      %cst_19 = arith.constant 2.000000e-01 : f32
      %30 = vector.broadcast %cst_19 : f32 to vector<256x128xf32>
      %31 = arith.mulf %30, %27 : vector<256x128xf32>
      %32 = arith.select %29, %27, %31 : vector<256x128xi1>, vector<256x128xf32>
      %33 = arith.addf %32, %5 : vector<256x128xf32>
      %cst_20 = arith.constant dense<0xFF800000> : vector<128xf32>
      %34 = vector.multi_reduction <maximumf>, %33, %cst_20 [0] : vector<256x128xf32> to vector<128xf32>
      %35 = vector.shape_cast %34 : vector<128xf32> to vector<1x128xf32>
      %36 = vector.broadcast %35 : vector<1x128xf32> to vector<256x128xf32>
      %37 = arith.subf %33, %36 : vector<256x128xf32>
      %38 = math.exp %37 : vector<256x128xf32>
      %cst_21 = arith.constant dense<0.000000e+00> : vector<128xf32>
      %39 = vector.multi_reduction <add>, %38, %cst_21 [0] : vector<256x128xf32> to vector<128xf32>
      %40 = vector.shape_cast %39 : vector<128xf32> to vector<1x128xf32>
      %41 = tpu.reciprocal %40 {approx = true} : vector<1x128xf32> -> vector<1x128xf32>
      %42 = vector.broadcast %41 : vector<1x128xf32> to vector<256x128xf32>
      %43 = arith.mulf %38, %42 : vector<256x128xf32>
      %44 = arith.truncf %43 : vector<256x128xf32> to vector<256x128xbf16>
      %cst_22 = arith.constant dense<0.000000e+00> : vector<16x128xf32>
      %45 = tpu.matmul %24, %44, %cst_22 {dimension_numbers = #tpu.dot_dimension_numbers<[1], [0], [0], [1], [0, 0, 1, 1], [], []>} : vector<16x256xbf16>, vector<256x128xbf16>, vector<16x128xf32> -> vector<16x128xf32>
      %c16_i32 = arith.constant 16 : i32
      %46 = arith.muli %arg8, %c16_i32 : i32
      %47 = tpu.assume_multiple %46, 16 : i32
      %48 = arith.index_cast %47 : i32 to index
      %c0_23 = arith.constant 0 : index
      %49 = vector.load %arg7[%48, %c0_23] : memref<128x128xf32, #tpu.memory_space<vmem>>, vector<16x128xf32>
      tpu.vector_store %arg7[%48, %c0_23], %45 {strides = array<i32>} : memref<128x128xf32, #tpu.memory_space<vmem>>, vector<16x128xf32>,
    }
    %c4_i32_5 = arith.constant 4 : i32
    %c0_6 = arith.constant 0 : index
    %c0_7 = arith.constant 0 : index
    %9 = vector.load %arg7[%c0_6, %c0_7] : memref<128x128xf32, #tpu.memory_space<vmem>>, vector<128x128xf32>
    %10 = tpu.transpose %9, [1, 0] : vector<128x128xf32> -> vector<128x128xf32>
    %c0_8 = arith.constant 0 : index
    %c0_9 = arith.constant 0 : index
    %11 = vector.load %arg5[%c0_8, %c0_9] : memref<1x128xf32, #tpu.memory_space<vmem>>, vector<1x128xf32>
    %12 = vector.broadcast %11 : vector<1x128xf32> to vector<128x128xf32>
    %13 = arith.addf %10, %12 : vector<128x128xf32>
    %14 = arith.truncf %13 : vector<128x128xf32> to vector<128x128xbf16>
    %c0_10 = arith.constant 0 : index
    %c0_11 = arith.constant 0 : index
    %15 = vector.load %arg6[%c0_10, %c0_11] : memref<128x128xbf16, #tpu.memory_space<vmem>>, vector<128x128xbf16>
    tpu.vector_store %arg6[%c0_10, %c0_11], %14 {strides = array<i32>} : memref<128x128xbf16, #tpu.memory_space<vmem>>, vector<128x128xbf16>,
    return
  }
  func.func @transform_0(%arg0: i32) -> (i32, i32, i32) {
    %c0_i32 = arith.constant 0 : i32
    %c0_i32_0 = arith.constant 0 : i32
    %c0_i32_1 = arith.constant 0 : i32
    %c0_i32_2 = arith.constant 0 : i32
    return %c0_i32, %c0_i32_0, %c0_i32_1 : i32, i32, i32
  }
  func.func @transform_1(%arg0: i32) -> (i32, i32, i32) {
    %c0_i32 = arith.constant 0 : i32
    %c0_i32_0 = arith.constant 0 : i32
    %c0_i32_1 = arith.constant 0 : i32
    %c0_i32_2 = arith.constant 0 : i32
    return %c0_i32, %c0_i32_0, %c0_i32_1 : i32, i32, i32
  }
  func.func @transform_2(%arg0: i32) -> (i32, i32, i32) {
    %c0_i32 = arith.constant 0 : i32
    %c0_i32_0 = arith.constant 0 : i32
    %c0_i32_1 = arith.constant 0 : i32
    return %c0_i32, %c0_i32_0, %arg0 : i32, i32, i32
  }
  func.func @transform_3(%arg0: i32) -> (i32, i32) {
    %c0_i32 = arith.constant 0 : i32
    %c0_i32_0 = arith.constant 0 : i32
    return %c0_i32, %arg0 : i32, i32
  }
  func.func @transform_4(%arg0: i32) -> (i32, i32) {
    %c0_i32 = arith.constant 0 : i32
    %c0_i32_0 = arith.constant 0 : i32
    %c0_i32_1 = arith.constant 0 : i32
    return %c0_i32, %c0_i32_0 : i32, i32
  }
  func.func @transform_5(%arg0: i32) -> (i32, i32) {
    %c0_i32 = arith.constant 0 : i32
    %c0_i32_0 = arith.constant 0 : i32
    return %arg0, %c0_i32 : i32, i32
  }
}

module attributes {stable_mosaic.version = 11 : i64} {
  func.func @kernel(%arg0: i32, %arg1: memref<1x8x256xbf16, #tpu.memory_space<vmem>>, %arg2: memref<1x256x1xf32, #tpu.memory_space<vmem>>, %arg3: memref<1x1x128xf32, #tpu.memory_space<vmem>>, %arg4: memref<256x128xi8, #tpu.memory_space<vmem>>, %arg5: memref<1x128xf32, #tpu.memory_space<vmem>>, %arg6: memref<128x128xf32, #tpu.memory_space<vmem>>, %arg7: memref<128x128xf32, #tpu.memory_space<vmem>>) attributes {dimension_semantics = [#tpu.dimension_semantics<parallel>], iteration_bounds = array<i64: 2>, scalar_prefetch = 0 : i64, scratch_operands = 1 : i64, tpu.core_type = #tpu.core_type<tc>, window_params = [{pipeline_mode = #tpu.pipeline_mode<synchronous>, transform_indices = @transform_0, window_bounds = array<i64: 1, 8, 256>}, {pipeline_mode = #tpu.pipeline_mode<synchronous>, transform_indices = @transform_1, window_bounds = array<i64: 1, 256, 1>}, {transform_indices = @transform_2, window_bounds = array<i64: 1, 1, 128>}, {transform_indices = @transform_3, window_bounds = array<i64: 256, 128>}, {pipeline_mode = #tpu.pipeline_mode<synchronous>, transform_indices = @transform_4, window_bounds = array<i64: 1, 128>}, {transform_indices = @transform_5, window_bounds = array<i64: 128, 128>}]} {
    %c0 = arith.constant 0 : index
    %c0_0 = arith.constant 0 : index
    %0 = vector.load %arg4[%c0, %c0_0] : memref<256x128xi8, #tpu.memory_space<vmem>>, vector<256x128xi8>
    %1 = arith.sitofp %0 : vector<256x128xi8> to vector<256x128xf32>
    %cst = arith.constant 1.000000e+00 : f32
    %2 = vector.broadcast %cst : f32 to vector<256x128xf32>
    %3 = arith.subf %1, %2 : vector<256x128xf32>
    %cst_1 = arith.constant 1.000000e+09 : f32
    %4 = vector.broadcast %cst_1 : f32 to vector<256x128xf32>
    %5 = arith.mulf %3, %4 : vector<256x128xf32>
    %cst_2 = arith.constant 0.000000e+00 : f32
    %6 = vector.broadcast %cst_2 : f32 to vector<128x128xf32>
    %c0_3 = arith.constant 0 : index
    %c0_4 = arith.constant 0 : index
    %7 = vector.load %arg7[%c0_3, %c0_4] : memref<128x128xf32, #tpu.memory_space<vmem>>, vector<128x128xf32>
    tpu.vector_store %arg7[%c0_3, %c0_4], %6 {strides = array<i32>} : memref<128x128xf32, #tpu.memory_space<vmem>>, vector<128x128xf32>,
    %c0_5 = arith.constant 0 : index
    %c0_6 = arith.constant 0 : index
    %c0_7 = arith.constant 0 : index
    %8 = vector.load %arg2[%c0_5, %c0_6, %c0_7] : memref<1x256x1xf32, #tpu.memory_space<vmem>>, vector<1x256x1xf32>
    %9 = vector.shape_cast %8 : vector<1x256x1xf32> to vector<256x1xf32>
    %c0_8 = arith.constant 0 : index
    %c0_9 = arith.constant 0 : index
    %c0_10 = arith.constant 0 : index
    %10 = vector.load %arg3[%c0_8, %c0_9, %c0_10] : memref<1x1x128xf32, #tpu.memory_space<vmem>>, vector<1x1x128xf32>
    %11 = vector.shape_cast %10 : vector<1x1x128xf32> to vector<1x128xf32>
    %c0_11 = arith.constant 0 : index
    %c0_12 = arith.constant 0 : index
    %c0_13 = arith.constant 0 : index
    %12 = vector.load %arg1[%c0_11, %c0_12, %c0_13] : memref<1x8x256xbf16, #tpu.memory_space<vmem>>, vector<1x8x256xbf16>
    %13 = vector.shape_cast %12 : vector<1x8x256xbf16> to vector<8x256xbf16>
    %14 = vector.broadcast %9 : vector<256x1xf32> to vector<256x128xf32>
    %15 = vector.broadcast %11 : vector<1x128xf32> to vector<256x128xf32>
    %16 = arith.addf %14, %15 : vector<256x128xf32>
    %cst_14 = arith.constant 0.000000e+00 : f32
    %17 = vector.broadcast %cst_14 : f32 to vector<256x128xf32>
    %18 = arith.cmpf ogt, %16, %17 : vector<256x128xf32>
    %cst_15 = arith.constant 2.000000e-01 : f32
    %19 = vector.broadcast %cst_15 : f32 to vector<256x128xf32>
    %20 = arith.mulf %19, %16 : vector<256x128xf32>
    %21 = arith.select %18, %16, %20 : vector<256x128xi1>, vector<256x128xf32>
    %22 = arith.addf %21, %5 : vector<256x128xf32>
    %cst_16 = arith.constant dense<0xFF800000> : vector<128xf32>
    %23 = vector.multi_reduction <maximumf>, %22, %cst_16 [0] : vector<256x128xf32> to vector<128xf32>
    %24 = vector.shape_cast %23 : vector<128xf32> to vector<1x128xf32>
    %25 = vector.broadcast %24 : vector<1x128xf32> to vector<256x128xf32>
    %26 = arith.subf %22, %25 : vector<256x128xf32>
    %27 = math.exp %26 : vector<256x128xf32>
    %cst_17 = arith.constant dense<0.000000e+00> : vector<128xf32>
    %28 = vector.multi_reduction <add>, %27, %cst_17 [0] : vector<256x128xf32> to vector<128xf32>
    %29 = vector.shape_cast %28 : vector<128xf32> to vector<1x128xf32>
    %30 = tpu.reciprocal %29 {approx = true} : vector<1x128xf32> -> vector<1x128xf32>
    %31 = vector.broadcast %30 : vector<1x128xf32> to vector<256x128xf32>
    %32 = arith.mulf %27, %31 : vector<256x128xf32>
    %33 = arith.truncf %32 : vector<256x128xf32> to vector<256x128xbf16>
    %cst_18 = arith.constant dense<0.000000e+00> : vector<8x128xf32>
    %34 = tpu.matmul %13, %33, %cst_18 {dimension_numbers = #tpu.dot_dimension_numbers<[1], [0], [0], [1], [0, 0, 1, 1], [], []>} : vector<8x256xbf16>, vector<256x128xbf16>, vector<8x128xf32> -> vector<8x128xf32>
    %c0_19 = arith.constant 0 : index
    %c0_20 = arith.constant 0 : index
    %35 = vector.load %arg7[%c0_19, %c0_20] : memref<128x128xf32, #tpu.memory_space<vmem>>, vector<8x128xf32>
    tpu.vector_store %arg7[%c0_19, %c0_20], %34 {strides = array<i32>} : memref<128x128xf32, #tpu.memory_space<vmem>>, vector<8x128xf32>,
    %c0_21 = arith.constant 0 : index
    %c0_22 = arith.constant 0 : index
    %36 = vector.load %arg7[%c0_21, %c0_22] : memref<128x128xf32, #tpu.memory_space<vmem>>, vector<128x128xf32>
    %37 = tpu.transpose %36, [1, 0] : vector<128x128xf32> -> vector<128x128xf32>
    %c0_23 = arith.constant 0 : index
    %c0_24 = arith.constant 0 : index
    %38 = vector.load %arg5[%c0_23, %c0_24] : memref<1x128xf32, #tpu.memory_space<vmem>>, vector<1x128xf32>
    %39 = vector.broadcast %38 : vector<1x128xf32> to vector<128x128xf32>
    %40 = arith.addf %37, %39 : vector<128x128xf32>
    %cst_25 = arith.constant 0.000000e+00 : f32
    %41 = vector.broadcast %cst_25 : f32 to vector<128x128xf32>
    %42 = arith.cmpf ogt, %40, %41 : vector<128x128xf32>
    %43 = math.exp %40 : vector<128x128xf32>
    %cst_26 = arith.constant 1.000000e+00 : f32
    %44 = vector.broadcast %cst_26 : f32 to vector<128x128xf32>
    %45 = arith.subf %43, %44 : vector<128x128xf32>
    %46 = arith.select %42, %40, %45 : vector<128x128xi1>, vector<128x128xf32>
    %47 = tpu.iota {dimensions = array<i32: 1>} : vector<1x128xi32>
    %c8_i32 = arith.constant 8 : i32
    %48 = vector.broadcast %c8_i32 : i32 to vector<1x128xi32>
    %49 = arith.cmpi slt, %47, %48 : vector<1x128xi32>
    %cst_27 = arith.constant -1.000000e+30 : f32
    %50 = vector.shape_cast %49 : vector<1x128xi1> to vector<1x128xi1>
    %51 = vector.broadcast %50 : vector<1x128xi1> to vector<128x128xi1>
    %52 = vector.broadcast %cst_27 : f32 to vector<128x128xf32>
    %53 = arith.select %51, %46, %52 : vector<128x128xi1>, vector<128x128xf32>
    %cst_28 = arith.constant dense<0xFF800000> : vector<128xf32>
    %54 = vector.multi_reduction <maximumf>, %53, %cst_28 [1] : vector<128x128xf32> to vector<128xf32>
    %55 = vector.shape_cast %54 : vector<128xf32> to vector<128x1xf32>
    %56 = vector.broadcast %55 : vector<128x1xf32> to vector<128x128xf32>
    %57 = arith.subf %53, %56 : vector<128x128xf32>
    %58 = math.exp %57 : vector<128x128xf32>
    %cst_29 = arith.constant dense<0.000000e+00> : vector<128xf32>
    %59 = vector.multi_reduction <add>, %58, %cst_29 [1] : vector<128x128xf32> to vector<128xf32>
    %60 = vector.shape_cast %59 : vector<128xf32> to vector<128x1xf32>
    %61 = math.log %60 : vector<128x1xf32>
    %62 = vector.broadcast %61 : vector<128x1xf32> to vector<128x128xf32>
    %63 = arith.subf %57, %62 : vector<128x128xf32>
    %c0_30 = arith.constant 0 : index
    %c0_31 = arith.constant 0 : index
    %64 = vector.load %arg6[%c0_30, %c0_31] : memref<128x128xf32, #tpu.memory_space<vmem>>, vector<128x128xf32>
    tpu.vector_store %arg6[%c0_30, %c0_31], %63 {strides = array<i32>} : memref<128x128xf32, #tpu.memory_space<vmem>>, vector<128x128xf32>,
    return
  }
  func.func @transform_0(%arg0: i32) -> (i32, i32, i32) {
    %c0_i32 = arith.constant 0 : i32
    %c0_i32_0 = arith.constant 0 : i32
    %c0_i32_1 = arith.constant 0 : i32
    %c0_i32_2 = arith.constant 0 : i32
    return %c0_i32, %c0_i32_0, %c0_i32_1 : i32, i32, i32
  }
  func.func @transform_1(%arg0: i32) -> (i32, i32, i32) {
    %c0_i32 = arith.constant 0 : i32
    %c0_i32_0 = arith.constant 0 : i32
    %c0_i32_1 = arith.constant 0 : i32
    %c0_i32_2 = arith.constant 0 : i32
    return %c0_i32, %c0_i32_0, %c0_i32_1 : i32, i32, i32
  }
  func.func @transform_2(%arg0: i32) -> (i32, i32, i32) {
    %c0_i32 = arith.constant 0 : i32
    %c0_i32_0 = arith.constant 0 : i32
    %c0_i32_1 = arith.constant 0 : i32
    return %c0_i32, %c0_i32_0, %arg0 : i32, i32, i32
  }
  func.func @transform_3(%arg0: i32) -> (i32, i32) {
    %c0_i32 = arith.constant 0 : i32
    %c0_i32_0 = arith.constant 0 : i32
    return %c0_i32, %arg0 : i32, i32
  }
  func.func @transform_4(%arg0: i32) -> (i32, i32) {
    %c0_i32 = arith.constant 0 : i32
    %c0_i32_0 = arith.constant 0 : i32
    %c0_i32_1 = arith.constant 0 : i32
    return %c0_i32, %c0_i32_0 : i32, i32
  }
  func.func @transform_5(%arg0: i32) -> (i32, i32) {
    %c0_i32 = arith.constant 0 : i32
    %c0_i32_0 = arith.constant 0 : i32
    return %arg0, %c0_i32 : i32, i32
  }
}

</mosaic_0001>

<llo_original>
// kernel: _lambda_.6
$region0: #{_lambda_.6}
  #allocation0 [shape = 'u32[]', space=smem, size = 0x4, offset = 0x4, fixed_abs, tag = 'smem constant byte address 0x4 - core index']
  #allocation1 [shape = 'u32[144,128]{1,0:T(1,128)}', space=vmem, size = 0x12000, scoped, tag = 'internal scratch']
  %s0 = inlined_call_operand.vmem [shape: bf16[256,128], index: 0, kind: input, shape index: {}]
  %s1 = inlined_call_operand.vmem [shape: bf16[128,128], index: 1, kind: input, shape index: {}]
  %s2 = inlined_call_operand.vmem [shape: f32[256,128], index: 2, kind: output, shape index: {}]
  %s3 = sld [smem:[#allocation0]]
  $region18: #{_lambda_.6} parent=0
    _
  %s5 = ssub.s32 1, %s3
  %s6 = scalar_select 0, %s5, %s3
  // Predicated region
  $region2: #{_lambda_.6} parent=0 // pred_check
    _
  $region3: #{_lambda_.6} parent=0 // pred_check_branch
    %8 = sbr.rel (0) target = $region5
  $region4: #{_lambda_.6} parent=0 // pred_region
    _
  $region5: #{_lambda_.6} parent=0 // pred_fallthru
    _
  // Predicated region
  $region6: #{_lambda_.6} parent=0 // pred_check
    _
  $region7: #{_lambda_.6} parent=0 // pred_check_branch
    %10 = sbr.rel (0) target = $region9
  $region8: #{_lambda_.6} parent=0 // pred_region
    _
  $region9: #{_lambda_.6} parent=0 // pred_fallthru
    _
  %v12 = vld [vmem:[%s0] sm:$0xf]
  %v13 = vld [vmem:[%s0 + $0x4] sm:$0xf]
  %v14 = vld [vmem:[%s0 + $0x8] sm:$0xf]
  %v15 = vld [vmem:[%s0 + $0xc] sm:$0xf]
  %v16 = vld [vmem:[%s0 + $0x10] sm:$0xf]
  %v17 = vld [vmem:[%s0 + $0x14] sm:$0xf]
  %v18 = vld [vmem:[%s0 + $0x18] sm:$0xf]
  %v19 = vld [vmem:[%s0 + $0x1c] sm:$0xf]
  %v20 = vld [vmem:[%s0 + $0x20] sm:$0xf]
  %v21 = vld [vmem:[%s0 + $0x24] sm:$0xf]
  %v22 = vld [vmem:[%s0 + $0x28] sm:$0xf]
  %v23 = vld [vmem:[%s0 + $0x2c] sm:$0xf]
  %v24 = vld [vmem:[%s0 + $0x30] sm:$0xf]
  %v25 = vld [vmem:[%s0 + $0x34] sm:$0xf]
  %v26 = vld [vmem:[%s0 + $0x38] sm:$0xf]
  %v27 = vld [vmem:[%s0 + $0x3c] sm:$0xf]
  %v28 = vld [vmem:[%s0 + $0x40] sm:$0xf]
  %v29 = vld [vmem:[%s0 + $0x44] sm:$0xf]
  %v30 = vld [vmem:[%s0 + $0x48] sm:$0xf]
  %v31 = vld [vmem:[%s0 + $0x4c] sm:$0xf]
  %v32 = vld [vmem:[%s0 + $0x50] sm:$0xf]
  %v33 = vld [vmem:[%s0 + $0x54] sm:$0xf]
  %v34 = vld [vmem:[%s0 + $0x58] sm:$0xf]
  %v35 = vld [vmem:[%s0 + $0x5c] sm:$0xf]
  %v36 = vld [vmem:[%s0 + $0x60] sm:$0xf]
  %v37 = vld [vmem:[%s0 + $0x64] sm:$0xf]
  %v38 = vld [vmem:[%s0 + $0x68] sm:$0xf]
  %v39 = vld [vmem:[%s0 + $0x6c] sm:$0xf]
  %v40 = vld [vmem:[%s0 + $0x70] sm:$0xf]
  %v41 = vld [vmem:[%s0 + $0x74] sm:$0xf]
  %v42 = vld [vmem:[%s0 + $0x78] sm:$0xf]
  %v43 = vld [vmem:[%s0 + $0x7c] sm:$0xf]
  %v44 = vld [vmem:[%s1] sm:$0xf]
  %v45 = vld [vmem:[%s1 + $0x4] sm:$0xf]
  %v46 = vld [vmem:[%s1 + $0x8] sm:$0xf]
  %v47 = vld [vmem:[%s1 + $0xc] sm:$0xf]
  %v48 = vld [vmem:[%s1 + $0x10] sm:$0xf]
  %v49 = vld [vmem:[%s1 + $0x14] sm:$0xf]
  %v50 = vld [vmem:[%s1 + $0x18] sm:$0xf]
  %v51 = vld [vmem:[%s1 + $0x1c] sm:$0xf]
  %v52 = vld [vmem:[%s1 + $0x20] sm:$0xf]
  %v53 = vld [vmem:[%s1 + $0x24] sm:$0xf]
  %v54 = vld [vmem:[%s1 + $0x28] sm:$0xf]
  %v55 = vld [vmem:[%s1 + $0x2c] sm:$0xf]
  %v56 = vld [vmem:[%s1 + $0x30] sm:$0xf]
  %v57 = vld [vmem:[%s1 + $0x34] sm:$0xf]
  %v58 = vld [vmem:[%s1 + $0x38] sm:$0xf]
  %v59 = vld [vmem:[%s1 + $0x3c] sm:$0xf]
  %v92 = vunpack.c.l.b16 %v12
  %v93 = vunpack.c.l.b16 %v13
  %v94 = vunpack.c.l.b16 %v14
  %v95 = vunpack.c.l.b16 %v15
  %v96 = vunpack.c.l.b16 %v16
  %v97 = vunpack.c.l.b16 %v17
  %v98 = vunpack.c.l.b16 %v18
  %v99 = vunpack.c.l.b16 %v19
  %v100 = vunpack.c.l.b16 %v20
  %v101 = vunpack.c.l.b16 %v21
  %v102 = vunpack.c.l.b16 %v22
  %v103 = vunpack.c.l.b16 %v23
  %v104 = vunpack.c.l.b16 %v24
  %v105 = vunpack.c.l.b16 %v25
  %v106 = vunpack.c.l.b16 %v26
  %v107 = vunpack.c.l.b16 %v27
  %v108 = vunpack.c.l.b16 %v28
  %v109 = vunpack.c.l.b16 %v29
  %v110 = vunpack.c.l.b16 %v30
  %v111 = vunpack.c.l.b16 %v31
  %v112 = vunpack.c.l.b16 %v32
  %v113 = vunpack.c.l.b16 %v33
  %v114 = vunpack.c.l.b16 %v34
  %v115 = vunpack.c.l.b16 %v35
  %v116 = vunpack.c.l.b16 %v36
  %v117 = vunpack.c.l.b16 %v37
  %v118 = vunpack.c.l.b16 %v38
  %v119 = vunpack.c.l.b16 %v39
  %v120 = vunpack.c.l.b16 %v40
  %v121 = vunpack.c.l.b16 %v41
  %v122 = vunpack.c.l.b16 %v42
  %v123 = vunpack.c.l.b16 %v43
  %v124 = vpack.c.b16 %v93, %v92
  %v125 = vpack.c.b16 %v95, %v94
  %v126 = vpack.c.b16 %v97, %v96
  %v127 = vpack.c.b16 %v99, %v98
  %v128 = vpack.c.b16 %v101, %v100
  %v129 = vpack.c.b16 %v103, %v102
  %v130 = vpack.c.b16 %v105, %v104
  %v131 = vpack.c.b16 %v107, %v106
  %v132 = vpack.c.b16 %v109, %v108
  %v133 = vpack.c.b16 %v111, %v110
  %v134 = vpack.c.b16 %v113, %v112
  %v135 = vpack.c.b16 %v115, %v114
  %v136 = vpack.c.b16 %v117, %v116
  %v137 = vpack.c.b16 %v119, %v118
  %v138 = vpack.c.b16 %v121, %v120
  %v139 = vpack.c.b16 %v123, %v122
  %v172 = vunpack.c.l.b16 %v44
  %v173 = vunpack.c.l.b16 %v45
  %v174 = vunpack.c.l.b16 %v46
  %v175 = vunpack.c.l.b16 %v47
  %v176 = vunpack.c.l.b16 %v48
  %v177 = vunpack.c.l.b16 %v49
  %v178 = vunpack.c.l.b16 %v50
  %v179 = vunpack.c.l.b16 %v51
  %v180 = vunpack.c.l.b16 %v52
  %v181 = vunpack.c.l.b16 %v53
  %v182 = vunpack.c.l.b16 %v54
  %v183 = vunpack.c.l.b16 %v55
  %v184 = vunpack.c.l.b16 %v56
  %v185 = vunpack.c.l.b16 %v57
  %v186 = vunpack.c.l.b16 %v58
  %v187 = vunpack.c.l.b16 %v59
  %v188 = vpack.c.b16 %v173, %v172
  %v189 = vpack.c.b16 %v175, %v174
  %v190 = vpack.c.b16 %v177, %v176
  %v191 = vpack.c.b16 %v179, %v178
  %v192 = vpack.c.b16 %v181, %v180
  %v193 = vpack.c.b16 %v183, %v182
  %v194 = vpack.c.b16 %v185, %v184
  %v195 = vpack.c.b16 %v187, %v186
  %204 = vmatprep.subr.bf16.mxu0 0
  %205 = vmatpush1.bf16.msra.mxu0 %v188
  %206 = vmatprep.subr.bf16.mxu0 0
  %207 = vmatpush1.bf16.msra.mxu0 %v189
  %208 = vmatprep.subr.bf16.mxu0 0
  %209 = vmatpush1.bf16.msra.mxu0 %v190
  %210 = vmatprep.subr.bf16.mxu0 0
  %211 = vmatpush1.bf16.msra.mxu0 %v191
  %212 = vmatprep.subr.bf16.mxu0 0
  %213 = vmatpush1.bf16.msra.mxu0 %v192
  %214 = vmatprep.subr.bf16.mxu0 0
  %215 = vmatpush1.bf16.msra.mxu0 %v193
  %216 = vmatprep.subr.bf16.mxu0 0
  %217 = vmatpush1.bf16.msra.mxu0 %v194
  %218 = vmatprep.subr.bf16.mxu0 0
  %219 = vmatpush1.bf16.msra.mxu0 %v195
  %220 = vmatprep.subr.bf16.mxu0 0
  %221 = vmatpush1.bf16.msra.mxu0 0
  %222 = vmatprep.subr.bf16.mxu0 0
  %223 = vmatpush1.bf16.msra.mxu0 0
  %224 = vmatprep.subr.bf16.mxu0 0
  %225 = vmatpush1.bf16.msra.mxu0 0
  %226 = vmatprep.subr.bf16.mxu0 0
  %227 = vmatpush1.bf16.msra.mxu0 0
  %228 = vmatprep.subr.bf16.mxu0 0
  %229 = vmatpush1.bf16.msra.mxu0 0
  %230 = vmatprep.subr.bf16.mxu0 0
  %231 = vmatpush1.bf16.msra.mxu0 0
  %232 = vmatprep.subr.bf16.mxu0 0
  %233 = vmatpush1.bf16.msra.mxu0 0
  %234 = vmatprep.subr.bf16.mxu0 0
  %235 = vmatpush1.bf16.msra.mxu0 0
  %236 = vmatprep.mubr.bf16.mxu0 0
  %237 = vmatmul.mubr.bf16.gmra.mrb[0].mxu0 %v124
  %v238 = vpop.f32.mrb[0].mxu0
  %v239 = vadd.f32 0.0, %v238
  %v240 = vpop.f32.mrb[0].mxu0
  %v241 = vpop.f32.mrb[0].mxu0
  %v242 = vadd.f32 0.0, %v241
  %v243 = vpop.f32.mrb[0].mxu0
  %244 = vmatprep.mubr.bf16.mxu0 0
  %245 = vmatmul.mubr.bf16.gmra.mrb[0].mxu0 %v125
  %v246 = vpop.f32.mrb[0].mxu0
  %v247 = vadd.f32 0.0, %v246
  %v248 = vpop.f32.mrb[0].mxu0
  %v249 = vpop.f32.mrb[0].mxu0
  %v250 = vadd.f32 0.0, %v249
  %v251 = vpop.f32.mrb[0].mxu0
  %252 = vmatprep.mubr.bf16.mxu0 0
  %253 = vmatmul.mubr.bf16.gmra.mrb[0].mxu0 %v126
  %v254 = vpop.f32.mrb[0].mxu0
  %v255 = vadd.f32 0.0, %v254
  %v256 = vpop.f32.mrb[0].mxu0
  %v257 = vpop.f32.mrb[0].mxu0
  %v258 = vadd.f32 0.0, %v257
  %v259 = vpop.f32.mrb[0].mxu0
  %260 = vmatprep.mubr.bf16.mxu0 0
  %261 = vmatmul.mubr.bf16.gmra.mrb[0].mxu0 %v127
  %v262 = vpop.f32.mrb[0].mxu0
  %v263 = vadd.f32 0.0, %v262
  %v264 = vpop.f32.mrb[0].mxu0
  %v265 = vpop.f32.mrb[0].mxu0
  %v266 = vadd.f32 0.0, %v265
  %v267 = vpop.f32.mrb[0].mxu0
  %268 = vmatprep.mubr.bf16.mxu0 0
  %269 = vmatmul.mubr.bf16.gmra.mrb[0].mxu0 %v128
  %v270 = vpop.f32.mrb[0].mxu0
  %v271 = vadd.f32 0.0, %v270
  %v272 = vpop.f32.mrb[0].mxu0
  %v273 = vpop.f32.mrb[0].mxu0
  %v274 = vadd.f32 0.0, %v273
  %v275 = vpop.f32.mrb[0].mxu0
  %276 = vmatprep.mubr.bf16.mxu0 0
  %277 = vmatmul.mubr.bf16.gmra.mrb[0].mxu0 %v129
  %v278 = vpop.f32.mrb[0].mxu0
  %v279 = vadd.f32 0.0, %v278
  %v280 = vpop.f32.mrb[0].mxu0
  %v281 = vpop.f32.mrb[0].mxu0
  %v282 = vadd.f32 0.0, %v281
  %v283 = vpop.f32.mrb[0].mxu0
  %284 = vmatprep.mubr.bf16.mxu0 0
  %285 = vmatmul.mubr.bf16.gmra.mrb[0].mxu0 %v130
  %v286 = vpop.f32.mrb[0].mxu0
  %v287 = vadd.f32 0.0, %v286
  %v288 = vpop.f32.mrb[0].mxu0
  %v289 = vpop.f32.mrb[0].mxu0
  %v290 = vadd.f32 0.0, %v289
  %v291 = vpop.f32.mrb[0].mxu0
  %292 = vmatprep.mubr.bf16.mxu0 0
  %293 = vmatmul.mubr.bf16.gmra.mrb[0].mxu0 %v131
  %v294 = vpop.f32.mrb[0].mxu0
  %v295 = vadd.f32 0.0, %v294
  %v296 = vpop.f32.mrb[0].mxu0
  %v297 = vpop.f32.mrb[0].mxu0
  %v298 = vadd.f32 0.0, %v297
  %v299 = vpop.f32.mrb[0].mxu0
  %300 = vmatprep.mubr.bf16.mxu0 0
  %301 = vmatmul.mubr.bf16.gmra.mrb[0].mxu0 %v132
  %v302 = vpop.f32.mrb[0].mxu0
  %v303 = vadd.f32 0.0, %v302
  %v304 = vpop.f32.mrb[0].mxu0
  %v305 = vpop.f32.mrb[0].mxu0
  %v306 = vadd.f32 0.0, %v305
  %v307 = vpop.f32.mrb[0].mxu0
  %308 = vmatprep.mubr.bf16.mxu0 0
  %309 = vmatmul.mubr.bf16.gmra.mrb[0].mxu0 %v133
  %v310 = vpop.f32.mrb[0].mxu0
  %v311 = vadd.f32 0.0, %v310
  %v312 = vpop.f32.mrb[0].mxu0
  %v313 = vpop.f32.mrb[0].mxu0
  %v314 = vadd.f32 0.0, %v313
  %v315 = vpop.f32.mrb[0].mxu0
  %316 = vmatprep.mubr.bf16.mxu0 0
  %317 = vmatmul.mubr.bf16.gmra.mrb[0].mxu0 %v134
  %v318 = vpop.f32.mrb[0].mxu0
  %v319 = vadd.f32 0.0, %v318
  %v320 = vpop.f32.mrb[0].mxu0
  %v321 = vpop.f32.mrb[0].mxu0
  %v322 = vadd.f32 0.0, %v321
  %v323 = vpop.f32.mrb[0].mxu0
  %324 = vmatprep.mubr.bf16.mxu0 0
  %325 = vmatmul.mubr.bf16.gmra.mrb[0].mxu0 %v135
  %v326 = vpop.f32.mrb[0].mxu0
  %v327 = vadd.f32 0.0, %v326
  %v328 = vpop.f32.mrb[0].mxu0
  %v329 = vpop.f32.mrb[0].mxu0
  %v330 = vadd.f32 0.0, %v329
  %v331 = vpop.f32.mrb[0].mxu0
  %332 = vmatprep.mubr.bf16.mxu0 0
  %333 = vmatmul.mubr.bf16.gmra.mrb[0].mxu0 %v136
  %v334 = vpop.f32.mrb[0].mxu0
  %v335 = vadd.f32 0.0, %v334
  %v336 = vpop.f32.mrb[0].mxu0
  %v337 = vpop.f32.mrb[0].mxu0
  %v338 = vadd.f32 0.0, %v337
  %v339 = vpop.f32.mrb[0].mxu0
  %340 = vmatprep.mubr.bf16.mxu0 0
  %341 = vmatmul.mubr.bf16.gmra.mrb[0].mxu0 %v137
  %v342 = vpop.f32.mrb[0].mxu0
  %v343 = vadd.f32 0.0, %v342
  %v344 = vpop.f32.mrb[0].mxu0
  %v345 = vpop.f32.mrb[0].mxu0
  %v346 = vadd.f32 0.0, %v345
  %v347 = vpop.f32.mrb[0].mxu0
  %348 = vmatprep.mubr.bf16.mxu0 0
  %349 = vmatmul.mubr.bf16.gmra.mrb[0].mxu0 %v138
  %v350 = vpop.f32.mrb[0].mxu0
  %v351 = vadd.f32 0.0, %v350
  %v352 = vpop.f32.mrb[0].mxu0
  %v353 = vpop.f32.mrb[0].mxu0
  %v354 = vadd.f32 0.0, %v353
  %v355 = vpop.f32.mrb[0].mxu0
  %356 = vmatprep.mubr.bf16.mxu0 0
  %357 = vmatmul.mubr.bf16.gmra.mrb[0].mxu0 %v139
  %v358 = vpop.f32.mrb[0].mxu0
  %v359 = vadd.f32 0.0, %v358
  %v360 = vpop.f32.mrb[0].mxu0
  %v361 = vpop.f32.mrb[0].mxu0
  %v362 = vadd.f32 0.0, %v361
  %v363 = vpop.f32.mrb[0].mxu0
  %364 = vdwg.mxu0
  %365 = vst [vmem:[%s2] sm:$0xff] %v239
  %366 = vst [vmem:[%s2 + $0x8] sm:$0xff] %v242
  %367 = vst [vmem:[%s2 + $0x10] sm:$0xff] %v247
  %368 = vst [vmem:[%s2 + $0x18] sm:$0xff] %v250
  %369 = vst [vmem:[%s2 + $0x20] sm:$0xff] %v255
  %370 = vst [vmem:[%s2 + $0x28] sm:$0xff] %v258
  %371 = vst [vmem:[%s2 + $0x30] sm:$0xff] %v263
  %372 = vst [vmem:[%s2 + $0x38] sm:$0xff] %v266
  %373 = vst [vmem:[%s2 + $0x40] sm:$0xff] %v271
  %374 = vst [vmem:[%s2 + $0x48] sm:$0xff] %v274
  %375 = vst [vmem:[%s2 + $0x50] sm:$0xff] %v279
  %376 = vst [vmem:[%s2 + $0x58] sm:$0xff] %v282
  %377 = vst [vmem:[%s2 + $0x60] sm:$0xff] %v287
  %378 = vst [vmem:[%s2 + $0x68] sm:$0xff] %v290
  %379 = vst [vmem:[%s2 + $0x70] sm:$0xff] %v295
  %380 = vst [vmem:[%s2 + $0x78] sm:$0xff] %v298
  %381 = vst [vmem:[%s2 + $0x80] sm:$0xff] %v303
  %382 = vst [vmem:[%s2 + $0x88] sm:$0xff] %v306
  %383 = vst [vmem:[%s2 + $0x90] sm:$0xff] %v311
  %384 = vst [vmem:[%s2 + $0x98] sm:$0xff] %v314
  %385 = vst [vmem:[%s2 + $0xa0] sm:$0xff] %v319
  %386 = vst [vmem:[%s2 + $0xa8] sm:$0xff] %v322
  %387 = vst [vmem:[%s2 + $0xb0] sm:$0xff] %v327
  %388 = vst [vmem:[%s2 + $0xb8] sm:$0xff] %v330
  %389 = vst [vmem:[%s2 + $0xc0] sm:$0xff] %v335
  %390 = vst [vmem:[%s2 + $0xc8] sm:$0xff] %v338
  %391 = vst [vmem:[%s2 + $0xd0] sm:$0xff] %v343
  %392 = vst [vmem:[%s2 + $0xd8] sm:$0xff] %v346
  %393 = vst [vmem:[%s2 + $0xe0] sm:$0xff] %v351
  %394 = vst [vmem:[%s2 + $0xe8] sm:$0xff] %v354
  %395 = vst [vmem:[%s2 + $0xf0] sm:$0xff] %v359
  %396 = vst [vmem:[%s2 + $0xf8] sm:$0xff] %v362
  // Predicated region
  $region10: #{_lambda_.6} parent=0 // pred_check
    _
  $region11: #{_lambda_.6} parent=0 // pred_check_branch
    %398 = sbr.rel (0) target = $region13
  $region12: #{_lambda_.6} parent=0 // pred_region
    _
  $region13: #{_lambda_.6} parent=0 // pred_fallthru
    _
  // Predicated region
  $region14: #{_lambda_.6} parent=0 // pred_check
    _
  $region15: #{_lambda_.6} parent=0 // pred_check_branch
    %400 = sbr.rel (0) target = $region17
  $region16: #{_lambda_.6} parent=0 // pred_region
    _
  $region17: #{_lambda_.6} parent=0 // pred_fallthru
    _

// kernel: _lambda_.4
$region0: #{_lambda_.4}
  #allocation0 [shape = 'u32[]', space=smem, size = 0x4, offset = 0x4, fixed_abs, tag = 'smem constant byte address 0x4 - core index']
  #allocation1 [shape = 'u32[144,128]{1,0:T(1,128)}', space=vmem, size = 0x12000, scoped, tag = 'internal scratch']
  %s0 = inlined_call_operand.vmem [shape: bf16[256,48], index: 0, kind: input, shape index: {}]
  %s1 = inlined_call_operand.vmem [shape: bf16[48,128], index: 1, kind: input, shape index: {}]
  %s2 = inlined_call_operand.vmem [shape: f32[256,128], index: 2, kind: output, shape index: {}]
  %s3 = sld [smem:[#allocation0]]
  $region18: #{_lambda_.4} parent=0
    _
  %s5 = ssub.s32 1, %s3
  %s6 = scalar_select 0, %s5, %s3
  // Predicated region
  $region2: #{_lambda_.4} parent=0 // pred_check
    _
  $region3: #{_lambda_.4} parent=0 // pred_check_branch
    %8 = sbr.rel (0) target = $region5
  $region4: #{_lambda_.4} parent=0 // pred_region
    _
  $region5: #{_lambda_.4} parent=0 // pred_fallthru
    _
  // Predicated region
  $region6: #{_lambda_.4} parent=0 // pred_check
    _
  $region7: #{_lambda_.4} parent=0 // pred_check_branch
    %10 = sbr.rel (0) target = $region9
  $region8: #{_lambda_.4} parent=0 // pred_region
    _
  $region9: #{_lambda_.4} parent=0 // pred_fallthru
    _
  %v12 = vld [vmem:[%s0] sm:$0xf]
  %v13 = vld [vmem:[%s0 + $0x4] sm:$0xf]
  %v14 = vld [vmem:[%s0 + $0x8] sm:$0xf]
  %v15 = vld [vmem:[%s0 + $0xc] sm:$0xf]
  %v16 = vld [vmem:[%s0 + $0x10] sm:$0xf]
  %v17 = vld [vmem:[%s0 + $0x14] sm:$0xf]
  %v18 = vld [vmem:[%s0 + $0x18] sm:$0xf]
  %v19 = vld [vmem:[%s0 + $0x1c] sm:$0xf]
  %v20 = vld [vmem:[%s0 + $0x20] sm:$0xf]
  %v21 = vld [vmem:[%s0 + $0x24] sm:$0xf]
  %v22 = vld [vmem:[%s0 + $0x28] sm:$0xf]
  %v23 = vld [vmem:[%s0 + $0x2c] sm:$0xf]
  %v24 = vld [vmem:[%s0 + $0x30] sm:$0xf]
  %v25 = vld [vmem:[%s0 + $0x34] sm:$0xf]
  %v26 = vld [vmem:[%s0 + $0x38] sm:$0xf]
  %v27 = vld [vmem:[%s0 + $0x3c] sm:$0xf]
  %v28 = vld [vmem:[%s0 + $0x40] sm:$0xf]
  %v29 = vld [vmem:[%s0 + $0x44] sm:$0xf]
  %v30 = vld [vmem:[%s0 + $0x48] sm:$0xf]
  %v31 = vld [vmem:[%s0 + $0x4c] sm:$0xf]
  %v32 = vld [vmem:[%s0 + $0x50] sm:$0xf]
  %v33 = vld [vmem:[%s0 + $0x54] sm:$0xf]
  %v34 = vld [vmem:[%s0 + $0x58] sm:$0xf]
  %v35 = vld [vmem:[%s0 + $0x5c] sm:$0xf]
  %v36 = vld [vmem:[%s0 + $0x60] sm:$0xf]
  %v37 = vld [vmem:[%s0 + $0x64] sm:$0xf]
  %v38 = vld [vmem:[%s0 + $0x68] sm:$0xf]
  %v39 = vld [vmem:[%s0 + $0x6c] sm:$0xf]
  %v40 = vld [vmem:[%s0 + $0x70] sm:$0xf]
  %v41 = vld [vmem:[%s0 + $0x74] sm:$0xf]
  %v42 = vld [vmem:[%s0 + $0x78] sm:$0xf]
  %v43 = vld [vmem:[%s0 + $0x7c] sm:$0xf]
  %v44 = vld [vmem:[%s1] sm:$0xf]
  %v45 = vld [vmem:[%s1 + $0x4] sm:$0xf]
  %v46 = vld [vmem:[%s1 + $0x8] sm:$0xf]
  %v47 = vld [vmem:[%s1 + $0xc] sm:$0xf]
  %v48 = vld [vmem:[%s1 + $0x10] sm:$0xf]
  %v49 = vld [vmem:[%s1 + $0x14] sm:$0xf]
  %v82 = vunpack.c.l.b16 %v12
  %v83 = vunpack.c.l.b16 %v13
  %v84 = vunpack.c.l.b16 %v14
  %v85 = vunpack.c.l.b16 %v15
  %v86 = vunpack.c.l.b16 %v16
  %v87 = vunpack.c.l.b16 %v17
  %v88 = vunpack.c.l.b16 %v18
  %v89 = vunpack.c.l.b16 %v19
  %v90 = vunpack.c.l.b16 %v20
  %v91 = vunpack.c.l.b16 %v21
  %v92 = vunpack.c.l.b16 %v22
  %v93 = vunpack.c.l.b16 %v23
  %v94 = vunpack.c.l.b16 %v24
  %v95 = vunpack.c.l.b16 %v25
  %v96 = vunpack.c.l.b16 %v26
  %v97 = vunpack.c.l.b16 %v27
  %v98 = vunpack.c.l.b16 %v28
  %v99 = vunpack.c.l.b16 %v29
  %v100 = vunpack.c.l.b16 %v30
  %v101 = vunpack.c.l.b16 %v31
  %v102 = vunpack.c.l.b16 %v32
  %v103 = vunpack.c.l.b16 %v33
  %v104 = vunpack.c.l.b16 %v34
  %v105 = vunpack.c.l.b16 %v35
  %v106 = vunpack.c.l.b16 %v36
  %v107 = vunpack.c.l.b16 %v37
  %v108 = vunpack.c.l.b16 %v38
  %v109 = vunpack.c.l.b16 %v39
  %v110 = vunpack.c.l.b16 %v40
  %v111 = vunpack.c.l.b16 %v41
  %v112 = vunpack.c.l.b16 %v42
  %v113 = vunpack.c.l.b16 %v43
  %v114 = vpack.c.b16 %v83, %v82
  %v115 = vpack.c.b16 %v85, %v84
  %v116 = vpack.c.b16 %v87, %v86
  %v117 = vpack.c.b16 %v89, %v88
  %v118 = vpack.c.b16 %v91, %v90
  %v119 = vpack.c.b16 %v93, %v92
  %v120 = vpack.c.b16 %v95, %v94
  %v121 = vpack.c.b16 %v97, %v96
  %v122 = vpack.c.b16 %v99, %v98
  %v123 = vpack.c.b16 %v101, %v100
  %v124 = vpack.c.b16 %v103, %v102
  %v125 = vpack.c.b16 %v105, %v104
  %v126 = vpack.c.b16 %v107, %v106
  %v127 = vpack.c.b16 %v109, %v108
  %v128 = vpack.c.b16 %v111, %v110
  %v129 = vpack.c.b16 %v113, %v112
  %v136 = vunpack.c.l.b16 %v44
  %v137 = vunpack.c.l.b16 %v45
  %v138 = vunpack.c.l.b16 %v46
  %v139 = vunpack.c.l.b16 %v47
  %v140 = vunpack.c.l.b16 %v48
  %v141 = vunpack.c.l.b16 %v49
  %v142 = vpack.c.b16 %v137, %v136
  %v143 = vpack.c.b16 %v139, %v138
  %v144 = vpack.c.b16 %v141, %v140
  %vm148 = vcmask 392192
  %v150 = vsel %vm148, %v114, 0
  %v153 = vsel %vm148, %v115, 0
  %v156 = vsel %vm148, %v116, 0
  %v159 = vsel %vm148, %v117, 0
  %v162 = vsel %vm148, %v118, 0
  %v165 = vsel %vm148, %v119, 0
  %v168 = vsel %vm148, %v120, 0
  %v171 = vsel %vm148, %v121, 0
  %v174 = vsel %vm148, %v122, 0
  %v177 = vsel %vm148, %v123, 0
  %v180 = vsel %vm148, %v124, 0
  %v183 = vsel %vm148, %v125, 0
  %v186 = vsel %vm148, %v126, 0
  %v189 = vsel %vm148, %v127, 0
  %v192 = vsel %vm148, %v128, 0
  %v195 = vsel %vm148, %v129, 0
  %197 = vmatprep.subr.bf16.mxu0 0
  %198 = vmatpush1.bf16.msra.mxu0 %v142
  %199 = vmatprep.subr.bf16.mxu0 0
  %200 = vmatpush1.bf16.msra.mxu0 %v143
  %201 = vmatprep.subr.bf16.mxu0 0
  %202 = vmatpush1.bf16.msra.mxu0 %v144
  %203 = vmatprep.subr.bf16.mxu0 0
  %204 = vmatpush1.bf16.msra.mxu0 0
  %205 = vmatprep.subr.bf16.mxu0 0
  %206 = vmatpush1.bf16.msra.mxu0 0
  %207 = vmatprep.subr.bf16.mxu0 0
  %208 = vmatpush1.bf16.msra.mxu0 0
  %209 = vmatprep.subr.bf16.mxu0 0
  %210 = vmatpush1.bf16.msra.mxu0 0
  %211 = vmatprep.subr.bf16.mxu0 0
  %212 = vmatpush1.bf16.msra.mxu0 0
  %213 = vmatprep.subr.bf16.mxu0 0
  %214 = vmatpush1.bf16.msra.mxu0 0
  %215 = vmatprep.subr.bf16.mxu0 0
  %216 = vmatpush1.bf16.msra.mxu0 0
  %217 = vmatprep.subr.bf16.mxu0 0
  %218 = vmatpush1.bf16.msra.mxu0 0
  %219 = vmatprep.subr.bf16.mxu0 0
  %220 = vmatpush1.bf16.msra.mxu0 0
  %221 = vmatprep.subr.bf16.mxu0 0
  %222 = vmatpush1.bf16.msra.mxu0 0
  %223 = vmatprep.subr.bf16.mxu0 0
  %224 = vmatpush1.bf16.msra.mxu0 0
  %225 = vmatprep.subr.bf16.mxu0 0
  %226 = vmatpush1.bf16.msra.mxu0 0
  %227 = vmatprep.subr.bf16.mxu0 0
  %228 = vmatpush1.bf16.msra.mxu0 0
  %229 = vmatprep.mubr.bf16.mxu0 0
  %230 = vmatmul.mubr.bf16.gmra.mrb[0].mxu0 %v150
  %v231 = vpop.f32.mrb[0].mxu0
  %v232 = vadd.f32 0.0, %v231
  %v233 = vpop.f32.mrb[0].mxu0
  %v234 = vpop.f32.mrb[0].mxu0
  %v235 = vadd.f32 0.0, %v234
  %v236 = vpop.f32.mrb[0].mxu0
  %237 = vmatprep.mubr.bf16.mxu0 0
  %238 = vmatmul.mubr.bf16.gmra.mrb[0].mxu0 %v153
  %v239 = vpop.f32.mrb[0].mxu0
  %v240 = vadd.f32 0.0, %v239
  %v241 = vpop.f32.mrb[0].mxu0
  %v242 = vpop.f32.mrb[0].mxu0
  %v243 = vadd.f32 0.0, %v242
  %v244 = vpop.f32.mrb[0].mxu0
  %245 = vmatprep.mubr.bf16.mxu0 0
  %246 = vmatmul.mubr.bf16.gmra.mrb[0].mxu0 %v156
  %v247 = vpop.f32.mrb[0].mxu0
  %v248 = vadd.f32 0.0, %v247
  %v249 = vpop.f32.mrb[0].mxu0
  %v250 = vpop.f32.mrb[0].mxu0
  %v251 = vadd.f32 0.0, %v250
  %v252 = vpop.f32.mrb[0].mxu0
  %253 = vmatprep.mubr.bf16.mxu0 0
  %254 = vmatmul.mubr.bf16.gmra.mrb[0].mxu0 %v159
  %v255 = vpop.f32.mrb[0].mxu0
  %v256 = vadd.f32 0.0, %v255
  %v257 = vpop.f32.mrb[0].mxu0
  %v258 = vpop.f32.mrb[0].mxu0
  %v259 = vadd.f32 0.0, %v258
  %v260 = vpop.f32.mrb[0].mxu0
  %261 = vmatprep.mubr.bf16.mxu0 0
  %262 = vmatmul.mubr.bf16.gmra.mrb[0].mxu0 %v162
  %v263 = vpop.f32.mrb[0].mxu0
  %v264 = vadd.f32 0.0, %v263
  %v265 = vpop.f32.mrb[0].mxu0
  %v266 = vpop.f32.mrb[0].mxu0
  %v267 = vadd.f32 0.0, %v266
  %v268 = vpop.f32.mrb[0].mxu0
  %269 = vmatprep.mubr.bf16.mxu0 0
  %270 = vmatmul.mubr.bf16.gmra.mrb[0].mxu0 %v165
  %v271 = vpop.f32.mrb[0].mxu0
  %v272 = vadd.f32 0.0, %v271
  %v273 = vpop.f32.mrb[0].mxu0
  %v274 = vpop.f32.mrb[0].mxu0
  %v275 = vadd.f32 0.0, %v274
  %v276 = vpop.f32.mrb[0].mxu0
  %277 = vmatprep.mubr.bf16.mxu0 0
  %278 = vmatmul.mubr.bf16.gmra.mrb[0].mxu0 %v168
  %v279 = vpop.f32.mrb[0].mxu0
  %v280 = vadd.f32 0.0, %v279
  %v281 = vpop.f32.mrb[0].mxu0
  %v282 = vpop.f32.mrb[0].mxu0
  %v283 = vadd.f32 0.0, %v282
  %v284 = vpop.f32.mrb[0].mxu0
  %285 = vmatprep.mubr.bf16.mxu0 0
  %286 = vmatmul.mubr.bf16.gmra.mrb[0].mxu0 %v171
  %v287 = vpop.f32.mrb[0].mxu0
  %v288 = vadd.f32 0.0, %v287
  %v289 = vpop.f32.mrb[0].mxu0
  %v290 = vpop.f32.mrb[0].mxu0
  %v291 = vadd.f32 0.0, %v290
  %v292 = vpop.f32.mrb[0].mxu0
  %293 = vmatprep.mubr.bf16.mxu0 0
  %294 = vmatmul.mubr.bf16.gmra.mrb[0].mxu0 %v174
  %v295 = vpop.f32.mrb[0].mxu0
  %v296 = vadd.f32 0.0, %v295
  %v297 = vpop.f32.mrb[0].mxu0
  %v298 = vpop.f32.mrb[0].mxu0
  %v299 = vadd.f32 0.0, %v298
  %v300 = vpop.f32.mrb[0].mxu0
  %301 = vmatprep.mubr.bf16.mxu0 0
  %302 = vmatmul.mubr.bf16.gmra.mrb[0].mxu0 %v177
  %v303 = vpop.f32.mrb[0].mxu0
  %v304 = vadd.f32 0.0, %v303
  %v305 = vpop.f32.mrb[0].mxu0
  %v306 = vpop.f32.mrb[0].mxu0
  %v307 = vadd.f32 0.0, %v306
  %v308 = vpop.f32.mrb[0].mxu0
  %309 = vmatprep.mubr.bf16.mxu0 0
  %310 = vmatmul.mubr.bf16.gmra.mrb[0].mxu0 %v180
  %v311 = vpop.f32.mrb[0].mxu0
  %v312 = vadd.f32 0.0, %v311
  %v313 = vpop.f32.mrb[0].mxu0
  %v314 = vpop.f32.mrb[0].mxu0
  %v315 = vadd.f32 0.0, %v314
  %v316 = vpop.f32.mrb[0].mxu0
  %317 = vmatprep.mubr.bf16.mxu0 0
  %318 = vmatmul.mubr.bf16.gmra.mrb[0].mxu0 %v183
  %v319 = vpop.f32.mrb[0].mxu0
  %v320 = vadd.f32 0.0, %v319
  %v321 = vpop.f32.mrb[0].mxu0
  %v322 = vpop.f32.mrb[0].mxu0
  %v323 = vadd.f32 0.0, %v322
  %v324 = vpop.f32.mrb[0].mxu0
  %325 = vmatprep.mubr.bf16.mxu0 0
  %326 = vmatmul.mubr.bf16.gmra.mrb[0].mxu0 %v186
  %v327 = vpop.f32.mrb[0].mxu0
  %v328 = vadd.f32 0.0, %v327
  %v329 = vpop.f32.mrb[0].mxu0
  %v330 = vpop.f32.mrb[0].mxu0
  %v331 = vadd.f32 0.0, %v330
  %v332 = vpop.f32.mrb[0].mxu0
  %333 = vmatprep.mubr.bf16.mxu0 0
  %334 = vmatmul.mubr.bf16.gmra.mrb[0].mxu0 %v189
  %v335 = vpop.f32.mrb[0].mxu0
  %v336 = vadd.f32 0.0, %v335
  %v337 = vpop.f32.mrb[0].mxu0
  %v338 = vpop.f32.mrb[0].mxu0
  %v339 = vadd.f32 0.0, %v338
  %v340 = vpop.f32.mrb[0].mxu0
  %341 = vmatprep.mubr.bf16.mxu0 0
  %342 = vmatmul.mubr.bf16.gmra.mrb[0].mxu0 %v192
  %v343 = vpop.f32.mrb[0].mxu0
  %v344 = vadd.f32 0.0, %v343
  %v345 = vpop.f32.mrb[0].mxu0
  %v346 = vpop.f32.mrb[0].mxu0
  %v347 = vadd.f32 0.0, %v346
  %v348 = vpop.f32.mrb[0].mxu0
  %349 = vmatprep.mubr.bf16.mxu0 0
  %350 = vmatmul.mubr.bf16.gmra.mrb[0].mxu0 %v195
  %v351 = vpop.f32.mrb[0].mxu0
  %v352 = vadd.f32 0.0, %v351
  %v353 = vpop.f32.mrb[0].mxu0
  %v354 = vpop.f32.mrb[0].mxu0
  %v355 = vadd.f32 0.0, %v354
  %v356 = vpop.f32.mrb[0].mxu0
  %357 = vdwg.mxu0
  %358 = vst [vmem:[%s2] sm:$0xff] %v232
  %359 = vst [vmem:[%s2 + $0x8] sm:$0xff] %v235
  %360 = vst [vmem:[%s2 + $0x10] sm:$0xff] %v240
  %361 = vst [vmem:[%s2 + $0x18] sm:$0xff] %v243
  %362 = vst [vmem:[%s2 + $0x20] sm:$0xff] %v248
  %363 = vst [vmem:[%s2 + $0x28] sm:$0xff] %v251
  %364 = vst [vmem:[%s2 + $0x30] sm:$0xff] %v256
  %365 = vst [vmem:[%s2 + $0x38] sm:$0xff] %v259
  %366 = vst [vmem:[%s2 + $0x40] sm:$0xff] %v264
  %367 = vst [vmem:[%s2 + $0x48] sm:$0xff] %v267
  %368 = vst [vmem:[%s2 + $0x50] sm:$0xff] %v272
  %369 = vst [vmem:[%s2 + $0x58] sm:$0xff] %v275
  %370 = vst [vmem:[%s2 + $0x60] sm:$0xff] %v280
  %371 = vst [vmem:[%s2 + $0x68] sm:$0xff] %v283
  %372 = vst [vmem:[%s2 + $0x70] sm:$0xff] %v288
  %373 = vst [vmem:[%s2 + $0x78] sm:$0xff] %v291
  %374 = vst [vmem:[%s2 + $0x80] sm:$0xff] %v296
  %375 = vst [vmem:[%s2 + $0x88] sm:$0xff] %v299
  %376 = vst [vmem:[%s2 + $0x90] sm:$0xff] %v304
  %377 = vst [vmem:[%s2 + $0x98] sm:$0xff] %v307
  %378 = vst [vmem:[%s2 + $0xa0] sm:$0xff] %v312
  %379 = vst [vmem:[%s2 + $0xa8] sm:$0xff] %v315
  %380 = vst [vmem:[%s2 + $0xb0] sm:$0xff] %v320
  %381 = vst [vmem:[%s2 + $0xb8] sm:$0xff] %v323
  %382 = vst [vmem:[%s2 + $0xc0] sm:$0xff] %v328
  %383 = vst [vmem:[%s2 + $0xc8] sm:$0xff] %v331
  %384 = vst [vmem:[%s2 + $0xd0] sm:$0xff] %v336
  %385 = vst [vmem:[%s2 + $0xd8] sm:$0xff] %v339
  %386 = vst [vmem:[%s2 + $0xe0] sm:$0xff] %v344
  %387 = vst [vmem:[%s2 + $0xe8] sm:$0xff] %v347
  %388 = vst [vmem:[%s2 + $0xf0] sm:$0xff] %v352
  %389 = vst [vmem:[%s2 + $0xf8] sm:$0xff] %v355
  // Predicated region
  $region10: #{_lambda_.4} parent=0 // pred_check
    _
  $region11: #{_lambda_.4} parent=0 // pred_check_branch
    %391 = sbr.rel (0) target = $region13
  $region12: #{_lambda_.4} parent=0 // pred_region
    _
  $region13: #{_lambda_.4} parent=0 // pred_fallthru
    _
  // Predicated region
  $region14: #{_lambda_.4} parent=0 // pred_check
    _
  $region15: #{_lambda_.4} parent=0 // pred_check_branch
    %393 = sbr.rel (0) target = $region17
  $region16: #{_lambda_.4} parent=0 // pred_region
    _
  $region17: #{_lambda_.4} parent=0 // pred_fallthru
    _

// kernel: _lambda_.5
$region0: #{_lambda_.5}
  #allocation0 [shape = 'u32[]', space=smem, size = 0x4, offset = 0x4, fixed_abs, tag = 'smem constant byte address 0x4 - core index']
  #allocation1 [shape = 'u32[144,128]{1,0:T(1,128)}', space=vmem, size = 0x12000, scoped, tag = 'internal scratch']
  #allocation2 [shape = 'f32[128,128]{1,0:T(8,128)}', space=vmem, size = 0x10000, scoped, tag = 'scratch operand']
  %s0 = inlined_call_operand.vmem [shape: bf16[4,16,256], index: 0, kind: input, shape index: {}]
  %s1 = inlined_call_operand.vmem [shape: f32[4,256,1], index: 1, kind: input, shape index: {}]
  %s2 = inlined_call_operand.vmem [shape: f32[4,1,256], index: 2, kind: input, shape index: {}]
  %s3 = inlined_call_operand.vmem [shape: s8[256,256], index: 3, kind: input, shape index: {}]
  %s4 = inlined_call_operand.vmem [shape: f32[1,128], index: 4, kind: input, shape index: {}]
  %s5 = inlined_call_operand.vmem [shape: bf16[256,128], index: 5, kind: output, shape index: {}]
  %s6 = sld [smem:[#allocation0]]
  $region132: #{_lambda_.5} parent=0
    _
  %s8 = ssub.s32 1, %s6
  %s9 = scalar_select 0, %s8, %s6
  $region1: #{_lambda_.5} parent=0
    #allocation3 [shape = 'u8[4096]{0}', space=vmem, size = 0x1000, scoped, tag = 'input window, operand 2']
    #allocation4 [shape = 'u8[65536]{0}', space=vmem, size = 0x10000, scoped, tag = 'input window, operand 3']
    loop: start=0, step=1, limit=4
    $region2: #{_lambda_.5} parent=1 // loop_pre_header
      _
    $region3: #{_lambda_.5} parent=1 // loop_header
      %s11 = sphi 0, %s15
      %p12 = scmp.ge.s32.totalorder %s11, 4
      %s19 = sphi 0, %s19
      %s21 = sphi 0, %s19
      %s22 = sphi 0, %s21
      %s36 = sphi 0, %s22
      %s40 = sphi 0, %s40
      %s42 = sphi 0, %s40
      %s43 = sphi 0, %s42
      %s57 = sphi 0, %s43
      %s63 = sphi 0, %s65
      %s66 = sphi 0, %s63
      %s67 = sphi 0, %s66
      %s83 = sphi 0, %s67
      %s89 = sphi 0, %s91
      %s92 = sphi 0, %s89
      %s93 = sphi 0, %s92
      %s109 = sphi 0, %s93
      %s113 = sphi 0, %s113
      %s115 = sphi 0, %s113
      %s116 = sphi 0, %s115
      %s130 = sphi 0, %s116
      %s136 = sphi 0, %s138
      %s139 = sphi 0, %s136
      %s140 = sphi 0, %s139
      %s156 = sphi 0, %s140
    $region4: #{_lambda_.5} parent=1 // loop_header_branch
      %14 = sbr.rel (%p12) target = $region8
    $region5: #{_lambda_.5} parent=1 // loop_body
      %s16 = ssub.s32 %s11, 1
      %s17 = ssub.s32 %s11, 2
      %s18 = sadd.s32 %s11, 1
      %s20 = sadd.s32 %s19, 1
      %p23 = scmp.eq.s32.totalorder %s11, 1
      %p24 = scmp.ne.s32.totalorder %s19, %s21
      %p25 = scmp.eq.s32.totalorder %s11, 0
      %p26 = por %p24, %p25
      %p27 = scmp.ne.s32.totalorder %s19, %s21
      %p28 = scmp.eq.s32.totalorder %s16, 1
      %p29 = por %p27, %p28
      %p30 = scmp.ne.s32.totalorder %s21, %s22
      %p31 = scmp.eq.s32.totalorder %s16, 0
      %p32 = por %p30, %p31
      %p33 = scmp.ne.s32.totalorder %s21, %s22
      %p34 = scmp.eq.s32.totalorder %s17, 1
      %p35 = por %p33, %p34
      %p37 = scmp.ne.s32.totalorder %s22, %s36
      %p38 = scmp.eq.s32.totalorder %s17, 0
      %p39 = por %p37, %p38
      %s41 = sadd.s32 %s40, 1
      %p44 = scmp.eq.s32.totalorder %s11, 1
      %p45 = scmp.ne.s32.totalorder %s40, %s42
      %p46 = scmp.eq.s32.totalorder %s11, 0
      %p47 = por %p45, %p46
      %p48 = scmp.ne.s32.totalorder %s40, %s42
      %p49 = scmp.eq.s32.totalorder %s16, 1
      %p50 = por %p48, %p49
      %p51 = scmp.ne.s32.totalorder %s42, %s43
      %p52 = scmp.eq.s32.totalorder %s16, 0
      %p53 = por %p51, %p52
      %p54 = scmp.ne.s32.totalorder %s42, %s43
      %p55 = scmp.eq.s32.totalorder %s17, 1
      %p56 = por %p54, %p55
      %p58 = scmp.ne.s32.totalorder %s43, %s57
      %p59 = scmp.eq.s32.totalorder %s17, 0
      %p60 = por %p58, %p59
      %s61 = ssub.s32 %s11, %s18
      %p62 = scmp.eq.s32.totalorder %s61, 0
      %s64 = sadd.s32 %s63, 1
      %s65 = scalar_select %p62, %s63, %s64
      %p68 = pneg %p62
      %p69 = scmp.eq.s32.totalorder %s11, 1
      %p70 = por %p68, %p69
      %p71 = scmp.ne.s32.totalorder %s63, %s66
      %p72 = scmp.eq.s32.totalorder %s11, 0
      %p73 = por %p71, %p72
      %p74 = scmp.ne.s32.totalorder %s63, %s66
      %p75 = scmp.eq.s32.totalorder %s16, 1
      %p76 = por %p74, %p75
      %p77 = scmp.ne.s32.totalorder %s66, %s67
      %p78 = scmp.eq.s32.totalorder %s16, 0
      %p79 = por %p77, %p78
      %p80 = scmp.ne.s32.totalorder %s66, %s67
      %p81 = scmp.eq.s32.totalorder %s17, 1
      %p82 = por %p80, %p81
      %p84 = scmp.ne.s32.totalorder %s67, %s83
      %p85 = scmp.eq.s32.totalorder %s17, 0
      %p86 = por %p84, %p85
      %s87 = ssub.s32 %s11, %s18
      %p88 = scmp.eq.s32.totalorder %s87, 0
      %s90 = sadd.s32 %s89, 1
      %s91 = scalar_select %p88, %s89, %s90
      %p94 = pneg %p88
      %p95 = scmp.eq.s32.totalorder %s11, 1
      %p96 = por %p94, %p95
      %p97 = scmp.ne.s32.totalorder %s89, %s92
      %p98 = scmp.eq.s32.totalorder %s11, 0
      %p99 = por %p97, %p98
      %p100 = scmp.ne.s32.totalorder %s89, %s92
      %p101 = scmp.eq.s32.totalorder %s16, 1
      %p102 = por %p100, %p101
      %p103 = scmp.ne.s32.totalorder %s92, %s93
      %p104 = scmp.eq.s32.totalorder %s16, 0
      %p105 = por %p103, %p104
      %p106 = scmp.ne.s32.totalorder %s92, %s93
      %p107 = scmp.eq.s32.totalorder %s17, 1
      %p108 = por %p106, %p107
      %p110 = scmp.ne.s32.totalorder %s93, %s109
      %p111 = scmp.eq.s32.totalorder %s17, 0
      %p112 = por %p110, %p111
      %s114 = sadd.s32 %s113, 1
      %p117 = scmp.eq.s32.totalorder %s11, 1
      %p118 = scmp.ne.s32.totalorder %s113, %s115
      %p119 = scmp.eq.s32.totalorder %s11, 0
      %p120 = por %p118, %p119
      %p121 = scmp.ne.s32.totalorder %s113, %s115
      %p122 = scmp.eq.s32.totalorder %s16, 1
      %p123 = por %p121, %p122
      %p124 = scmp.ne.s32.totalorder %s115, %s116
      %p125 = scmp.eq.s32.totalorder %s16, 0
      %p126 = por %p124, %p125
      %p127 = scmp.ne.s32.totalorder %s115, %s116
      %p128 = scmp.eq.s32.totalorder %s17, 1
      %p129 = por %p127, %p128
      %p131 = scmp.ne.s32.totalorder %s116, %s130
      %p132 = scmp.eq.s32.totalorder %s17, 0
      %p133 = por %p131, %p132
      %s134 = ssub.s32 %s11, %s18
      %p135 = scmp.eq.s32.totalorder %s134, 0
      %s137 = sadd.s32 %s136, 1
      %s138 = scalar_select %p135, %s136, %s137
      %p141 = pneg %p135
      %p142 = scmp.eq.s32.totalorder %s11, 1
      %p143 = por %p141, %p142
      %p144 = scmp.ne.s32.totalorder %s136, %s139
      %p145 = scmp.eq.s32.totalorder %s11, 0
      %p146 = por %p144, %p145
      %p147 = scmp.ne.s32.totalorder %s136, %s139
      %p148 = scmp.eq.s32.totalorder %s16, 1
      %p149 = por %p147, %p148
      %p150 = scmp.ne.s32.totalorder %s139, %s140
      %p151 = scmp.eq.s32.totalorder %s16, 0
      %p152 = por %p150, %p151
      %p153 = scmp.ne.s32.totalorder %s139, %s140
      %p154 = scmp.eq.s32.totalorder %s17, 1
      %p155 = por %p153, %p154
      %p157 = scmp.ne.s32.totalorder %s140, %s156
      %p158 = scmp.eq.s32.totalorder %s17, 0
      %p159 = por %p157, %p158
      %p160 = scmp.le.s32.totalorder 1, %s11
      %p161 = scmp.lt.s32.totalorder %s11, 3
      %p162 = pnand %p160, %p161
      %p163 = pneg %p162
      // Predicated region
      $region9: #{_lambda_.5} parent=5 // pred_check
        _
      $region10: #{_lambda_.5} parent=5 // pred_check_branch
        %165 = sbr.rel (%p162) target = $region12
      $region11: #{_lambda_.5} parent=5 // pred_region
        %s166 = ssub.s32 %s11, 1
        // Predicated region
        $region13: #{_lambda_.5} parent=11 // pred_check
          %p167 = pneg %p32
        $region14: #{_lambda_.5} parent=11 // pred_check_branch
          %169 = sbr.rel (%p167) target = $region16
        $region15: #{_lambda_.5} parent=11 // pred_region
          _
        $region16: #{_lambda_.5} parent=11 // pred_fallthru
          _
        // Predicated region
        $region17: #{_lambda_.5} parent=11 // pred_check
          %p170 = pneg %p53
        $region18: #{_lambda_.5} parent=11 // pred_check_branch
          %172 = sbr.rel (%p170) target = $region20
        $region19: #{_lambda_.5} parent=11 // pred_region
          _
        $region20: #{_lambda_.5} parent=11 // pred_fallthru
          _
        // Predicated region
        $region21: #{_lambda_.5} parent=11 // pred_check
          %p173 = pneg %p126
        $region22: #{_lambda_.5} parent=11 // pred_check_branch
          %175 = sbr.rel (%p173) target = $region24
        $region23: #{_lambda_.5} parent=11 // pred_region
          _
        $region24: #{_lambda_.5} parent=11 // pred_fallthru
          _
      $region12: #{_lambda_.5} parent=5 // pred_fallthru
        _
      %p176 = scmp.lt.s32.totalorder %s11, 2
      // Predicated region
      $region25: #{_lambda_.5} parent=5 // pred_check
        %p177 = pneg %p176
      $region26: #{_lambda_.5} parent=5 // pred_check_branch
        %179 = sbr.rel (%p177) target = $region28
      $region27: #{_lambda_.5} parent=5 // pred_region
        // Predicated region
        $region29: #{_lambda_.5} parent=27 // pred_check
          %p180 = pneg %p73
        $region30: #{_lambda_.5} parent=27 // pred_check_branch
          %182 = sbr.rel (%p180) target = $region32
        $region31: #{_lambda_.5} parent=27 // pred_region
          %s183 = sand.u32 %s63, 1
          %s184 = sand.u32 %s63, 1
          %s185 = smul.addr %s184, 4
          %s186 = scalar_lea.vmem [#allocation3], %s185
          %s187 = scalar_lea.vmem %s2, %s11
          // Predicated region
          $region33: #{_lambda_.5} parent=31 // pred_check
            _
          $region34: #{_lambda_.5} parent=31 // pred_check_branch
            %189 = sbr.rel (0) target = $region36
          $region35: #{_lambda_.5} parent=31 // pred_region
            // Predicated region
            $region37: #{_lambda_.5} parent=35 // pred_check
              _
            $region38: #{_lambda_.5} parent=35 // pred_check_branch
              %191 = sbr.rel target = $region40
            $region39: #{_lambda_.5} parent=35 // pred_region
              // Predicated region
              $region52: #{_lambda_.5} parent=39 // pred_check
                _
              $region53: #{_lambda_.5} parent=39 // pred_check_branch
                %212 = sbr.rel (0) target = $region55
              $region54: #{_lambda_.5} parent=39 // pred_region
                loop: start=0, step=1, limit=1
                $region56: #{_lambda_.5} parent=54 // loop_pre_header
                  _
                $region57: #{_lambda_.5} parent=54 // loop_header
                  %s215 = sphi 0, %s219
                  %p216 = scmp.ge.s32.totalorder %s215, 1
                  %s220 = sphi %s187, %s187
                  %s221 = sphi %s186, %s186
                $region58: #{_lambda_.5} parent=54 // loop_header_branch
                  %218 = sbr.rel (%p216) target = $region62
                $region59: #{_lambda_.5} parent=54 // loop_body
                  %v222 = vld [vmem:[%s220] sm:$0x1]
                  %223 = vst [vmem:[%s221] sm:$0x1] %v222
                  %v224 = vld [vmem:[%s220 + $0x2] sm:$0x1]
                  %225 = vst [vmem:[%s221 + $0x1] sm:$0x1] %v224
                  %v226 = vld [vmem:[%s220 + $0x4] sm:$0x1]
                  %227 = vst [vmem:[%s221 + $0x2] sm:$0x1] %v226
                  %v228 = vld [vmem:[%s220 + $0x6] sm:$0x1]
                  %229 = vst [vmem:[%s221 + $0x3] sm:$0x1] %v228
                $region60: #{_lambda_.5} parent=54 // loop_footer
                  %s219 = sadd.s32 1, %s215
                $region61: #{_lambda_.5} parent=54 // loop_footer_branch
                  %214 = sbr.rel target = $region57
                $region62: #{_lambda_.5} parent=54 // loop_exit
                  _
              $region55: #{_lambda_.5} parent=39 // pred_fallthru
                _
            $region40: #{_lambda_.5} parent=35 // pred_fallthru
              _
            // Predicated region
            $region41: #{_lambda_.5} parent=35 // pred_check
              _
            $region42: #{_lambda_.5} parent=35 // pred_check_branch
              %193 = sbr.rel (0) target = $region44
            $region43: #{_lambda_.5} parent=35 // pred_region
              loop: start=0, step=1, limit=1
              $region45: #{_lambda_.5} parent=43 // loop_pre_header
                _
              $region46: #{_lambda_.5} parent=43 // loop_header
                %s196 = sphi 0, %s200
                %p197 = scmp.ge.s32.totalorder %s196, 1
                %s201 = sphi %s187, %s187
                %s202 = sphi %s186, %s186
              $region47: #{_lambda_.5} parent=43 // loop_header_branch
                %199 = sbr.rel (%p197) target = $region51
              $region48: #{_lambda_.5} parent=43 // loop_body
                %v203 = vld [vmem:[%s201] sm:$0x1]
                %204 = vst [vmem:[%s202] sm:$0x1] %v203
                %v205 = vld [vmem:[%s201 + $0x2] sm:$0x1]
                %206 = vst [vmem:[%s202 + $0x1] sm:$0x1] %v205
                %v207 = vld [vmem:[%s201 + $0x4] sm:$0x1]
                %208 = vst [vmem:[%s202 + $0x2] sm:$0x1] %v207
                %v209 = vld [vmem:[%s201 + $0x6] sm:$0x1]
                %210 = vst [vmem:[%s202 + $0x3] sm:$0x1] %v209
              $region49: #{_lambda_.5} parent=43 // loop_footer
                %s200 = sadd.s32 1, %s196
              $region50: #{_lambda_.5} parent=43 // loop_footer_branch
                %195 = sbr.rel target = $region46
              $region51: #{_lambda_.5} parent=43 // loop_exit
                _
            $region44: #{_lambda_.5} parent=35 // pred_fallthru
              _
          $region36: #{_lambda_.5} parent=31 // pred_fallthru
            _
          %230 = vnop
        $region32: #{_lambda_.5} parent=27 // pred_fallthru
          _
        // Predicated region
        $region63: #{_lambda_.5} parent=27 // pred_check
          %p231 = pneg %p99
        $region64: #{_lambda_.5} parent=27 // pred_check_branch
          %233 = sbr.rel (%p231) target = $region66
        $region65: #{_lambda_.5} parent=27 // pred_region
          %s234 = sand.u32 %s89, 1
          %s235 = sand.u32 %s89, 1
          %s236 = smul.addr %s235, 64
          %s237 = scalar_lea.vmem [#allocation4], %s236
          %s238 = smul.addr %s11, 8
          %s239 = scalar_lea.vmem %s3, %s238
          // Predicated region
          $region67: #{_lambda_.5} parent=65 // pred_check
            _
          $region68: #{_lambda_.5} parent=65 // pred_check_branch
            %241 = sbr.rel (0) target = $region70
          $region69: #{_lambda_.5} parent=65 // pred_region
            // Predicated region
            $region71: #{_lambda_.5} parent=69 // pred_check
              _
            $region72: #{_lambda_.5} parent=69 // pred_check_branch
              %243 = sbr.rel (0) target = $region74
            $region73: #{_lambda_.5} parent=69 // pred_region
              // Predicated region
              $region86: #{_lambda_.5} parent=73 // pred_check
                _
              $region87: #{_lambda_.5} parent=73 // pred_check_branch
                %272 = sbr.rel (0) target = $region89
              $region88: #{_lambda_.5} parent=73 // pred_region
                loop: start=0, step=1, limit=1
                $region90: #{_lambda_.5} parent=88 // loop_pre_header
                  _
                $region91: #{_lambda_.5} parent=88 // loop_header
                  %s274 = sphi 0, %s278
                  %p275 = scmp.ge.s32.totalorder %s274, 1
                  %s279 = sphi %s239, %s239
                  %s280 = sphi %s237, %s237
                $region92: #{_lambda_.5} parent=88 // loop_header_branch
                  %277 = sbr.rel (%p275) target = $region96
                $region93: #{_lambda_.5} parent=88 // loop_body
                  %v281 = vld [vmem:[%s279] sm:$0xff]
                  %282 = vst [vmem:[%s280] sm:$0xff] %v281
                  %v283 = vld [vmem:[%s279 + $0x10] sm:$0xff]
                  %284 = vst [vmem:[%s280 + $0x8] sm:$0xff] %v283
                  %v285 = vld [vmem:[%s279 + $0x20] sm:$0xff]
                  %286 = vst [vmem:[%s280 + $0x10] sm:$0xff] %v285
                  %v287 = vld [vmem:[%s279 + $0x30] sm:$0xff]
                  %288 = vst [vmem:[%s280 + $0x18] sm:$0xff] %v287
                  %v289 = vld [vmem:[%s279 + $0x40] sm:$0xff]
                  %290 = vst [vmem:[%s280 + $0x20] sm:$0xff] %v289
                  %v291 = vld [vmem:[%s279 + $0x50] sm:$0xff]
                  %292 = vst [vmem:[%s280 + $0x28] sm:$0xff] %v291
                  %v293 = vld [vmem:[%s279 + $0x60] sm:$0xff]
                  %294 = vst [vmem:[%s280 + $0x30] sm:$0xff] %v293
                  %v295 = vld [vmem:[%s279 + $0x70] sm:$0xff]
                  %296 = vst [vmem:[%s280 + $0x38] sm:$0xff] %v295
                $region94: #{_lambda_.5} parent=88 // loop_footer
                  %s278 = sadd.s32 1, %s274
                $region95: #{_lambda_.5} parent=88 // loop_footer_branch
                  %273 = sbr.rel target = $region91
                $region96: #{_lambda_.5} parent=88 // loop_exit
                  _
              $region89: #{_lambda_.5} parent=73 // pred_fallthru
                _
              // Predicated region
              $region97: #{_lambda_.5} parent=73 // pred_check
                _
              $region98: #{_lambda_.5} parent=73 // pred_check_branch
                %298 = sbr.rel target = $region100
              $region99: #{_lambda_.5} parent=73 // pred_region
                _
              $region100: #{_lambda_.5} parent=73 // pred_fallthru
                _
            $region74: #{_lambda_.5} parent=69 // pred_fallthru
              _
            // Predicated region
            $region75: #{_lambda_.5} parent=69 // pred_check
              _
            $region76: #{_lambda_.5} parent=69 // pred_check_branch
              %245 = sbr.rel target = $region78
            $region77: #{_lambda_.5} parent=69 // pred_region
              loop: start=0, step=1, limit=1
              $region79: #{_lambda_.5} parent=77 // loop_pre_header
                _
              $region80: #{_lambda_.5} parent=77 // loop_header
                %s248 = sphi 0, %s252
                %p249 = scmp.ge.s32.totalorder %s248, 1
                %s253 = sphi %s239, %s239
                %s254 = sphi %s237, %s237
              $region81: #{_lambda_.5} parent=77 // loop_header_branch
                %251 = sbr.rel (%p249) target = $region85
              $region82: #{_lambda_.5} parent=77 // loop_body
                %v255 = vld [vmem:[%s253] sm:$0xff]
                %256 = vst [vmem:[%s254] sm:$0xff] %v255
                %v257 = vld [vmem:[%s253 + $0x10] sm:$0xff]
                %258 = vst [vmem:[%s254 + $0x8] sm:$0xff] %v257
                %v259 = vld [vmem:[%s253 + $0x20] sm:$0xff]
                %260 = vst [vmem:[%s254 + $0x10] sm:$0xff] %v259
                %v261 = vld [vmem:[%s253 + $0x30] sm:$0xff]
                %262 = vst [vmem:[%s254 + $0x18] sm:$0xff] %v261
                %v263 = vld [vmem:[%s253 + $0x40] sm:$0xff]
                %264 = vst [vmem:[%s254 + $0x20] sm:$0xff] %v263
                %v265 = vld [vmem:[%s253 + $0x50] sm:$0xff]
                %266 = vst [vmem:[%s254 + $0x28] sm:$0xff] %v265
                %v267 = vld [vmem:[%s253 + $0x60] sm:$0xff]
                %268 = vst [vmem:[%s254 + $0x30] sm:$0xff] %v267
                %v269 = vld [vmem:[%s253 + $0x70] sm:$0xff]
                %270 = vst [vmem:[%s254 + $0x38] sm:$0xff] %v269
              $region83: #{_lambda_.5} parent=77 // loop_footer
                %s252 = sadd.s32 1, %s248
              $region84: #{_lambda_.5} parent=77 // loop_footer_branch
                %247 = sbr.rel target = $region80
              $region85: #{_lambda_.5} parent=77 // loop_exit
                _
            $region78: #{_lambda_.5} parent=69 // pred_fallthru
              _
          $region70: #{_lambda_.5} parent=65 // pred_fallthru
            _
          %299 = vnop
        $region66: #{_lambda_.5} parent=27 // pred_fallthru
          _
      $region28: #{_lambda_.5} parent=5 // pred_fallthru
        _
      %p300 = scmp.le.s32.totalorder 1, %s11
      %p301 = scmp.lt.s32.totalorder %s11, 3
      %p302 = pnand %p300, %p301
      %p303 = pneg %p302
      // Predicated region
      $region101: #{_lambda_.5} parent=5 // pred_check
        _
      $region102: #{_lambda_.5} parent=5 // pred_check_branch
        %305 = sbr.rel (%p302) target = $region104
      $region103: #{_lambda_.5} parent=5 // pred_region
        %s306 = ssub.s32 %s11, 1
        %s307 = sand.u32 %s66, 1
        %s308 = sand.u32 %s66, 1
        %s309 = smul.addr %s308, 4
        %s310 = scalar_lea.vmem [#allocation3], %s309
        // Predicated region
        $region105: #{_lambda_.5} parent=103 // pred_check
          %p311 = pneg %p79
        $region106: #{_lambda_.5} parent=103 // pred_check_branch
          %313 = sbr.rel (%p311) target = $region108
        $region107: #{_lambda_.5} parent=103 // pred_region
          _
        $region108: #{_lambda_.5} parent=103 // pred_fallthru
          _
        %s314 = sand.u32 %s92, 1
        %s315 = sand.u32 %s92, 1
        %s316 = smul.addr %s315, 64
        %s317 = scalar_lea.vmem [#allocation4], %s316
        // Predicated region
        $region109: #{_lambda_.5} parent=103 // pred_check
          %p318 = pneg %p105
        $region110: #{_lambda_.5} parent=103 // pred_check_branch
          %320 = sbr.rel (%p318) target = $region112
        $region111: #{_lambda_.5} parent=103 // pred_region
          _
        $region112: #{_lambda_.5} parent=103 // pred_fallthru
          _
        %p321 = pneg %p32
        %p322 = pneg %p29
        %p323 = pneg %p53
        %p324 = pneg %p50
        %s325 = sand.u32 %s66, 1
        %s326 = sand.u32 %s66, 1
        %s327 = smul.addr %s326, 4
        %s328 = scalar_lea.vmem [#allocation3], %s327
        %p329 = pneg %p79
        %p330 = pneg %p76
        %s331 = sand.u32 %s92, 1
        %s332 = sand.u32 %s92, 1
        %s333 = smul.addr %s332, 64
        %s334 = scalar_lea.vmem [#allocation4], %s333
        %p335 = pneg %p105
        %p336 = pneg %p102
        %p337 = pneg %p126
        %p338 = pneg %p123
        %p339 = pneg %p152
        %p340 = pneg %p149
        %s341 = smul.u32 16, %s16
        %p342 = scmp.lt.s32.totalorder %s341, 31
        %s343 = scalar_select %p342, %s341, 31
        %s344 = smul.addr %s343, 4
        %s345 = scalar_lea.vmem %s5, %s344
        %s346 = smul.u32 16, %s16
        %p347 = scmp.lt.s32.totalorder %s346, 31
        %s348 = scalar_select %p347, %s346, 31
        %s349 = smul.addr %s348, 4
        %s350 = scalar_lea.vmem %s5, %s349
        %s351 = smul.u32 16, %s16
        %v353 = vld [vmem:[%s317] sm:$0xff]
        %v354 = vld [vmem:[%s317 + $0x8] sm:$0xff]
        %v355 = vld [vmem:[%s317 + $0x10] sm:$0xff]
        %v356 = vld [vmem:[%s317 + $0x18] sm:$0xff]
        %v357 = vld [vmem:[%s317 + $0x20] sm:$0xff]
        %v358 = vld [vmem:[%s317 + $0x28] sm:$0xff]
        %v359 = vld [vmem:[%s317 + $0x30] sm:$0xff]
        %v360 = vld [vmem:[%s317 + $0x38] sm:$0xff]
        %v361 = vunpack.c.0.s8 %v353
        %v362 = vunpack.c.1.s8 %v353
        %v363 = vunpack.c.2.s8 %v353
        %v364 = vunpack.c.3.s8 %v353
        %v365 = vunpack.c.0.s8 %v354
        %v366 = vunpack.c.1.s8 %v354
        %v367 = vunpack.c.2.s8 %v354
        %v368 = vunpack.c.3.s8 %v354
        %v369 = vunpack.c.0.s8 %v355
        %v370 = vunpack.c.1.s8 %v355
        %v371 = vunpack.c.2.s8 %v355
        %v372 = vunpack.c.3.s8 %v355
        %v373 = vunpack.c.0.s8 %v356
        %v374 = vunpack.c.1.s8 %v356
        %v375 = vunpack.c.2.s8 %v356
        %v376 = vunpack.c.3.s8 %v356
        %v377 = vunpack.c.0.s8 %v357
        %v378 = vunpack.c.1.s8 %v357
        %v379 = vunpack.c.2.s8 %v357
        %v380 = vunpack.c.3.s8 %v357
        %v381 = vunpack.c.0.s8 %v358
        %v382 = vunpack.c.1.s8 %v358
        %v383 = vunpack.c.2.s8 %v358
        %v384 = vunpack.c.3.s8 %v358
        %v385 = vunpack.c.0.s8 %v359
        %v386 = vunpack.c.1.s8 %v359
        %v387 = vunpack.c.2.s8 %v359
        %v388 = vunpack.c.3.s8 %v359
        %v389 = vunpack.c.0.s8 %v360
        %v390 = vunpack.c.1.s8 %v360
        %v391 = vunpack.c.2.s8 %v360
        %v392 = vunpack.c.3.s8 %v360
        %v393 = vcvt.s32.f32 %v361
        %v394 = vcvt.s32.f32 %v362
        %v395 = vcvt.s32.f32 %v363
        %v396 = vcvt.s32.f32 %v364
        %v397 = vcvt.s32.f32 %v365
        %v398 = vcvt.s32.f32 %v366
        %v399 = vcvt.s32.f32 %v367
        %v400 = vcvt.s32.f32 %v368
        %v401 = vcvt.s32.f32 %v369
        %v402 = vcvt.s32.f32 %v370
        %v403 = vcvt.s32.f32 %v371
        %v404 = vcvt.s32.f32 %v372
        %v405 = vcvt.s32.f32 %v373
        %v406 = vcvt.s32.f32 %v374
        %v407 = vcvt.s32.f32 %v375
        %v408 = vcvt.s32.f32 %v376
        %v409 = vcvt.s32.f32 %v377
        %v410 = vcvt.s32.f32 %v378
        %v411 = vcvt.s32.f32 %v379
        %v412 = vcvt.s32.f32 %v380
        %v413 = vcvt.s32.f32 %v381
        %v414 = vcvt.s32.f32 %v382
        %v415 = vcvt.s32.f32 %v383
        %v416 = vcvt.s32.f32 %v384
        %v417 = vcvt.s32.f32 %v385
        %v418 = vcvt.s32.f32 %v386
        %v419 = vcvt.s32.f32 %v387
        %v420 = vcvt.s32.f32 %v388
        %v421 = vcvt.s32.f32 %v389
        %v422 = vcvt.s32.f32 %v390
        %v423 = vcvt.s32.f32 %v391
        %v424 = vcvt.s32.f32 %v392
        %v425 = vsub.f32 %v393, 1.0
        %v426 = vsub.f32 %v394, 1.0
        %v427 = vsub.f32 %v395, 1.0
        %v428 = vsub.f32 %v396, 1.0
        %v429 = vsub.f32 %v397, 1.0
        %v430 = vsub.f32 %v398, 1.0
        %v431 = vsub.f32 %v399, 1.0
        %v432 = vsub.f32 %v400, 1.0
        %v433 = vsub.f32 %v401, 1.0
        %v434 = vsub.f32 %v402, 1.0
        %v435 = vsub.f32 %v403, 1.0
        %v436 = vsub.f32 %v404, 1.0
        %v437 = vsub.f32 %v405, 1.0
        %v438 = vsub.f32 %v406, 1.0
        %v439 = vsub.f32 %v407, 1.0
        %v440 = vsub.f32 %v408, 1.0
        %v441 = vsub.f32 %v409, 1.0
        %v442 = vsub.f32 %v410, 1.0
        %v443 = vsub.f32 %v411, 1.0
        %v444 = vsub.f32 %v412, 1.0
        %v445 = vsub.f32 %v413, 1.0
        %v446 = vsub.f32 %v414, 1.0
        %v447 = vsub.f32 %v415, 1.0
        %v448 = vsub.f32 %v416, 1.0
        %v449 = vsub.f32 %v417, 1.0
        %v450 = vsub.f32 %v418, 1.0
        %v451 = vsub.f32 %v419, 1.0
        %v452 = vsub.f32 %v420, 1.0
        %v453 = vsub.f32 %v421, 1.0
        %v454 = vsub.f32 %v422, 1.0
        %v455 = vsub.f32 %v423, 1.0
        %v456 = vsub.f32 %v424, 1.0
        %v457 = vmul.f32 %v425, 1e+09
        %v458 = vmul.f32 %v426, 1e+09
        %v459 = vmul.f32 %v427, 1e+09
        %v460 = vmul.f32 %v428, 1e+09
        %v461 = vmul.f32 %v429, 1e+09
        %v462 = vmul.f32 %v430, 1e+09
        %v463 = vmul.f32 %v431, 1e+09
        %v464 = vmul.f32 %v432, 1e+09
        %v465 = vmul.f32 %v433, 1e+09
        %v466 = vmul.f32 %v434, 1e+09
        %v467 = vmul.f32 %v435, 1e+09
        %v468 = vmul.f32 %v436, 1e+09
        %v469 = vmul.f32 %v437, 1e+09
        %v470 = vmul.f32 %v438, 1e+09
        %v471 = vmul.f32 %v439, 1e+09
        %v472 = vmul.f32 %v440, 1e+09
        %v473 = vmul.f32 %v441, 1e+09
        %v474 = vmul.f32 %v442, 1e+09
        %v475 = vmul.f32 %v443, 1e+09
        %v476 = vmul.f32 %v444, 1e+09
        %v477 = vmul.f32 %v445, 1e+09
        %v478 = vmul.f32 %v446, 1e+09
        %v479 = vmul.f32 %v447, 1e+09
        %v480 = vmul.f32 %v448, 1e+09
        %v481 = vmul.f32 %v449, 1e+09
        %v482 = vmul.f32 %v450, 1e+09
        %v483 = vmul.f32 %v451, 1e+09
        %v484 = vmul.f32 %v452, 1e+09
        %v485 = vmul.f32 %v453, 1e+09
        %v486 = vmul.f32 %v454, 1e+09
        %v487 = vmul.f32 %v455, 1e+09
        %v488 = vmul.f32 %v456, 1e+09
        %489 = vst [vmem:[#allocation2] sm:$0xff] 0.0
        %490 = vst [vmem:[#allocation2 + $0x8] sm:$0xff] 0.0
        %491 = vst [vmem:[#allocation2 + $0x10] sm:$0xff] 0.0
        %492 = vst [vmem:[#allocation2 + $0x18] sm:$0xff] 0.0
        %493 = vst [vmem:[#allocation2 + $0x20] sm:$0xff] 0.0
        %494 = vst [vmem:[#allocation2 + $0x28] sm:$0xff] 0.0
        %495 = vst [vmem:[#allocation2 + $0x30] sm:$0xff] 0.0
        %496 = vst [vmem:[#allocation2 + $0x38] sm:$0xff] 0.0
        %497 = vst [vmem:[#allocation2 + $0x40] sm:$0xff] 0.0
        %498 = vst [vmem:[#allocation2 + $0x48] sm:$0xff] 0.0
        %499 = vst [vmem:[#allocation2 + $0x50] sm:$0xff] 0.0
        %500 = vst [vmem:[#allocation2 + $0x58] sm:$0xff] 0.0
        %501 = vst [vmem:[#allocation2 + $0x60] sm:$0xff] 0.0
        %502 = vst [vmem:[#allocation2 + $0x68] sm:$0xff] 0.0
        %503 = vst [vmem:[#allocation2 + $0x70] sm:$0xff] 0.0
        %504 = vst [vmem:[#allocation2 + $0x78] sm:$0xff] 0.0
        loop: start=0, step=1, limit=4
        $region113: #{_lambda_.5} parent=103 // loop_pre_header
          _
        $region114: #{_lambda_.5} parent=103 // loop_header
          %s506 = sphi 0, %s510
          %p507 = scmp.ge.s32.totalorder %s506, 4
        $region115: #{_lambda_.5} parent=103 // loop_header_branch
          %509 = sbr.rel (%p507) target = $region119
        $region116: #{_lambda_.5} parent=103 // loop_body
          %s511 = smul.u32 %s506, 256
          %s512 = scalar_lea.vmem %s1, %s511
          %v513 = vld [vmem:[%s512] sm:$0xff]
          %v514 = vld [vmem:[%s512 + $0x8] sm:$0xff]
          %v515 = vld [vmem:[%s512 + $0x10] sm:$0xff]
          %v516 = vld [vmem:[%s512 + $0x18] sm:$0xff]
          %v517 = vld [vmem:[%s512 + $0x20] sm:$0xff]
          %v518 = vld [vmem:[%s512 + $0x28] sm:$0xff]
          %v519 = vld [vmem:[%s512 + $0x30] sm:$0xff]
          %v520 = vld [vmem:[%s512 + $0x38] sm:$0xff]
          %v521 = vld [vmem:[%s512 + $0x40] sm:$0xff]
          %v522 = vld [vmem:[%s512 + $0x48] sm:$0xff]
          %v523 = vld [vmem:[%s512 + $0x50] sm:$0xff]
          %v524 = vld [vmem:[%s512 + $0x58] sm:$0xff]
          %v525 = vld [vmem:[%s512 + $0x60] sm:$0xff]
          %v526 = vld [vmem:[%s512 + $0x68] sm:$0xff]
          %v527 = vld [vmem:[%s512 + $0x70] sm:$0xff]
          %v528 = vld [vmem:[%s512 + $0x78] sm:$0xff]
          %v529 = vld [vmem:[%s512 + $0x80] sm:$0xff]
          %v530 = vld [vmem:[%s512 + $0x88] sm:$0xff]
          %v531 = vld [vmem:[%s512 + $0x90] sm:$0xff]
          %v532 = vld [vmem:[%s512 + $0x98] sm:$0xff]
          %v533 = vld [vmem:[%s512 + $0xa0] sm:$0xff]
          %v534 = vld [vmem:[%s512 + $0xa8] sm:$0xff]
          %v535 = vld [vmem:[%s512 + $0xb0] sm:$0xff]
          %v536 = vld [vmem:[%s512 + $0xb8] sm:$0xff]
          %v537 = vld [vmem:[%s512 + $0xc0] sm:$0xff]
          %v538 = vld [vmem:[%s512 + $0xc8] sm:$0xff]
          %v539 = vld [vmem:[%s512 + $0xd0] sm:$0xff]
          %v540 = vld [vmem:[%s512 + $0xd8] sm:$0xff]
          %v541 = vld [vmem:[%s512 + $0xe0] sm:$0xff]
          %v542 = vld [vmem:[%s512 + $0xe8] sm:$0xff]
          %v543 = vld [vmem:[%s512 + $0xf0] sm:$0xff]
          %v544 = vld [vmem:[%s512 + $0xf8] sm:$0xff]
          %s545 = scalar_lea.vmem %s310, %s506 [#allocation3]
          %v546 = vld [vmem:[%s545] sm:$0x1]
          %s547 = smul.u32 %s506, 4
          %s548 = smul.addr %s547, 4
          %s549 = scalar_lea.vmem %s0, %s548
          %v550 = vld [vmem:[%s549] sm:$0xff]
          %v551 = vld [vmem:[%s549 + $0x8] sm:$0xff]
          %553 = vset.pattern.permute.xlu0 0
          %554 = vperm.xlu0 %553, %v513
          %v555 = vpop.permute.xlu0 %554
          %558 = vset.pattern.permute.xlu0 0
          %559 = vperm.xlu0 %558, %v514
          %v560 = vpop.permute.xlu0 %559
          %563 = vset.pattern.permute.xlu0 0
          %564 = vperm.xlu0 %563, %v515
          %v565 = vpop.permute.xlu0 %564
          %568 = vset.pattern.permute.xlu0 0
          %569 = vperm.xlu0 %568, %v516
          %v570 = vpop.permute.xlu0 %569
          %573 = vset.pattern.permute.xlu0 0
          %574 = vperm.xlu0 %573, %v517
          %v575 = vpop.permute.xlu0 %574
          %578 = vset.pattern.permute.xlu0 0
          %579 = vperm.xlu0 %578, %v518
          %v580 = vpop.permute.xlu0 %579
          %583 = vset.pattern.permute.xlu0 0
          %584 = vperm.xlu0 %583, %v519
          %v585 = vpop.permute.xlu0 %584
          %588 = vset.pattern.permute.xlu0 0
          %589 = vperm.xlu0 %588, %v520
          %v590 = vpop.permute.xlu0 %589
          %593 = vset.pattern.permute.xlu0 0
          %594 = vperm.xlu0 %593, %v521
          %v595 = vpop.permute.xlu0 %594
          %598 = vset.pattern.permute.xlu0 0
          %599 = vperm.xlu0 %598, %v522
          %v600 = vpop.permute.xlu0 %599
          %603 = vset.pattern.permute.xlu0 0
          %604 = vperm.xlu0 %603, %v523
          %v605 = vpop.permute.xlu0 %604
          %608 = vset.pattern.permute.xlu0 0
          %609 = vperm.xlu0 %608, %v524
          %v610 = vpop.permute.xlu0 %609
          %613 = vset.pattern.permute.xlu0 0
          %614 = vperm.xlu0 %613, %v525
          %v615 = vpop.permute.xlu0 %614
          %618 = vset.pattern.permute.xlu0 0
          %619 = vperm.xlu0 %618, %v526
          %v620 = vpop.permute.xlu0 %619
          %623 = vset.pattern.permute.xlu0 0
          %624 = vperm.xlu0 %623, %v527
          %v625 = vpop.permute.xlu0 %624
          %628 = vset.pattern.permute.xlu0 0
          %629 = vperm.xlu0 %628, %v528
          %v630 = vpop.permute.xlu0 %629
          %633 = vset.pattern.permute.xlu0 0
          %634 = vperm.xlu0 %633, %v529
          %v635 = vpop.permute.xlu0 %634
          %638 = vset.pattern.permute.xlu0 0
          %639 = vperm.xlu0 %638, %v530
          %v640 = vpop.permute.xlu0 %639
          %643 = vset.pattern.permute.xlu0 0
          %644 = vperm.xlu0 %643, %v531
          %v645 = vpop.permute.xlu0 %644
          %648 = vset.pattern.permute.xlu0 0
          %649 = vperm.xlu0 %648, %v532
          %v650 = vpop.permute.xlu0 %649
          %653 = vset.pattern.permute.xlu0 0
          %654 = vperm.xlu0 %653, %v533
          %v655 = vpop.permute.xlu0 %654
          %658 = vset.pattern.permute.xlu0 0
          %659 = vperm.xlu0 %658, %v534
          %v660 = vpop.permute.xlu0 %659
          %663 = vset.pattern.permute.xlu0 0
          %664 = vperm.xlu0 %663, %v535
          %v665 = vpop.permute.xlu0 %664
          %668 = vset.pattern.permute.xlu0 0
          %669 = vperm.xlu0 %668, %v536
          %v670 = vpop.permute.xlu0 %669
          %673 = vset.pattern.permute.xlu0 0
          %674 = vperm.xlu0 %673, %v537
          %v675 = vpop.permute.xlu0 %674
          %678 = vset.pattern.permute.xlu0 0
          %679 = vperm.xlu0 %678, %v538
          %v680 = vpop.permute.xlu0 %679
          %683 = vset.pattern.permute.xlu0 0
          %684 = vperm.xlu0 %683, %v539
          %v685 = vpop.permute.xlu0 %684
          %688 = vset.pattern.permute.xlu0 0
          %689 = vperm.xlu0 %688, %v540
          %v690 = vpop.permute.xlu0 %689
          %693 = vset.pattern.permute.xlu0 0
          %694 = vperm.xlu0 %693, %v541
          %v695 = vpop.permute.xlu0 %694
          %698 = vset.pattern.permute.xlu0 0
          %699 = vperm.xlu0 %698, %v542
          %v700 = vpop.permute.xlu0 %699
          %703 = vset.pattern.permute.xlu0 0
          %704 = vperm.xlu0 %703, %v543
          %v705 = vpop.permute.xlu0 %704
          %708 = vset.pattern.permute.xlu0 0
          %709 = vperm.xlu0 %708, %v544
          %v710 = vpop.permute.xlu0 %709
          %v713 = vlaneseq
          %v714 = vshrl.u32 %v713, 7
          %v715 = vsub.s32 0, %v714
          %v716 = vrot.slane %v546, %v715
          %v718 = vadd.f32 %v555, %v716
          %v719 = vadd.f32 %v560, %v716
          %v720 = vadd.f32 %v565, %v716
          %v721 = vadd.f32 %v570, %v716
          %v722 = vadd.f32 %v575, %v716
          %v723 = vadd.f32 %v580, %v716
          %v724 = vadd.f32 %v585, %v716
          %v725 = vadd.f32 %v590, %v716
          %v726 = vadd.f32 %v595, %v716
          %v727 = vadd.f32 %v600, %v716
          %v728 = vadd.f32 %v605, %v716
          %v729 = vadd.f32 %v610, %v716
          %v730 = vadd.f32 %v615, %v716
          %v731 = vadd.f32 %v620, %v716
          %v732 = vadd.f32 %v625, %v716
          %v733 = vadd.f32 %v630, %v716
          %v734 = vadd.f32 %v635, %v716
          %v735 = vadd.f32 %v640, %v716
          %v736 = vadd.f32 %v645, %v716
          %v737 = vadd.f32 %v650, %v716
          %v738 = vadd.f32 %v655, %v716
          %v739 = vadd.f32 %v660, %v716
          %v740 = vadd.f32 %v665, %v716
          %v741 = vadd.f32 %v670, %v716
          %v742 = vadd.f32 %v675, %v716
          %v743 = vadd.f32 %v680, %v716
          %v744 = vadd.f32 %v685, %v716
          %v745 = vadd.f32 %v690, %v716
          %v746 = vadd.f32 %v695, %v716
          %v747 = vadd.f32 %v700, %v716
          %v748 = vadd.f32 %v705, %v716
          %v749 = vadd.f32 %v710, %v716
          %vm750 = vcmp.gt.f32.partialorder %v718, 0.0
          %vm751 = vcmp.gt.f32.partialorder %v719, 0.0
          %vm752 = vcmp.gt.f32.partialorder %v720, 0.0
          %vm753 = vcmp.gt.f32.partialorder %v721, 0.0
          %vm754 = vcmp.gt.f32.partialorder %v722, 0.0
          %vm755 = vcmp.gt.f32.partialorder %v723, 0.0
          %vm756 = vcmp.gt.f32.partialorder %v724, 0.0
          %vm757 = vcmp.gt.f32.partialorder %v725, 0.0
          %vm758 = vcmp.gt.f32.partialorder %v726, 0.0
          %vm759 = vcmp.gt.f32.partialorder %v727, 0.0
          %vm760 = vcmp.gt.f32.partialorder %v728, 0.0
          %vm761 = vcmp.gt.f32.partialorder %v729, 0.0
          %vm762 = vcmp.gt.f32.partialorder %v730, 0.0
          %vm763 = vcmp.gt.f32.partialorder %v731, 0.0
          %vm764 = vcmp.gt.f32.partialorder %v732, 0.0
          %vm765 = vcmp.gt.f32.partialorder %v733, 0.0
          %vm766 = vcmp.gt.f32.partialorder %v734, 0.0
          %vm767 = vcmp.gt.f32.partialorder %v735, 0.0
          %vm768 = vcmp.gt.f32.partialorder %v736, 0.0
          %vm769 = vcmp.gt.f32.partialorder %v737, 0.0
          %vm770 = vcmp.gt.f32.partialorder %v738, 0.0
          %vm771 = vcmp.gt.f32.partialorder %v739, 0.0
          %vm772 = vcmp.gt.f32.partialorder %v740, 0.0
          %vm773 = vcmp.gt.f32.partialorder %v741, 0.0
          %vm774 = vcmp.gt.f32.partialorder %v742, 0.0
          %vm775 = vcmp.gt.f32.partialorder %v743, 0.0
          %vm776 = vcmp.gt.f32.partialorder %v744, 0.0
          %vm777 = vcmp.gt.f32.partialorder %v745, 0.0
          %vm778 = vcmp.gt.f32.partialorder %v746, 0.0
          %vm779 = vcmp.gt.f32.partialorder %v747, 0.0
          %vm780 = vcmp.gt.f32.partialorder %v748, 0.0
          %vm781 = vcmp.gt.f32.partialorder %v749, 0.0
          %v782 = vmul.f32 %v718, 0.2
          %v783 = vmul.f32 %v719, 0.2
          %v784 = vmul.f32 %v720, 0.2
          %v785 = vmul.f32 %v721, 0.2
          %v786 = vmul.f32 %v722, 0.2
          %v787 = vmul.f32 %v723, 0.2
          %v788 = vmul.f32 %v724, 0.2
          %v789 = vmul.f32 %v725, 0.2
          %v790 = vmul.f32 %v726, 0.2
          %v791 = vmul.f32 %v727, 0.2
          %v792 = vmul.f32 %v728, 0.2
          %v793 = vmul.f32 %v729, 0.2
          %v794 = vmul.f32 %v730, 0.2
          %v795 = vmul.f32 %v731, 0.2
          %v796 = vmul.f32 %v732, 0.2
          %v797 = vmul.f32 %v733, 0.2
          %v798 = vmul.f32 %v734, 0.2
          %v799 = vmul.f32 %v735, 0.2
          %v800 = vmul.f32 %v736, 0.2
          %v801 = vmul.f32 %v737, 0.2
          %v802 = vmul.f32 %v738, 0.2
          %v803 = vmul.f32 %v739, 0.2
          %v804 = vmul.f32 %v740, 0.2
          %v805 = vmul.f32 %v741, 0.2
          %v806 = vmul.f32 %v742, 0.2
          %v807 = vmul.f32 %v743, 0.2
          %v808 = vmul.f32 %v744, 0.2
          %v809 = vmul.f32 %v745, 0.2
          %v810 = vmul.f32 %v746, 0.2
          %v811 = vmul.f32 %v747, 0.2
          %v812 = vmul.f32 %v748, 0.2
          %v813 = vmul.f32 %v749, 0.2
          %v814 = vsel %vm750, %v718, %v782
          %v815 = vsel %vm751, %v719, %v783
          %v816 = vsel %vm752, %v720, %v784
          %v817 = vsel %vm753, %v721, %v785
          %v818 = vsel %vm754, %v722, %v786
          %v819 = vsel %vm755, %v723, %v787
          %v820 = vsel %vm756, %v724, %v788
          %v821 = vsel %vm757, %v725, %v789
          %v822 = vsel %vm758, %v726, %v790
          %v823 = vsel %vm759, %v727, %v791
          %v824 = vsel %vm760, %v728, %v792
          %v825 = vsel %vm761, %v729, %v793
          %v826 = vsel %vm762, %v730, %v794
          %v827 = vsel %vm763, %v731, %v795
          %v828 = vsel %vm764, %v732, %v796
          %v829 = vsel %vm765, %v733, %v797
          %v830 = vsel %vm766, %v734, %v798
          %v831 = vsel %vm767, %v735, %v799
          %v832 = vsel %vm768, %v736, %v800
          %v833 = vsel %vm769, %v737, %v801
          %v834 = vsel %vm770, %v738, %v802
          %v835 = vsel %vm771, %v739, %v803
          %v836 = vsel %vm772, %v740, %v804
          %v837 = vsel %vm773, %v741, %v805
          %v838 = vsel %vm774, %v742, %v806
          %v839 = vsel %vm775, %v743, %v807
          %v840 = vsel %vm776, %v744, %v808
          %v841 = vsel %vm777, %v745, %v809
          %v842 = vsel %vm778, %v746, %v810
          %v843 = vsel %vm779, %v747, %v811
          %v844 = vsel %vm780, %v748, %v812
          %v845 = vsel %vm781, %v749, %v813
          %v846 = vadd.f32 %v814, %v457
          %v847 = vadd.f32 %v815, %v458
          %v848 = vadd.f32 %v816, %v459
          %v849 = vadd.f32 %v817, %v460
          %v850 = vadd.f32 %v818, %v461
          %v851 = vadd.f32 %v819, %v462
          %v852 = vadd.f32 %v820, %v463
          %v853 = vadd.f32 %v821, %v464
          %v854 = vadd.f32 %v822, %v465
          %v855 = vadd.f32 %v823, %v466
          %v856 = vadd.f32 %v824, %v467
          %v857 = vadd.f32 %v825, %v468
          %v858 = vadd.f32 %v826, %v469
          %v859 = vadd.f32 %v827, %v470
          %v860 = vadd.f32 %v828, %v471
          %v861 = vadd.f32 %v829, %v472
          %v862 = vadd.f32 %v830, %v473
          %v863 = vadd.f32 %v831, %v474
          %v864 = vadd.f32 %v832, %v475
          %v865 = vadd.f32 %v833, %v476
          %v866 = vadd.f32 %v834, %v477
          %v867 = vadd.f32 %v835, %v478
          %v868 = vadd.f32 %v836, %v479
          %v869 = vadd.f32 %v837, %v480
          %v870 = vadd.f32 %v838, %v481
          %v871 = vadd.f32 %v839, %v482
          %v872 = vadd.f32 %v840, %v483
          %v873 = vadd.f32 %v841, %v484
          %v874 = vadd.f32 %v842, %v485
          %v875 = vadd.f32 %v843, %v486
          %v876 = vadd.f32 %v844, %v487
          %v877 = vadd.f32 %v845, %v488
          %v878 = vmax.f32 %v846, %v850
          %v879 = vmax.f32 %v847, %v851
          %v880 = vmax.f32 %v848, %v852
          %v881 = vmax.f32 %v849, %v853
          %v882 = vmax.f32 %v878, %v854
          %v883 = vmax.f32 %v879, %v855
          %v884 = vmax.f32 %v880, %v856
          %v885 = vmax.f32 %v881, %v857
          %v886 = vmax.f32 %v882, %v858
          %v887 = vmax.f32 %v883, %v859
          %v888 = vmax.f32 %v884, %v860
          %v889 = vmax.f32 %v885, %v861
          %v890 = vmax.f32 %v886, %v862
          %v891 = vmax.f32 %v887, %v863
          %v892 = vmax.f32 %v888, %v864
          %v893 = vmax.f32 %v889, %v865
          %v894 = vmax.f32 %v890, %v866
          %v895 = vmax.f32 %v891, %v867
          %v896 = vmax.f32 %v892, %v868
          %v897 = vmax.f32 %v893, %v869
          %v898 = vmax.f32 %v894, %v870
          %v899 = vmax.f32 %v895, %v871
          %v900 = vmax.f32 %v896, %v872
          %v901 = vmax.f32 %v897, %v873
          %v902 = vmax.f32 %v898, %v874
          %v903 = vmax.f32 %v899, %v875
          %v904 = vmax.f32 %v900, %v876
          %v905 = vmax.f32 %v901, %v877
          %v906 = vmax.f32 %v902, %v903
          %v907 = vmax.f32 %v904, %v905
          %v908 = vmax.f32 %v906, %v907
          %v909 = vrot.slane %v908, 4
          %v910 = vmax.f32 %v908, %v909
          %v911 = vrot.slane %v910, 2
          %v912 = vmax.f32 %v910, %v911
          %v913 = vrot.slane %v912, 1
          %v914 = vmax.f32 %v912, %v913
          %v915 = vsub.f32 %v846, %v914
          %v916 = vsub.f32 %v847, %v914
          %v917 = vsub.f32 %v848, %v914
          %v918 = vsub.f32 %v849, %v914
          %v919 = vsub.f32 %v850, %v914
          %v920 = vsub.f32 %v851, %v914
          %v921 = vsub.f32 %v852, %v914
          %v922 = vsub.f32 %v853, %v914
          %v923 = vsub.f32 %v854, %v914
          %v924 = vsub.f32 %v855, %v914
          %v925 = vsub.f32 %v856, %v914
          %v926 = vsub.f32 %v857, %v914
          %v927 = vsub.f32 %v858, %v914
          %v928 = vsub.f32 %v859, %v914
          %v929 = vsub.f32 %v860, %v914
          %v930 = vsub.f32 %v861, %v914
          %v931 = vsub.f32 %v862, %v914
          %v932 = vsub.f32 %v863, %v914
          %v933 = vsub.f32 %v864, %v914
          %v934 = vsub.f32 %v865, %v914
          %v935 = vsub.f32 %v866, %v914
          %v936 = vsub.f32 %v867, %v914
          %v937 = vsub.f32 %v868, %v914
          %v938 = vsub.f32 %v869, %v914
          %v939 = vsub.f32 %v870, %v914
          %v940 = vsub.f32 %v871, %v914
          %v941 = vsub.f32 %v872, %v914
          %v942 = vsub.f32 %v873, %v914
          %v943 = vsub.f32 %v874, %v914
          %v944 = vsub.f32 %v875, %v914
          %v945 = vsub.f32 %v876, %v914
          %v946 = vsub.f32 %v877, %v914
          %v947 = vmul.f32 %v915, 1.442695
          %v948 = vpow.pop %v947
          %v949 = vmul.f32 %v916, 1.442695
          %v950 = vpow.pop %v949
          %v951 = vmul.f32 %v917, 1.442695
          %v952 = vpow.pop %v951
          %v953 = vmul.f32 %v918, 1.442695
          %v954 = vpow.pop %v953
          %v955 = vmul.f32 %v919, 1.442695
          %v956 = vpow.pop %v955
          %v957 = vmul.f32 %v920, 1.442695
          %v958 = vpow.pop %v957
          %v959 = vmul.f32 %v921, 1.442695
          %v960 = vpow.pop %v959
          %v961 = vmul.f32 %v922, 1.442695
          %v962 = vpow.pop %v961
          %v963 = vmul.f32 %v923, 1.442695
          %v964 = vpow.pop %v963
          %v965 = vmul.f32 %v924, 1.442695
          %v966 = vpow.pop %v965
          %v967 = vmul.f32 %v925, 1.442695
          %v968 = vpow.pop %v967
          %v969 = vmul.f32 %v926, 1.442695
          %v970 = vpow.pop %v969
          %v971 = vmul.f32 %v927, 1.442695
          %v972 = vpow.pop %v971
          %v973 = vmul.f32 %v928, 1.442695
          %v974 = vpow.pop %v973
          %v975 = vmul.f32 %v929, 1.442695
          %v976 = vpow.pop %v975
          %v977 = vmul.f32 %v930, 1.442695
          %v978 = vpow.pop %v977
          %v979 = vmul.f32 %v931, 1.442695
          %v980 = vpow.pop %v979
          %v981 = vmul.f32 %v932, 1.442695
          %v982 = vpow.pop %v981
          %v983 = vmul.f32 %v933, 1.442695
          %v984 = vpow.pop %v983
          %v985 = vmul.f32 %v934, 1.442695
          %v986 = vpow.pop %v985
          %v987 = vmul.f32 %v935, 1.442695
          %v988 = vpow.pop %v987
          %v989 = vmul.f32 %v936, 1.442695
          %v990 = vpow.pop %v989
          %v991 = vmul.f32 %v937, 1.442695
          %v992 = vpow.pop %v991
          %v993 = vmul.f32 %v938, 1.442695
          %v994 = vpow.pop %v993
          %v995 = vmul.f32 %v939, 1.442695
          %v996 = vpow.pop %v995
          %v997 = vmul.f32 %v940, 1.442695
          %v998 = vpow.pop %v997
          %v999 = vmul.f32 %v941, 1.442695
          %v1000 = vpow.pop %v999
          %v1001 = vmul.f32 %v942, 1.442695
          %v1002 = vpow.pop %v1001
          %v1003 = vmul.f32 %v943, 1.442695
          %v1004 = vpow.pop %v1003
          %v1005 = vmul.f32 %v944, 1.442695
          %v1006 = vpow.pop %v1005
          %v1007 = vmul.f32 %v945, 1.442695
          %v1008 = vpow.pop %v1007
          %v1009 = vmul.f32 %v946, 1.442695
          %v1010 = vpow.pop %v1009
          %v1011 = vadd.f32 %v948, %v950
          %v1012 = vadd.f32 %v1011, %v952
          %v1013 = vadd.f32 %v1012, %v954
          %v1014 = vadd.f32 %v1013, %v956
          %v1015 = vadd.f32 %v1014, %v958
          %v1016 = vadd.f32 %v1015, %v960
          %v1017 = vadd.f32 %v1016, %v962
          %v1018 = vadd.f32 %v1017, %v964
          %v1019 = vadd.f32 %v1018, %v966
          %v1020 = vadd.f32 %v1019, %v968
          %v1021 = vadd.f32 %v1020, %v970
          %v1022 = vadd.f32 %v1021, %v972
          %v1023 = vadd.f32 %v1022, %v974
          %v1024 = vadd.f32 %v1023, %v976
          %v1025 = vadd.f32 %v1024, %v978
          %v1026 = vadd.f32 %v1025, %v980
          %v1027 = vadd.f32 %v1026, %v982
          %v1028 = vadd.f32 %v1027, %v984
          %v1029 = vadd.f32 %v1028, %v986
          %v1030 = vadd.f32 %v1029, %v988
          %v1031 = vadd.f32 %v1030, %v990
          %v1032 = vadd.f32 %v1031, %v992
          %v1033 = vadd.f32 %v1032, %v994
          %v1034 = vadd.f32 %v1033, %v996
          %v1035 = vadd.f32 %v1034, %v998
          %v1036 = vadd.f32 %v1035, %v1000
          %v1037 = vadd.f32 %v1036, %v1002
          %v1038 = vadd.f32 %v1037, %v1004
          %v1039 = vadd.f32 %v1038, %v1006
          %v1040 = vadd.f32 %v1039, %v1008
          %v1041 = vadd.f32 %v1040, %v1010
          %v1042 = vrot.slane %v1041, 4
          %v1043 = vadd.f32 %v1041, %v1042
          %v1044 = vrot.slane %v1043, 2
          %v1045 = vadd.f32 %v1043, %v1044
          %v1046 = vrot.slane %v1045, 1
          %v1047 = vadd.f32 %v1045, %v1046
          %v1048 = vrcp.pop %v1047
          %v1049 = vmul.f32 %v948, %v1048
          %v1050 = vmul.f32 %v950, %v1048
          %v1051 = vmul.f32 %v952, %v1048
          %v1052 = vmul.f32 %v954, %v1048
          %v1053 = vmul.f32 %v956, %v1048
          %v1054 = vmul.f32 %v958, %v1048
          %v1055 = vmul.f32 %v960, %v1048
          %v1056 = vmul.f32 %v962, %v1048
          %v1057 = vmul.f32 %v964, %v1048
          %v1058 = vmul.f32 %v966, %v1048
          %v1059 = vmul.f32 %v968, %v1048
          %v1060 = vmul.f32 %v970, %v1048
          %v1061 = vmul.f32 %v972, %v1048
          %v1062 = vmul.f32 %v974, %v1048
          %v1063 = vmul.f32 %v976, %v1048
          %v1064 = vmul.f32 %v978, %v1048
          %v1065 = vmul.f32 %v980, %v1048
          %v1066 = vmul.f32 %v982, %v1048
          %v1067 = vmul.f32 %v984, %v1048
          %v1068 = vmul.f32 %v986, %v1048
          %v1069 = vmul.f32 %v988, %v1048
          %v1070 = vmul.f32 %v990, %v1048
          %v1071 = vmul.f32 %v992, %v1048
          %v1072 = vmul.f32 %v994, %v1048
          %v1073 = vmul.f32 %v996, %v1048
          %v1074 = vmul.f32 %v998, %v1048
          %v1075 = vmul.f32 %v1000, %v1048
          %v1076 = vmul.f32 %v1002, %v1048
          %v1077 = vmul.f32 %v1004, %v1048
          %v1078 = vmul.f32 %v1006, %v1048
          %v1079 = vmul.f32 %v1008, %v1048
          %v1080 = vmul.f32 %v1010, %v1048
          %v1081 = vpack.c.bf16 %v1050, %v1049
          %v1082 = vpack.c.bf16 %v1052, %v1051
          %v1083 = vpack.c.bf16 %v1054, %v1053
          %v1084 = vpack.c.bf16 %v1056, %v1055
          %v1085 = vpack.c.bf16 %v1058, %v1057
          %v1086 = vpack.c.bf16 %v1060, %v1059
          %v1087 = vpack.c.bf16 %v1062, %v1061
          %v1088 = vpack.c.bf16 %v1064, %v1063
          %v1089 = vpack.c.bf16 %v1066, %v1065
          %v1090 = vpack.c.bf16 %v1068, %v1067
          %v1091 = vpack.c.bf16 %v1070, %v1069
          %v1092 = vpack.c.bf16 %v1072, %v1071
          %v1093 = vpack.c.bf16 %v1074, %v1073
          %v1094 = vpack.c.bf16 %v1076, %v1075
          %v1095 = vpack.c.bf16 %v1078, %v1077
          %v1096 = vpack.c.bf16 %v1080, %v1079
          %v1099 = vunpack.c.l.b16 %v550
          %v1100 = vunpack.c.h.b16 %v550
          %v1101 = vunpack.c.l.b16 %v551
          %v1102 = vunpack.c.h.b16 %v551
          %v1103 = vpack.c.b16 %v1101, %v1099
          %v1104 = vpack.c.b16 %v1102, %v1100
          %1107 = vmatprep.subr.bf16.mxu0 0
          %1108 = vmatpush1.bf16.msra.mxu0 %v1081
          %1109 = vmatprep.subr.bf16.mxu0 0
          %1110 = vmatpush1.bf16.msra.mxu0 %v1082
          %1111 = vmatprep.subr.bf16.mxu0 0
          %1112 = vmatpush1.bf16.msra.mxu0 %v1083
          %1113 = vmatprep.subr.bf16.mxu0 0
          %1114 = vmatpush1.bf16.msra.mxu0 %v1084
          %1115 = vmatprep.subr.bf16.mxu0 0
          %1116 = vmatpush1.bf16.msra.mxu0 %v1085
          %1117 = vmatprep.subr.bf16.mxu0 0
          %1118 = vmatpush1.bf16.msra.mxu0 %v1086
          %1119 = vmatprep.subr.bf16.mxu0 0
          %1120 = vmatpush1.bf16.msra.mxu0 %v1087
          %1121 = vmatprep.subr.bf16.mxu0 0
          %1122 = vmatpush1.bf16.msra.mxu0 %v1088
          %1123 = vmatprep.subr.bf16.mxu0 0
          %1124 = vmatpush1.bf16.msra.mxu0 %v1089
          %1125 = vmatprep.subr.bf16.mxu0 0
          %1126 = vmatpush1.bf16.msra.mxu0 %v1090
          %1127 = vmatprep.subr.bf16.mxu0 0
          %1128 = vmatpush1.bf16.msra.mxu0 %v1091
          %1129 = vmatprep.subr.bf16.mxu0 0
          %1130 = vmatpush1.bf16.msra.mxu0 %v1092
          %1131 = vmatprep.subr.bf16.mxu0 0
          %1132 = vmatpush1.bf16.msra.mxu0 %v1093
          %1133 = vmatprep.subr.bf16.mxu0 0
          %1134 = vmatpush1.bf16.msra.mxu0 %v1094
          %1135 = vmatprep.subr.bf16.mxu0 0
          %1136 = vmatpush1.bf16.msra.mxu0 %v1095
          %1137 = vmatprep.subr.bf16.mxu0 0
          %1138 = vmatpush1.bf16.msra.mxu0 %v1096
          %1139 = vmatprep.mubr.bf16.mxu0 %v1104
          %1140 = vmatmul.mubr.bf16.gmra.mrb[0].mxu0 %v1103
          %v1141 = vpop.f32.mrb[0].mxu0
          %v1142 = vadd.f32 0.0, %v1141
          %v1143 = vpop.f32.mrb[0].mxu0
          %v1144 = vpop.f32.mrb[0].mxu0
          %v1145 = vadd.f32 0.0, %v1144
          %v1146 = vpop.f32.mrb[0].mxu0
          %1147 = vdwg.mxu0
          %s1148 = smul.u32 %s506, 16
          %s1149 = scalar_lea.vmem [#allocation2], %s1148
          %1150 = vst [vmem:[%s1149] sm:$0xff] %v1142
          %1151 = vst [vmem:[%s1149 + $0x8] sm:$0xff] %v1145
        $region117: #{_lambda_.5} parent=103 // loop_footer
          %s510 = sadd.s32 1, %s506
        $region118: #{_lambda_.5} parent=103 // loop_footer_branch
          %505 = sbr.rel target = $region114
        $region119: #{_lambda_.5} parent=103 // loop_exit
          _
        %v1152 = vld [vmem:[#allocation2] sm:$0xff]
        %v1153 = vld [vmem:[#allocation2 + $0x8] sm:$0xff]
        %v1154 = vld [vmem:[#allocation2 + $0x10] sm:$0xff]
        %v1155 = vld [vmem:[#allocation2 + $0x18] sm:$0xff]
        %v1156 = vld [vmem:[#allocation2 + $0x20] sm:$0xff]
        %v1157 = vld [vmem:[#allocation2 + $0x28] sm:$0xff]
        %v1158 = vld [vmem:[#allocation2 + $0x30] sm:$0xff]
        %v1159 = vld [vmem:[#allocation2 + $0x38] sm:$0xff]
        %v1160 = vld [vmem:[#allocation2 + $0x40] sm:$0xff]
        %v1161 = vld [vmem:[#allocation2 + $0x48] sm:$0xff]
        %v1162 = vld [vmem:[#allocation2 + $0x50] sm:$0xff]
        %v1163 = vld [vmem:[#allocation2 + $0x58] sm:$0xff]
        %v1164 = vld [vmem:[#allocation2 + $0x60] sm:$0xff]
        %v1165 = vld [vmem:[#allocation2 + $0x68] sm:$0xff]
        %v1166 = vld [vmem:[#allocation2 + $0x70] sm:$0xff]
        %v1167 = vld [vmem:[#allocation2 + $0x78] sm:$0xff]
        %1168 = vxpose.xlu0.b32.start [1/16] %v1152, 128
        %1169 = vxpose.xlu0.b32.cont [2/16] %v1153, 128
        %1170 = vxpose.xlu0.b32.cont [3/16] %v1154, 128
        %1171 = vxpose.xlu0.b32.cont [4/16] %v1155, 128
        %1172 = vxpose.xlu0.b32.cont [5/16] %v1156, 128
        %1173 = vxpose.xlu0.b32.cont [6/16] %v1157, 128
        %1174 = vxpose.xlu0.b32.cont [7/16] %v1158, 128
        %1175 = vxpose.xlu0.b32.cont [8/16] %v1159, 128
        %1176 = vxpose.xlu0.b32.cont [9/16] %v1160, 128
        %1177 = vxpose.xlu0.b32.cont [10/16] %v1161, 128
        %1178 = vxpose.xlu0.b32.cont [11/16] %v1162, 128
        %1179 = vxpose.xlu0.b32.cont [12/16] %v1163, 128
        %1180 = vxpose.xlu0.b32.cont [13/16] %v1164, 128
        %1181 = vxpose.xlu0.b32.cont [14/16] %v1165, 128
        %1182 = vxpose.xlu0.b32.cont [15/16] %v1166, 128
        %1183 = vxpose.xlu0.b32.end [16/16] %v1167, 128
        %v1184 = vpop.trf.xlu0
        %v1185 = vpop.trf.xlu0
        %v1186 = vpop.trf.xlu0
        %v1187 = vpop.trf.xlu0
        %v1188 = vpop.trf.xlu0
        %v1189 = vpop.trf.xlu0
        %v1190 = vpop.trf.xlu0
        %v1191 = vpop.trf.xlu0
        %v1192 = vpop.trf.xlu0
        %v1193 = vpop.trf.xlu0
        %v1194 = vpop.trf.xlu0
        %v1195 = vpop.trf.xlu0
        %v1196 = vpop.trf.xlu0
        %v1197 = vpop.trf.xlu0
        %v1198 = vpop.trf.xlu0
        %v1199 = vpop.trf.xlu0
        %v1200 = vld [vmem:[%s4] sm:$0x1]
        %v1202 = vlaneseq
        %v1203 = vshrl.u32 %v1202, 7
        %v1204 = vsub.s32 0, %v1203
        %v1205 = vrot.slane %v1200, %v1204
        %v1207 = vadd.f32 %v1184, %v1205
        %v1208 = vadd.f32 %v1185, %v1205
        %v1209 = vadd.f32 %v1186, %v1205
        %v1210 = vadd.f32 %v1187, %v1205
        %v1211 = vadd.f32 %v1188, %v1205
        %v1212 = vadd.f32 %v1189, %v1205
        %v1213 = vadd.f32 %v1190, %v1205
        %v1214 = vadd.f32 %v1191, %v1205
        %v1215 = vadd.f32 %v1192, %v1205
        %v1216 = vadd.f32 %v1193, %v1205
        %v1217 = vadd.f32 %v1194, %v1205
        %v1218 = vadd.f32 %v1195, %v1205
        %v1219 = vadd.f32 %v1196, %v1205
        %v1220 = vadd.f32 %v1197, %v1205
        %v1221 = vadd.f32 %v1198, %v1205
        %v1222 = vadd.f32 %v1199, %v1205
        %v1223 = vpack.c.bf16 %v1208, %v1207
        %v1224 = vpack.c.bf16 %v1210, %v1209
        %v1225 = vpack.c.bf16 %v1212, %v1211
        %v1226 = vpack.c.bf16 %v1214, %v1213
        %v1227 = vpack.c.bf16 %v1216, %v1215
        %v1228 = vpack.c.bf16 %v1218, %v1217
        %v1229 = vpack.c.bf16 %v1220, %v1219
        %v1230 = vpack.c.bf16 %v1222, %v1221
        %v1239 = vunpack.c.l.b16 %v1223
        %v1240 = vunpack.c.h.b16 %v1223
        %v1241 = vunpack.c.l.b16 %v1224
        %v1242 = vunpack.c.h.b16 %v1224
        %v1243 = vunpack.c.l.b16 %v1225
        %v1244 = vunpack.c.h.b16 %v1225
        %v1245 = vunpack.c.l.b16 %v1226
        %v1246 = vunpack.c.h.b16 %v1226
        %v1247 = vunpack.c.l.b16 %v1227
        %v1248 = vunpack.c.h.b16 %v1227
        %v1249 = vunpack.c.l.b16 %v1228
        %v1250 = vunpack.c.h.b16 %v1228
        %v1251 = vunpack.c.l.b16 %v1229
        %v1252 = vunpack.c.h.b16 %v1229
        %v1253 = vunpack.c.l.b16 %v1230
        %v1254 = vunpack.c.h.b16 %v1230
        %v1255 = vpack.c.b16 %v1239, %v1239
        %v1256 = vpack.c.b16 %v1240, %v1240
        %v1257 = vpack.c.b16 %v1241, %v1241
        %v1258 = vpack.c.b16 %v1242, %v1242
        %v1259 = vpack.c.b16 %v1243, %v1243
        %v1260 = vpack.c.b16 %v1244, %v1244
        %v1261 = vpack.c.b16 %v1245, %v1245
        %v1262 = vpack.c.b16 %v1246, %v1246
        %v1263 = vpack.c.b16 %v1247, %v1247
        %v1264 = vpack.c.b16 %v1248, %v1248
        %v1265 = vpack.c.b16 %v1249, %v1249
        %v1266 = vpack.c.b16 %v1250, %v1250
        %v1267 = vpack.c.b16 %v1251, %v1251
        %v1268 = vpack.c.b16 %v1252, %v1252
        %v1269 = vpack.c.b16 %v1253, %v1253
        %v1270 = vpack.c.b16 %v1254, %v1254
        %1287 = vst [vmem:[%s350] sm:$0xf] %v1255
        %1288 = vst [vmem:[%s350 + $0x4] sm:$0xf] %v1256
        %1289 = vst [vmem:[%s350 + $0x8] sm:$0xf] %v1257
        %1290 = vst [vmem:[%s350 + $0xc] sm:$0xf] %v1258
        %1291 = vst [vmem:[%s350 + $0x10] sm:$0xf] %v1259
        %1292 = vst [vmem:[%s350 + $0x14] sm:$0xf] %v1260
        %1293 = vst [vmem:[%s350 + $0x18] sm:$0xf] %v1261
        %1294 = vst [vmem:[%s350 + $0x1c] sm:$0xf] %v1262
        %1295 = vst [vmem:[%s350 + $0x20] sm:$0xf] %v1263
        %1296 = vst [vmem:[%s350 + $0x24] sm:$0xf] %v1264
        %1297 = vst [vmem:[%s350 + $0x28] sm:$0xf] %v1265
        %1298 = vst [vmem:[%s350 + $0x2c] sm:$0xf] %v1266
        %1299 = vst [vmem:[%s350 + $0x30] sm:$0xf] %v1267
        %1300 = vst [vmem:[%s350 + $0x34] sm:$0xf] %v1268
        %1301 = vst [vmem:[%s350 + $0x38] sm:$0xf] %v1269
        %1302 = vst [vmem:[%s350 + $0x3c] sm:$0xf] %v1270
        %s1303 = smul.u32 16, %s16
        %p1304 = scmp.lt.s32.totalorder %s1303, 31
        %s1305 = scalar_select %p1304, %s1303, 31
        %s1306 = smul.addr %s1305, 4
        %s1307 = scalar_lea.vmem %s5, %s1306
        // Predicated region
        $region120: #{_lambda_.5} parent=103 // pred_check
          %p1308 = pneg %p149
        $region121: #{_lambda_.5} parent=103 // pred_check_branch
          %1310 = sbr.rel (%p1308) target = $region123
        $region122: #{_lambda_.5} parent=103 // pred_region
          %s1311 = smul.u32 16, %s16
        $region123: #{_lambda_.5} parent=103 // pred_fallthru
          _
      $region104: #{_lambda_.5} parent=5 // pred_fallthru
        _
      %p1312 = scmp.le.s32.totalorder 2, %s11
      // Predicated region
      $region124: #{_lambda_.5} parent=5 // pred_check
        %p1313 = pneg %p1312
      $region125: #{_lambda_.5} parent=5 // pred_check_branch
        %1315 = sbr.rel (%p1313) target = $region127
      $region126: #{_lambda_.5} parent=5 // pred_region
        %s1316 = ssub.s32 %s11, 2
        // Predicated region
        $region128: #{_lambda_.5} parent=126 // pred_check
          %p1317 = pneg %p155
        $region129: #{_lambda_.5} parent=126 // pred_check_branch
          %1319 = sbr.rel (%p1317) target = $region131
        $region130: #{_lambda_.5} parent=126 // pred_region
          %s1320 = smul.u32 16, %s17
          %p1321 = scmp.lt.s32.totalorder %s1320, 31
          %s1322 = scalar_select %p1321, %s1320, 31
          %s1323 = smul.addr %s1322, 4
          %s1324 = scalar_lea.vmem %s5, %s1323
        $region131: #{_lambda_.5} parent=126 // pred_fallthru
          _
      $region127: #{_lambda_.5} parent=5 // pred_fallthru
        _
    $region6: #{_lambda_.5} parent=1 // loop_footer
      %s15 = sadd.s32 1, %s11
    $region7: #{_lambda_.5} parent=1 // loop_footer_branch
      %10 = sbr.rel target = $region3
    $region8: #{_lambda_.5} parent=1 // loop_exit
      _

// kernel: _lambda_.7
$region0: #{_lambda_.7}
  #allocation0 [shape = 'u32[]', space=smem, size = 0x4, offset = 0x4, fixed_abs, tag = 'smem constant byte address 0x4 - core index']
  #allocation1 [shape = 'u32[144,128]{1,0:T(1,128)}', space=vmem, size = 0x12000, scoped, tag = 'internal scratch']
  #allocation2 [shape = 'f32[128,128]{1,0:T(8,128)}', space=vmem, size = 0x10000, scoped, tag = 'scratch operand']
  %s0 = inlined_call_operand.vmem [shape: bf16[1,8,256], index: 0, kind: input, shape index: {}]
  %s1 = inlined_call_operand.vmem [shape: f32[1,256,1], index: 1, kind: input, shape index: {}]
  %s2 = inlined_call_operand.vmem [shape: f32[1,1,256], index: 2, kind: input, shape index: {}]
  %s3 = inlined_call_operand.vmem [shape: s8[256,256], index: 3, kind: input, shape index: {}]
  %s4 = inlined_call_operand.vmem [shape: f32[1,128], index: 4, kind: input, shape index: {}]
  %s5 = inlined_call_operand.vmem [shape: f32[256,128], index: 5, kind: output, shape index: {}]
  %s6 = sld [smem:[#allocation0]]
  $region91: #{_lambda_.7} parent=0
    _
  %s8 = ssub.s32 1, %s6
  %s9 = scalar_select 0, %s8, %s6
  $region1: #{_lambda_.7} parent=0
    #allocation3 [shape = 'u8[65536]{0}', space=vmem, size = 0x10000, scoped, tag = 'input window, operand 3']
    loop: start=0, step=1, limit=4
    $region2: #{_lambda_.7} parent=1 // loop_pre_header
      _
    $region3: #{_lambda_.7} parent=1 // loop_header
      %s11 = sphi 0, %s15
      %p12 = scmp.ge.s32.totalorder %s11, 4
      %s19 = sphi 0, %s19
      %s21 = sphi 0, %s19
      %s22 = sphi 0, %s21
      %s36 = sphi 0, %s22
      %s40 = sphi 0, %s40
      %s42 = sphi 0, %s40
      %s43 = sphi 0, %s42
      %s57 = sphi 0, %s43
      %s63 = sphi 0, %s65
      %s66 = sphi 0, %s63
      %s67 = sphi 0, %s66
      %s83 = sphi 0, %s67
      %s89 = sphi 0, %s91
      %s92 = sphi 0, %s89
      %s93 = sphi 0, %s92
      %s109 = sphi 0, %s93
      %s113 = sphi 0, %s113
      %s115 = sphi 0, %s113
      %s116 = sphi 0, %s115
      %s130 = sphi 0, %s116
      %s136 = sphi 0, %s138
      %s139 = sphi 0, %s136
      %s140 = sphi 0, %s139
      %s156 = sphi 0, %s140
    $region4: #{_lambda_.7} parent=1 // loop_header_branch
      %14 = sbr.rel (%p12) target = $region8
    $region5: #{_lambda_.7} parent=1 // loop_body
      %s16 = ssub.s32 %s11, 1
      %s17 = ssub.s32 %s11, 2
      %s18 = sadd.s32 %s11, 1
      %s20 = sadd.s32 %s19, 1
      %p23 = scmp.eq.s32.totalorder %s11, 1
      %p24 = scmp.ne.s32.totalorder %s19, %s21
      %p25 = scmp.eq.s32.totalorder %s11, 0
      %p26 = por %p24, %p25
      %p27 = scmp.ne.s32.totalorder %s19, %s21
      %p28 = scmp.eq.s32.totalorder %s16, 1
      %p29 = por %p27, %p28
      %p30 = scmp.ne.s32.totalorder %s21, %s22
      %p31 = scmp.eq.s32.totalorder %s16, 0
      %p32 = por %p30, %p31
      %p33 = scmp.ne.s32.totalorder %s21, %s22
      %p34 = scmp.eq.s32.totalorder %s17, 1
      %p35 = por %p33, %p34
      %p37 = scmp.ne.s32.totalorder %s22, %s36
      %p38 = scmp.eq.s32.totalorder %s17, 0
      %p39 = por %p37, %p38
      %s41 = sadd.s32 %s40, 1
      %p44 = scmp.eq.s32.totalorder %s11, 1
      %p45 = scmp.ne.s32.totalorder %s40, %s42
      %p46 = scmp.eq.s32.totalorder %s11, 0
      %p47 = por %p45, %p46
      %p48 = scmp.ne.s32.totalorder %s40, %s42
      %p49 = scmp.eq.s32.totalorder %s16, 1
      %p50 = por %p48, %p49
      %p51 = scmp.ne.s32.totalorder %s42, %s43
      %p52 = scmp.eq.s32.totalorder %s16, 0
      %p53 = por %p51, %p52
      %p54 = scmp.ne.s32.totalorder %s42, %s43
      %p55 = scmp.eq.s32.totalorder %s17, 1
      %p56 = por %p54, %p55
      %p58 = scmp.ne.s32.totalorder %s43, %s57
      %p59 = scmp.eq.s32.totalorder %s17, 0
      %p60 = por %p58, %p59
      %s61 = ssub.s32 %s11, %s18
      %p62 = scmp.eq.s32.totalorder %s61, 0
      %s64 = sadd.s32 %s63, 1
      %s65 = scalar_select %p62, %s63, %s64
      %p68 = pneg %p62
      %p69 = scmp.eq.s32.totalorder %s11, 1
      %p70 = por %p68, %p69
      %p71 = scmp.ne.s32.totalorder %s63, %s66
      %p72 = scmp.eq.s32.totalorder %s11, 0
      %p73 = por %p71, %p72
      %p74 = scmp.ne.s32.totalorder %s63, %s66
      %p75 = scmp.eq.s32.totalorder %s16, 1
      %p76 = por %p74, %p75
      %p77 = scmp.ne.s32.totalorder %s66, %s67
      %p78 = scmp.eq.s32.totalorder %s16, 0
      %p79 = por %p77, %p78
      %p80 = scmp.ne.s32.totalorder %s66, %s67
      %p81 = scmp.eq.s32.totalorder %s17, 1
      %p82 = por %p80, %p81
      %p84 = scmp.ne.s32.totalorder %s67, %s83
      %p85 = scmp.eq.s32.totalorder %s17, 0
      %p86 = por %p84, %p85
      %s87 = ssub.s32 %s11, %s18
      %p88 = scmp.eq.s32.totalorder %s87, 0
      %s90 = sadd.s32 %s89, 1
      %s91 = scalar_select %p88, %s89, %s90
      %p94 = pneg %p88
      %p95 = scmp.eq.s32.totalorder %s11, 1
      %p96 = por %p94, %p95
      %p97 = scmp.ne.s32.totalorder %s89, %s92
      %p98 = scmp.eq.s32.totalorder %s11, 0
      %p99 = por %p97, %p98
      %p100 = scmp.ne.s32.totalorder %s89, %s92
      %p101 = scmp.eq.s32.totalorder %s16, 1
      %p102 = por %p100, %p101
      %p103 = scmp.ne.s32.totalorder %s92, %s93
      %p104 = scmp.eq.s32.totalorder %s16, 0
      %p105 = por %p103, %p104
      %p106 = scmp.ne.s32.totalorder %s92, %s93
      %p107 = scmp.eq.s32.totalorder %s17, 1
      %p108 = por %p106, %p107
      %p110 = scmp.ne.s32.totalorder %s93, %s109
      %p111 = scmp.eq.s32.totalorder %s17, 0
      %p112 = por %p110, %p111
      %s114 = sadd.s32 %s113, 1
      %p117 = scmp.eq.s32.totalorder %s11, 1
      %p118 = scmp.ne.s32.totalorder %s113, %s115
      %p119 = scmp.eq.s32.totalorder %s11, 0
      %p120 = por %p118, %p119
      %p121 = scmp.ne.s32.totalorder %s113, %s115
      %p122 = scmp.eq.s32.totalorder %s16, 1
      %p123 = por %p121, %p122
      %p124 = scmp.ne.s32.totalorder %s115, %s116
      %p125 = scmp.eq.s32.totalorder %s16, 0
      %p126 = por %p124, %p125
      %p127 = scmp.ne.s32.totalorder %s115, %s116
      %p128 = scmp.eq.s32.totalorder %s17, 1
      %p129 = por %p127, %p128
      %p131 = scmp.ne.s32.totalorder %s116, %s130
      %p132 = scmp.eq.s32.totalorder %s17, 0
      %p133 = por %p131, %p132
      %s134 = ssub.s32 %s11, %s18
      %p135 = scmp.eq.s32.totalorder %s134, 0
      %s137 = sadd.s32 %s136, 1
      %s138 = scalar_select %p135, %s136, %s137
      %p141 = pneg %p135
      %p142 = scmp.eq.s32.totalorder %s11, 1
      %p143 = por %p141, %p142
      %p144 = scmp.ne.s32.totalorder %s136, %s139
      %p145 = scmp.eq.s32.totalorder %s11, 0
      %p146 = por %p144, %p145
      %p147 = scmp.ne.s32.totalorder %s136, %s139
      %p148 = scmp.eq.s32.totalorder %s16, 1
      %p149 = por %p147, %p148
      %p150 = scmp.ne.s32.totalorder %s139, %s140
      %p151 = scmp.eq.s32.totalorder %s16, 0
      %p152 = por %p150, %p151
      %p153 = scmp.ne.s32.totalorder %s139, %s140
      %p154 = scmp.eq.s32.totalorder %s17, 1
      %p155 = por %p153, %p154
      %p157 = scmp.ne.s32.totalorder %s140, %s156
      %p158 = scmp.eq.s32.totalorder %s17, 0
      %p159 = por %p157, %p158
      %p160 = scmp.le.s32.totalorder 1, %s11
      %p161 = scmp.lt.s32.totalorder %s11, 3
      %p162 = pnand %p160, %p161
      %p163 = pneg %p162
      // Predicated region
      $region9: #{_lambda_.7} parent=5 // pred_check
        _
      $region10: #{_lambda_.7} parent=5 // pred_check_branch
        %165 = sbr.rel (%p162) target = $region12
      $region11: #{_lambda_.7} parent=5 // pred_region
        %s166 = ssub.s32 %s11, 1
        // Predicated region
        $region13: #{_lambda_.7} parent=11 // pred_check
          %p167 = pneg %p32
        $region14: #{_lambda_.7} parent=11 // pred_check_branch
          %169 = sbr.rel (%p167) target = $region16
        $region15: #{_lambda_.7} parent=11 // pred_region
          _
        $region16: #{_lambda_.7} parent=11 // pred_fallthru
          _
        // Predicated region
        $region17: #{_lambda_.7} parent=11 // pred_check
          %p170 = pneg %p53
        $region18: #{_lambda_.7} parent=11 // pred_check_branch
          %172 = sbr.rel (%p170) target = $region20
        $region19: #{_lambda_.7} parent=11 // pred_region
          _
        $region20: #{_lambda_.7} parent=11 // pred_fallthru
          _
        // Predicated region
        $region21: #{_lambda_.7} parent=11 // pred_check
          %p173 = pneg %p126
        $region22: #{_lambda_.7} parent=11 // pred_check_branch
          %175 = sbr.rel (%p173) target = $region24
        $region23: #{_lambda_.7} parent=11 // pred_region
          _
        $region24: #{_lambda_.7} parent=11 // pred_fallthru
          _
      $region12: #{_lambda_.7} parent=5 // pred_fallthru
        _
      %p176 = scmp.lt.s32.totalorder %s11, 2
      // Predicated region
      $region25: #{_lambda_.7} parent=5 // pred_check
        %p177 = pneg %p176
      $region26: #{_lambda_.7} parent=5 // pred_check_branch
        %179 = sbr.rel (%p177) target = $region28
      $region27: #{_lambda_.7} parent=5 // pred_region
        // Predicated region
        $region29: #{_lambda_.7} parent=27 // pred_check
          %p180 = pneg %p73
        $region30: #{_lambda_.7} parent=27 // pred_check_branch
          %182 = sbr.rel (%p180) target = $region32
        $region31: #{_lambda_.7} parent=27 // pred_region
          %p183 = scmp.lt.s32.totalorder %s11, 1
          %s184 = scalar_select %p183, %s11, 1
          %s185 = scalar_lea.vmem %s2, %s184
        $region32: #{_lambda_.7} parent=27 // pred_fallthru
          _
        // Predicated region
        $region33: #{_lambda_.7} parent=27 // pred_check
          %p186 = pneg %p99
        $region34: #{_lambda_.7} parent=27 // pred_check_branch
          %188 = sbr.rel (%p186) target = $region36
        $region35: #{_lambda_.7} parent=27 // pred_region
          %s189 = sand.u32 %s89, 1
          %s190 = sand.u32 %s89, 1
          %s191 = smul.addr %s190, 64
          %s192 = scalar_lea.vmem [#allocation3], %s191
          %s193 = smul.addr %s11, 8
          %s194 = scalar_lea.vmem %s3, %s193
          // Predicated region
          $region37: #{_lambda_.7} parent=35 // pred_check
            _
          $region38: #{_lambda_.7} parent=35 // pred_check_branch
            %196 = sbr.rel (0) target = $region40
          $region39: #{_lambda_.7} parent=35 // pred_region
            // Predicated region
            $region41: #{_lambda_.7} parent=39 // pred_check
              _
            $region42: #{_lambda_.7} parent=39 // pred_check_branch
              %198 = sbr.rel (0) target = $region44
            $region43: #{_lambda_.7} parent=39 // pred_region
              // Predicated region
              $region56: #{_lambda_.7} parent=43 // pred_check
                _
              $region57: #{_lambda_.7} parent=43 // pred_check_branch
                %227 = sbr.rel (0) target = $region59
              $region58: #{_lambda_.7} parent=43 // pred_region
                loop: start=0, step=1, limit=1
                $region60: #{_lambda_.7} parent=58 // loop_pre_header
                  _
                $region61: #{_lambda_.7} parent=58 // loop_header
                  %s229 = sphi 0, %s233
                  %p230 = scmp.ge.s32.totalorder %s229, 1
                  %s234 = sphi %s194, %s194
                  %s235 = sphi %s192, %s192
                $region62: #{_lambda_.7} parent=58 // loop_header_branch
                  %232 = sbr.rel (%p230) target = $region66
                $region63: #{_lambda_.7} parent=58 // loop_body
                  %v236 = vld [vmem:[%s234] sm:$0xff]
                  %237 = vst [vmem:[%s235] sm:$0xff] %v236
                  %v238 = vld [vmem:[%s234 + $0x10] sm:$0xff]
                  %239 = vst [vmem:[%s235 + $0x8] sm:$0xff] %v238
                  %v240 = vld [vmem:[%s234 + $0x20] sm:$0xff]
                  %241 = vst [vmem:[%s235 + $0x10] sm:$0xff] %v240
                  %v242 = vld [vmem:[%s234 + $0x30] sm:$0xff]
                  %243 = vst [vmem:[%s235 + $0x18] sm:$0xff] %v242
                  %v244 = vld [vmem:[%s234 + $0x40] sm:$0xff]
                  %245 = vst [vmem:[%s235 + $0x20] sm:$0xff] %v244
                  %v246 = vld [vmem:[%s234 + $0x50] sm:$0xff]
                  %247 = vst [vmem:[%s235 + $0x28] sm:$0xff] %v246
                  %v248 = vld [vmem:[%s234 + $0x60] sm:$0xff]
                  %249 = vst [vmem:[%s235 + $0x30] sm:$0xff] %v248
                  %v250 = vld [vmem:[%s234 + $0x70] sm:$0xff]
                  %251 = vst [vmem:[%s235 + $0x38] sm:$0xff] %v250
                $region64: #{_lambda_.7} parent=58 // loop_footer
                  %s233 = sadd.s32 1, %s229
                $region65: #{_lambda_.7} parent=58 // loop_footer_branch
                  %228 = sbr.rel target = $region61
                $region66: #{_lambda_.7} parent=58 // loop_exit
                  _
              $region59: #{_lambda_.7} parent=43 // pred_fallthru
                _
              // Predicated region
              $region67: #{_lambda_.7} parent=43 // pred_check
                _
              $region68: #{_lambda_.7} parent=43 // pred_check_branch
                %253 = sbr.rel target = $region70
              $region69: #{_lambda_.7} parent=43 // pred_region
                _
              $region70: #{_lambda_.7} parent=43 // pred_fallthru
                _
            $region44: #{_lambda_.7} parent=39 // pred_fallthru
              _
            // Predicated region
            $region45: #{_lambda_.7} parent=39 // pred_check
              _
            $region46: #{_lambda_.7} parent=39 // pred_check_branch
              %200 = sbr.rel target = $region48
            $region47: #{_lambda_.7} parent=39 // pred_region
              loop: start=0, step=1, limit=1
              $region49: #{_lambda_.7} parent=47 // loop_pre_header
                _
              $region50: #{_lambda_.7} parent=47 // loop_header
                %s203 = sphi 0, %s207
                %p204 = scmp.ge.s32.totalorder %s203, 1
                %s208 = sphi %s194, %s194
                %s209 = sphi %s192, %s192
              $region51: #{_lambda_.7} parent=47 // loop_header_branch
                %206 = sbr.rel (%p204) target = $region55
              $region52: #{_lambda_.7} parent=47 // loop_body
                %v210 = vld [vmem:[%s208] sm:$0xff]
                %211 = vst [vmem:[%s209] sm:$0xff] %v210
                %v212 = vld [vmem:[%s208 + $0x10] sm:$0xff]
                %213 = vst [vmem:[%s209 + $0x8] sm:$0xff] %v212
                %v214 = vld [vmem:[%s208 + $0x20] sm:$0xff]
                %215 = vst [vmem:[%s209 + $0x10] sm:$0xff] %v214
                %v216 = vld [vmem:[%s208 + $0x30] sm:$0xff]
                %217 = vst [vmem:[%s209 + $0x18] sm:$0xff] %v216
                %v218 = vld [vmem:[%s208 + $0x40] sm:$0xff]
                %219 = vst [vmem:[%s209 + $0x20] sm:$0xff] %v218
                %v220 = vld [vmem:[%s208 + $0x50] sm:$0xff]
                %221 = vst [vmem:[%s209 + $0x28] sm:$0xff] %v220
                %v222 = vld [vmem:[%s208 + $0x60] sm:$0xff]
                %223 = vst [vmem:[%s209 + $0x30] sm:$0xff] %v222
                %v224 = vld [vmem:[%s208 + $0x70] sm:$0xff]
                %225 = vst [vmem:[%s209 + $0x38] sm:$0xff] %v224
              $region53: #{_lambda_.7} parent=47 // loop_footer
                %s207 = sadd.s32 1, %s203
              $region54: #{_lambda_.7} parent=47 // loop_footer_branch
                %202 = sbr.rel target = $region50
              $region55: #{_lambda_.7} parent=47 // loop_exit
                _
            $region48: #{_lambda_.7} parent=39 // pred_fallthru
              _
          $region40: #{_lambda_.7} parent=35 // pred_fallthru
            _
          %254 = vnop
        $region36: #{_lambda_.7} parent=27 // pred_fallthru
          _
      $region28: #{_lambda_.7} parent=5 // pred_fallthru
        _
      %p255 = scmp.le.s32.totalorder 1, %s11
      %p256 = scmp.lt.s32.totalorder %s11, 3
      %p257 = pnand %p255, %p256
      %p258 = pneg %p257
      // Predicated region
      $region71: #{_lambda_.7} parent=5 // pred_check
        _
      $region72: #{_lambda_.7} parent=5 // pred_check_branch
        %260 = sbr.rel (%p257) target = $region74
      $region73: #{_lambda_.7} parent=5 // pred_region
        %s261 = ssub.s32 %s11, 1
        %s262 = sand.u32 %s92, 1
        %s263 = sand.u32 %s92, 1
        %s264 = smul.addr %s263, 64
        %s265 = scalar_lea.vmem [#allocation3], %s264
        // Predicated region
        $region75: #{_lambda_.7} parent=73 // pred_check
          %p266 = pneg %p105
        $region76: #{_lambda_.7} parent=73 // pred_check_branch
          %268 = sbr.rel (%p266) target = $region78
        $region77: #{_lambda_.7} parent=73 // pred_region
          _
        $region78: #{_lambda_.7} parent=73 // pred_fallthru
          _
        %p269 = pneg %p32
        %p270 = pneg %p29
        %p271 = pneg %p53
        %p272 = pneg %p50
        %p273 = scmp.lt.s32.totalorder %s16, 1
        %s274 = scalar_select %p273, %s16, 1
        %s275 = scalar_lea.vmem %s2, %s274
        %p276 = pneg %p79
        %p277 = pneg %p76
        %s278 = sand.u32 %s92, 1
        %s279 = sand.u32 %s92, 1
        %s280 = smul.addr %s279, 64
        %s281 = scalar_lea.vmem [#allocation3], %s280
        %p282 = pneg %p105
        %p283 = pneg %p102
        %p284 = pneg %p126
        %p285 = pneg %p123
        %p286 = pneg %p152
        %p287 = pneg %p149
        %s288 = smul.u32 16, %s16
        %p289 = scmp.lt.s32.totalorder %s288, 31
        %s290 = scalar_select %p289, %s288, 31
        %s291 = smul.addr %s290, 8
        %s292 = scalar_lea.vmem %s5, %s291
        %p293 = scmp.lt.s32.totalorder %s16, 1
        %s294 = scalar_select %p293, %s16, 1
        %s295 = scalar_lea.vmem %s2, %s294
        %s296 = smul.u32 16, %s16
        %p297 = scmp.lt.s32.totalorder %s296, 31
        %s298 = scalar_select %p297, %s296, 31
        %s299 = smul.addr %s298, 8
        %s300 = scalar_lea.vmem %s5, %s299
        %s301 = smul.u32 16, %s16
        %v303 = vld [vmem:[%s265] sm:$0xff]
        %v304 = vld [vmem:[%s265 + $0x8] sm:$0xff]
        %v305 = vld [vmem:[%s265 + $0x10] sm:$0xff]
        %v306 = vld [vmem:[%s265 + $0x18] sm:$0xff]
        %v307 = vld [vmem:[%s265 + $0x20] sm:$0xff]
        %v308 = vld [vmem:[%s265 + $0x28] sm:$0xff]
        %v309 = vld [vmem:[%s265 + $0x30] sm:$0xff]
        %v310 = vld [vmem:[%s265 + $0x38] sm:$0xff]
        %v311 = vunpack.c.0.s8 %v303
        %v312 = vunpack.c.1.s8 %v303
        %v313 = vunpack.c.2.s8 %v303
        %v314 = vunpack.c.3.s8 %v303
        %v315 = vunpack.c.0.s8 %v304
        %v316 = vunpack.c.1.s8 %v304
        %v317 = vunpack.c.2.s8 %v304
        %v318 = vunpack.c.3.s8 %v304
        %v319 = vunpack.c.0.s8 %v305
        %v320 = vunpack.c.1.s8 %v305
        %v321 = vunpack.c.2.s8 %v305
        %v322 = vunpack.c.3.s8 %v305
        %v323 = vunpack.c.0.s8 %v306
        %v324 = vunpack.c.1.s8 %v306
        %v325 = vunpack.c.2.s8 %v306
        %v326 = vunpack.c.3.s8 %v306
        %v327 = vunpack.c.0.s8 %v307
        %v328 = vunpack.c.1.s8 %v307
        %v329 = vunpack.c.2.s8 %v307
        %v330 = vunpack.c.3.s8 %v307
        %v331 = vunpack.c.0.s8 %v308
        %v332 = vunpack.c.1.s8 %v308
        %v333 = vunpack.c.2.s8 %v308
        %v334 = vunpack.c.3.s8 %v308
        %v335 = vunpack.c.0.s8 %v309
        %v336 = vunpack.c.1.s8 %v309
        %v337 = vunpack.c.2.s8 %v309
        %v338 = vunpack.c.3.s8 %v309
        %v339 = vunpack.c.0.s8 %v310
        %v340 = vunpack.c.1.s8 %v310
        %v341 = vunpack.c.2.s8 %v310
        %v342 = vunpack.c.3.s8 %v310
        %v343 = vcvt.s32.f32 %v311
        %v344 = vcvt.s32.f32 %v312
        %v345 = vcvt.s32.f32 %v313
        %v346 = vcvt.s32.f32 %v314
        %v347 = vcvt.s32.f32 %v315
        %v348 = vcvt.s32.f32 %v316
        %v349 = vcvt.s32.f32 %v317
        %v350 = vcvt.s32.f32 %v318
        %v351 = vcvt.s32.f32 %v319
        %v352 = vcvt.s32.f32 %v320
        %v353 = vcvt.s32.f32 %v321
        %v354 = vcvt.s32.f32 %v322
        %v355 = vcvt.s32.f32 %v323
        %v356 = vcvt.s32.f32 %v324
        %v357 = vcvt.s32.f32 %v325
        %v358 = vcvt.s32.f32 %v326
        %v359 = vcvt.s32.f32 %v327
        %v360 = vcvt.s32.f32 %v328
        %v361 = vcvt.s32.f32 %v329
        %v362 = vcvt.s32.f32 %v330
        %v363 = vcvt.s32.f32 %v331
        %v364 = vcvt.s32.f32 %v332
        %v365 = vcvt.s32.f32 %v333
        %v366 = vcvt.s32.f32 %v334
        %v367 = vcvt.s32.f32 %v335
        %v368 = vcvt.s32.f32 %v336
        %v369 = vcvt.s32.f32 %v337
        %v370 = vcvt.s32.f32 %v338
        %v371 = vcvt.s32.f32 %v339
        %v372 = vcvt.s32.f32 %v340
        %v373 = vcvt.s32.f32 %v341
        %v374 = vcvt.s32.f32 %v342
        %v375 = vsub.f32 %v343, 1.0
        %v376 = vsub.f32 %v344, 1.0
        %v377 = vsub.f32 %v345, 1.0
        %v378 = vsub.f32 %v346, 1.0
        %v379 = vsub.f32 %v347, 1.0
        %v380 = vsub.f32 %v348, 1.0
        %v381 = vsub.f32 %v349, 1.0
        %v382 = vsub.f32 %v350, 1.0
        %v383 = vsub.f32 %v351, 1.0
        %v384 = vsub.f32 %v352, 1.0
        %v385 = vsub.f32 %v353, 1.0
        %v386 = vsub.f32 %v354, 1.0
        %v387 = vsub.f32 %v355, 1.0
        %v388 = vsub.f32 %v356, 1.0
        %v389 = vsub.f32 %v357, 1.0
        %v390 = vsub.f32 %v358, 1.0
        %v391 = vsub.f32 %v359, 1.0
        %v392 = vsub.f32 %v360, 1.0
        %v393 = vsub.f32 %v361, 1.0
        %v394 = vsub.f32 %v362, 1.0
        %v395 = vsub.f32 %v363, 1.0
        %v396 = vsub.f32 %v364, 1.0
        %v397 = vsub.f32 %v365, 1.0
        %v398 = vsub.f32 %v366, 1.0
        %v399 = vsub.f32 %v367, 1.0
        %v400 = vsub.f32 %v368, 1.0
        %v401 = vsub.f32 %v369, 1.0
        %v402 = vsub.f32 %v370, 1.0
        %v403 = vsub.f32 %v371, 1.0
        %v404 = vsub.f32 %v372, 1.0
        %v405 = vsub.f32 %v373, 1.0
        %v406 = vsub.f32 %v374, 1.0
        %v407 = vmul.f32 %v375, 1e+09
        %v408 = vmul.f32 %v376, 1e+09
        %v409 = vmul.f32 %v377, 1e+09
        %v410 = vmul.f32 %v378, 1e+09
        %v411 = vmul.f32 %v379, 1e+09
        %v412 = vmul.f32 %v380, 1e+09
        %v413 = vmul.f32 %v381, 1e+09
        %v414 = vmul.f32 %v382, 1e+09
        %v415 = vmul.f32 %v383, 1e+09
        %v416 = vmul.f32 %v384, 1e+09
        %v417 = vmul.f32 %v385, 1e+09
        %v418 = vmul.f32 %v386, 1e+09
        %v419 = vmul.f32 %v387, 1e+09
        %v420 = vmul.f32 %v388, 1e+09
        %v421 = vmul.f32 %v389, 1e+09
        %v422 = vmul.f32 %v390, 1e+09
        %v423 = vmul.f32 %v391, 1e+09
        %v424 = vmul.f32 %v392, 1e+09
        %v425 = vmul.f32 %v393, 1e+09
        %v426 = vmul.f32 %v394, 1e+09
        %v427 = vmul.f32 %v395, 1e+09
        %v428 = vmul.f32 %v396, 1e+09
        %v429 = vmul.f32 %v397, 1e+09
        %v430 = vmul.f32 %v398, 1e+09
        %v431 = vmul.f32 %v399, 1e+09
        %v432 = vmul.f32 %v400, 1e+09
        %v433 = vmul.f32 %v401, 1e+09
        %v434 = vmul.f32 %v402, 1e+09
        %v435 = vmul.f32 %v403, 1e+09
        %v436 = vmul.f32 %v404, 1e+09
        %v437 = vmul.f32 %v405, 1e+09
        %v438 = vmul.f32 %v406, 1e+09
        %439 = vst [vmem:[#allocation2] sm:$0xff] 0.0
        %440 = vst [vmem:[#allocation2 + $0x8] sm:$0xff] 0.0
        %441 = vst [vmem:[#allocation2 + $0x10] sm:$0xff] 0.0
        %442 = vst [vmem:[#allocation2 + $0x18] sm:$0xff] 0.0
        %443 = vst [vmem:[#allocation2 + $0x20] sm:$0xff] 0.0
        %444 = vst [vmem:[#allocation2 + $0x28] sm:$0xff] 0.0
        %445 = vst [vmem:[#allocation2 + $0x30] sm:$0xff] 0.0
        %446 = vst [vmem:[#allocation2 + $0x38] sm:$0xff] 0.0
        %447 = vst [vmem:[#allocation2 + $0x40] sm:$0xff] 0.0
        %448 = vst [vmem:[#allocation2 + $0x48] sm:$0xff] 0.0
        %449 = vst [vmem:[#allocation2 + $0x50] sm:$0xff] 0.0
        %450 = vst [vmem:[#allocation2 + $0x58] sm:$0xff] 0.0
        %451 = vst [vmem:[#allocation2 + $0x60] sm:$0xff] 0.0
        %452 = vst [vmem:[#allocation2 + $0x68] sm:$0xff] 0.0
        %453 = vst [vmem:[#allocation2 + $0x70] sm:$0xff] 0.0
        %454 = vst [vmem:[#allocation2 + $0x78] sm:$0xff] 0.0
        %v455 = vld [vmem:[%s1] sm:$0xff]
        %v456 = vld [vmem:[%s1 + $0x8] sm:$0xff]
        %v457 = vld [vmem:[%s1 + $0x10] sm:$0xff]
        %v458 = vld [vmem:[%s1 + $0x18] sm:$0xff]
        %v459 = vld [vmem:[%s1 + $0x20] sm:$0xff]
        %v460 = vld [vmem:[%s1 + $0x28] sm:$0xff]
        %v461 = vld [vmem:[%s1 + $0x30] sm:$0xff]
        %v462 = vld [vmem:[%s1 + $0x38] sm:$0xff]
        %v463 = vld [vmem:[%s1 + $0x40] sm:$0xff]
        %v464 = vld [vmem:[%s1 + $0x48] sm:$0xff]
        %v465 = vld [vmem:[%s1 + $0x50] sm:$0xff]
        %v466 = vld [vmem:[%s1 + $0x58] sm:$0xff]
        %v467 = vld [vmem:[%s1 + $0x60] sm:$0xff]
        %v468 = vld [vmem:[%s1 + $0x68] sm:$0xff]
        %v469 = vld [vmem:[%s1 + $0x70] sm:$0xff]
        %v470 = vld [vmem:[%s1 + $0x78] sm:$0xff]
        %v471 = vld [vmem:[%s1 + $0x80] sm:$0xff]
        %v472 = vld [vmem:[%s1 + $0x88] sm:$0xff]
        %v473 = vld [vmem:[%s1 + $0x90] sm:$0xff]
        %v474 = vld [vmem:[%s1 + $0x98] sm:$0xff]
        %v475 = vld [vmem:[%s1 + $0xa0] sm:$0xff]
        %v476 = vld [vmem:[%s1 + $0xa8] sm:$0xff]
        %v477 = vld [vmem:[%s1 + $0xb0] sm:$0xff]
        %v478 = vld [vmem:[%s1 + $0xb8] sm:$0xff]
        %v479 = vld [vmem:[%s1 + $0xc0] sm:$0xff]
        %v480 = vld [vmem:[%s1 + $0xc8] sm:$0xff]
        %v481 = vld [vmem:[%s1 + $0xd0] sm:$0xff]
        %v482 = vld [vmem:[%s1 + $0xd8] sm:$0xff]
        %v483 = vld [vmem:[%s1 + $0xe0] sm:$0xff]
        %v484 = vld [vmem:[%s1 + $0xe8] sm:$0xff]
        %v485 = vld [vmem:[%s1 + $0xf0] sm:$0xff]
        %v486 = vld [vmem:[%s1 + $0xf8] sm:$0xff]
        %v487 = vld [vmem:[%s295] sm:$0x1]
        %v488 = vld [vmem:[%s0] sm:$0xff]
        %490 = vset.pattern.permute.xlu0 0
        %491 = vperm.xlu0 %490, %v455
        %v492 = vpop.permute.xlu0 %491
        %495 = vset.pattern.permute.xlu0 0
        %496 = vperm.xlu0 %495, %v456
        %v497 = vpop.permute.xlu0 %496
        %500 = vset.pattern.permute.xlu0 0
        %501 = vperm.xlu0 %500, %v457
        %v502 = vpop.permute.xlu0 %501
        %505 = vset.pattern.permute.xlu0 0
        %506 = vperm.xlu0 %505, %v458
        %v507 = vpop.permute.xlu0 %506
        %510 = vset.pattern.permute.xlu0 0
        %511 = vperm.xlu0 %510, %v459
        %v512 = vpop.permute.xlu0 %511
        %515 = vset.pattern.permute.xlu0 0
        %516 = vperm.xlu0 %515, %v460
        %v517 = vpop.permute.xlu0 %516
        %520 = vset.pattern.permute.xlu0 0
        %521 = vperm.xlu0 %520, %v461
        %v522 = vpop.permute.xlu0 %521
        %525 = vset.pattern.permute.xlu0 0
        %526 = vperm.xlu0 %525, %v462
        %v527 = vpop.permute.xlu0 %526
        %530 = vset.pattern.permute.xlu0 0
        %531 = vperm.xlu0 %530, %v463
        %v532 = vpop.permute.xlu0 %531
        %535 = vset.pattern.permute.xlu0 0
        %536 = vperm.xlu0 %535, %v464
        %v537 = vpop.permute.xlu0 %536
        %540 = vset.pattern.permute.xlu0 0
        %541 = vperm.xlu0 %540, %v465
        %v542 = vpop.permute.xlu0 %541
        %545 = vset.pattern.permute.xlu0 0
        %546 = vperm.xlu0 %545, %v466
        %v547 = vpop.permute.xlu0 %546
        %550 = vset.pattern.permute.xlu0 0
        %551 = vperm.xlu0 %550, %v467
        %v552 = vpop.permute.xlu0 %551
        %555 = vset.pattern.permute.xlu0 0
        %556 = vperm.xlu0 %555, %v468
        %v557 = vpop.permute.xlu0 %556
        %560 = vset.pattern.permute.xlu0 0
        %561 = vperm.xlu0 %560, %v469
        %v562 = vpop.permute.xlu0 %561
        %565 = vset.pattern.permute.xlu0 0
        %566 = vperm.xlu0 %565, %v470
        %v567 = vpop.permute.xlu0 %566
        %570 = vset.pattern.permute.xlu0 0
        %571 = vperm.xlu0 %570, %v471
        %v572 = vpop.permute.xlu0 %571
        %575 = vset.pattern.permute.xlu0 0
        %576 = vperm.xlu0 %575, %v472
        %v577 = vpop.permute.xlu0 %576
        %580 = vset.pattern.permute.xlu0 0
        %581 = vperm.xlu0 %580, %v473
        %v582 = vpop.permute.xlu0 %581
        %585 = vset.pattern.permute.xlu0 0
        %586 = vperm.xlu0 %585, %v474
        %v587 = vpop.permute.xlu0 %586
        %590 = vset.pattern.permute.xlu0 0
        %591 = vperm.xlu0 %590, %v475
        %v592 = vpop.permute.xlu0 %591
        %595 = vset.pattern.permute.xlu0 0
        %596 = vperm.xlu0 %595, %v476
        %v597 = vpop.permute.xlu0 %596
        %600 = vset.pattern.permute.xlu0 0
        %601 = vperm.xlu0 %600, %v477
        %v602 = vpop.permute.xlu0 %601
        %605 = vset.pattern.permute.xlu0 0
        %606 = vperm.xlu0 %605, %v478
        %v607 = vpop.permute.xlu0 %606
        %610 = vset.pattern.permute.xlu0 0
        %611 = vperm.xlu0 %610, %v479
        %v612 = vpop.permute.xlu0 %611
        %615 = vset.pattern.permute.xlu0 0
        %616 = vperm.xlu0 %615, %v480
        %v617 = vpop.permute.xlu0 %616
        %620 = vset.pattern.permute.xlu0 0
        %621 = vperm.xlu0 %620, %v481
        %v622 = vpop.permute.xlu0 %621
        %625 = vset.pattern.permute.xlu0 0
        %626 = vperm.xlu0 %625, %v482
        %v627 = vpop.permute.xlu0 %626
        %630 = vset.pattern.permute.xlu0 0
        %631 = vperm.xlu0 %630, %v483
        %v632 = vpop.permute.xlu0 %631
        %635 = vset.pattern.permute.xlu0 0
        %636 = vperm.xlu0 %635, %v484
        %v637 = vpop.permute.xlu0 %636
        %640 = vset.pattern.permute.xlu0 0
        %641 = vperm.xlu0 %640, %v485
        %v642 = vpop.permute.xlu0 %641
        %645 = vset.pattern.permute.xlu0 0
        %646 = vperm.xlu0 %645, %v486
        %v647 = vpop.permute.xlu0 %646
        %v650 = vlaneseq
        %v651 = vshrl.u32 %v650, 7
        %v652 = vsub.s32 0, %v651
        %v653 = vrot.slane %v487, %v652
        %v655 = vadd.f32 %v492, %v653
        %v656 = vadd.f32 %v497, %v653
        %v657 = vadd.f32 %v502, %v653
        %v658 = vadd.f32 %v507, %v653
        %v659 = vadd.f32 %v512, %v653
        %v660 = vadd.f32 %v517, %v653
        %v661 = vadd.f32 %v522, %v653
        %v662 = vadd.f32 %v527, %v653
        %v663 = vadd.f32 %v532, %v653
        %v664 = vadd.f32 %v537, %v653
        %v665 = vadd.f32 %v542, %v653
        %v666 = vadd.f32 %v547, %v653
        %v667 = vadd.f32 %v552, %v653
        %v668 = vadd.f32 %v557, %v653
        %v669 = vadd.f32 %v562, %v653
        %v670 = vadd.f32 %v567, %v653
        %v671 = vadd.f32 %v572, %v653
        %v672 = vadd.f32 %v577, %v653
        %v673 = vadd.f32 %v582, %v653
        %v674 = vadd.f32 %v587, %v653
        %v675 = vadd.f32 %v592, %v653
        %v676 = vadd.f32 %v597, %v653
        %v677 = vadd.f32 %v602, %v653
        %v678 = vadd.f32 %v607, %v653
        %v679 = vadd.f32 %v612, %v653
        %v680 = vadd.f32 %v617, %v653
        %v681 = vadd.f32 %v622, %v653
        %v682 = vadd.f32 %v627, %v653
        %v683 = vadd.f32 %v632, %v653
        %v684 = vadd.f32 %v637, %v653
        %v685 = vadd.f32 %v642, %v653
        %v686 = vadd.f32 %v647, %v653
        %vm687 = vcmp.gt.f32.partialorder %v655, 0.0
        %vm688 = vcmp.gt.f32.partialorder %v656, 0.0
        %vm689 = vcmp.gt.f32.partialorder %v657, 0.0
        %vm690 = vcmp.gt.f32.partialorder %v658, 0.0
        %vm691 = vcmp.gt.f32.partialorder %v659, 0.0
        %vm692 = vcmp.gt.f32.partialorder %v660, 0.0
        %vm693 = vcmp.gt.f32.partialorder %v661, 0.0
        %vm694 = vcmp.gt.f32.partialorder %v662, 0.0
        %vm695 = vcmp.gt.f32.partialorder %v663, 0.0
        %vm696 = vcmp.gt.f32.partialorder %v664, 0.0
        %vm697 = vcmp.gt.f32.partialorder %v665, 0.0
        %vm698 = vcmp.gt.f32.partialorder %v666, 0.0
        %vm699 = vcmp.gt.f32.partialorder %v667, 0.0
        %vm700 = vcmp.gt.f32.partialorder %v668, 0.0
        %vm701 = vcmp.gt.f32.partialorder %v669, 0.0
        %vm702 = vcmp.gt.f32.partialorder %v670, 0.0
        %vm703 = vcmp.gt.f32.partialorder %v671, 0.0
        %vm704 = vcmp.gt.f32.partialorder %v672, 0.0
        %vm705 = vcmp.gt.f32.partialorder %v673, 0.0
        %vm706 = vcmp.gt.f32.partialorder %v674, 0.0
        %vm707 = vcmp.gt.f32.partialorder %v675, 0.0
        %vm708 = vcmp.gt.f32.partialorder %v676, 0.0
        %vm709 = vcmp.gt.f32.partialorder %v677, 0.0
        %vm710 = vcmp.gt.f32.partialorder %v678, 0.0
        %vm711 = vcmp.gt.f32.partialorder %v679, 0.0
        %vm712 = vcmp.gt.f32.partialorder %v680, 0.0
        %vm713 = vcmp.gt.f32.partialorder %v681, 0.0
        %vm714 = vcmp.gt.f32.partialorder %v682, 0.0
        %vm715 = vcmp.gt.f32.partialorder %v683, 0.0
        %vm716 = vcmp.gt.f32.partialorder %v684, 0.0
        %vm717 = vcmp.gt.f32.partialorder %v685, 0.0
        %vm718 = vcmp.gt.f32.partialorder %v686, 0.0
        %v719 = vmul.f32 %v655, 0.2
        %v720 = vmul.f32 %v656, 0.2
        %v721 = vmul.f32 %v657, 0.2
        %v722 = vmul.f32 %v658, 0.2
        %v723 = vmul.f32 %v659, 0.2
        %v724 = vmul.f32 %v660, 0.2
        %v725 = vmul.f32 %v661, 0.2
        %v726 = vmul.f32 %v662, 0.2
        %v727 = vmul.f32 %v663, 0.2
        %v728 = vmul.f32 %v664, 0.2
        %v729 = vmul.f32 %v665, 0.2
        %v730 = vmul.f32 %v666, 0.2
        %v731 = vmul.f32 %v667, 0.2
        %v732 = vmul.f32 %v668, 0.2
        %v733 = vmul.f32 %v669, 0.2
        %v734 = vmul.f32 %v670, 0.2
        %v735 = vmul.f32 %v671, 0.2
        %v736 = vmul.f32 %v672, 0.2
        %v737 = vmul.f32 %v673, 0.2
        %v738 = vmul.f32 %v674, 0.2
        %v739 = vmul.f32 %v675, 0.2
        %v740 = vmul.f32 %v676, 0.2
        %v741 = vmul.f32 %v677, 0.2
        %v742 = vmul.f32 %v678, 0.2
        %v743 = vmul.f32 %v679, 0.2
        %v744 = vmul.f32 %v680, 0.2
        %v745 = vmul.f32 %v681, 0.2
        %v746 = vmul.f32 %v682, 0.2
        %v747 = vmul.f32 %v683, 0.2
        %v748 = vmul.f32 %v684, 0.2
        %v749 = vmul.f32 %v685, 0.2
        %v750 = vmul.f32 %v686, 0.2
        %v751 = vsel %vm687, %v655, %v719
        %v752 = vsel %vm688, %v656, %v720
        %v753 = vsel %vm689, %v657, %v721
        %v754 = vsel %vm690, %v658, %v722
        %v755 = vsel %vm691, %v659, %v723
        %v756 = vsel %vm692, %v660, %v724
        %v757 = vsel %vm693, %v661, %v725
        %v758 = vsel %vm694, %v662, %v726
        %v759 = vsel %vm695, %v663, %v727
        %v760 = vsel %vm696, %v664, %v728
        %v761 = vsel %vm697, %v665, %v729
        %v762 = vsel %vm698, %v666, %v730
        %v763 = vsel %vm699, %v667, %v731
        %v764 = vsel %vm700, %v668, %v732
        %v765 = vsel %vm701, %v669, %v733
        %v766 = vsel %vm702, %v670, %v734
        %v767 = vsel %vm703, %v671, %v735
        %v768 = vsel %vm704, %v672, %v736
        %v769 = vsel %vm705, %v673, %v737
        %v770 = vsel %vm706, %v674, %v738
        %v771 = vsel %vm707, %v675, %v739
        %v772 = vsel %vm708, %v676, %v740
        %v773 = vsel %vm709, %v677, %v741
        %v774 = vsel %vm710, %v678, %v742
        %v775 = vsel %vm711, %v679, %v743
        %v776 = vsel %vm712, %v680, %v744
        %v777 = vsel %vm713, %v681, %v745
        %v778 = vsel %vm714, %v682, %v746
        %v779 = vsel %vm715, %v683, %v747
        %v780 = vsel %vm716, %v684, %v748
        %v781 = vsel %vm717, %v685, %v749
        %v782 = vsel %vm718, %v686, %v750
        %v783 = vadd.f32 %v751, %v407
        %v784 = vadd.f32 %v752, %v408
        %v785 = vadd.f32 %v753, %v409
        %v786 = vadd.f32 %v754, %v410
        %v787 = vadd.f32 %v755, %v411
        %v788 = vadd.f32 %v756, %v412
        %v789 = vadd.f32 %v757, %v413
        %v790 = vadd.f32 %v758, %v414
        %v791 = vadd.f32 %v759, %v415
        %v792 = vadd.f32 %v760, %v416
        %v793 = vadd.f32 %v761, %v417
        %v794 = vadd.f32 %v762, %v418
        %v795 = vadd.f32 %v763, %v419
        %v796 = vadd.f32 %v764, %v420
        %v797 = vadd.f32 %v765, %v421
        %v798 = vadd.f32 %v766, %v422
        %v799 = vadd.f32 %v767, %v423
        %v800 = vadd.f32 %v768, %v424
        %v801 = vadd.f32 %v769, %v425
        %v802 = vadd.f32 %v770, %v426
        %v803 = vadd.f32 %v771, %v427
        %v804 = vadd.f32 %v772, %v428
        %v805 = vadd.f32 %v773, %v429
        %v806 = vadd.f32 %v774, %v430
        %v807 = vadd.f32 %v775, %v431
        %v808 = vadd.f32 %v776, %v432
        %v809 = vadd.f32 %v777, %v433
        %v810 = vadd.f32 %v778, %v434
        %v811 = vadd.f32 %v779, %v435
        %v812 = vadd.f32 %v780, %v436
        %v813 = vadd.f32 %v781, %v437
        %v814 = vadd.f32 %v782, %v438
        %v815 = vmax.f32 %v783, %v787
        %v816 = vmax.f32 %v784, %v788
        %v817 = vmax.f32 %v785, %v789
        %v818 = vmax.f32 %v786, %v790
        %v819 = vmax.f32 %v815, %v791
        %v820 = vmax.f32 %v816, %v792
        %v821 = vmax.f32 %v817, %v793
        %v822 = vmax.f32 %v818, %v794
        %v823 = vmax.f32 %v819, %v795
        %v824 = vmax.f32 %v820, %v796
        %v825 = vmax.f32 %v821, %v797
        %v826 = vmax.f32 %v822, %v798
        %v827 = vmax.f32 %v823, %v799
        %v828 = vmax.f32 %v824, %v800
        %v829 = vmax.f32 %v825, %v801
        %v830 = vmax.f32 %v826, %v802
        %v831 = vmax.f32 %v827, %v803
        %v832 = vmax.f32 %v828, %v804
        %v833 = vmax.f32 %v829, %v805
        %v834 = vmax.f32 %v830, %v806
        %v835 = vmax.f32 %v831, %v807
        %v836 = vmax.f32 %v832, %v808
        %v837 = vmax.f32 %v833, %v809
        %v838 = vmax.f32 %v834, %v810
        %v839 = vmax.f32 %v835, %v811
        %v840 = vmax.f32 %v836, %v812
        %v841 = vmax.f32 %v837, %v813
        %v842 = vmax.f32 %v838, %v814
        %v843 = vmax.f32 %v839, %v840
        %v844 = vmax.f32 %v841, %v842
        %v845 = vmax.f32 %v843, %v844
        %v846 = vrot.slane %v845, 4
        %v847 = vmax.f32 %v845, %v846
        %v848 = vrot.slane %v847, 2
        %v849 = vmax.f32 %v847, %v848
        %v850 = vrot.slane %v849, 1
        %v851 = vmax.f32 %v849, %v850
        %v852 = vsub.f32 %v783, %v851
        %v853 = vsub.f32 %v784, %v851
        %v854 = vsub.f32 %v785, %v851
        %v855 = vsub.f32 %v786, %v851
        %v856 = vsub.f32 %v787, %v851
        %v857 = vsub.f32 %v788, %v851
        %v858 = vsub.f32 %v789, %v851
        %v859 = vsub.f32 %v790, %v851
        %v860 = vsub.f32 %v791, %v851
        %v861 = vsub.f32 %v792, %v851
        %v862 = vsub.f32 %v793, %v851
        %v863 = vsub.f32 %v794, %v851
        %v864 = vsub.f32 %v795, %v851
        %v865 = vsub.f32 %v796, %v851
        %v866 = vsub.f32 %v797, %v851
        %v867 = vsub.f32 %v798, %v851
        %v868 = vsub.f32 %v799, %v851
        %v869 = vsub.f32 %v800, %v851
        %v870 = vsub.f32 %v801, %v851
        %v871 = vsub.f32 %v802, %v851
        %v872 = vsub.f32 %v803, %v851
        %v873 = vsub.f32 %v804, %v851
        %v874 = vsub.f32 %v805, %v851
        %v875 = vsub.f32 %v806, %v851
        %v876 = vsub.f32 %v807, %v851
        %v877 = vsub.f32 %v808, %v851
        %v878 = vsub.f32 %v809, %v851
        %v879 = vsub.f32 %v810, %v851
        %v880 = vsub.f32 %v811, %v851
        %v881 = vsub.f32 %v812, %v851
        %v882 = vsub.f32 %v813, %v851
        %v883 = vsub.f32 %v814, %v851
        %v884 = vmul.f32 %v852, 1.442695
        %v885 = vpow.pop %v884
        %v886 = vmul.f32 %v853, 1.442695
        %v887 = vpow.pop %v886
        %v888 = vmul.f32 %v854, 1.442695
        %v889 = vpow.pop %v888
        %v890 = vmul.f32 %v855, 1.442695
        %v891 = vpow.pop %v890
        %v892 = vmul.f32 %v856, 1.442695
        %v893 = vpow.pop %v892
        %v894 = vmul.f32 %v857, 1.442695
        %v895 = vpow.pop %v894
        %v896 = vmul.f32 %v858, 1.442695
        %v897 = vpow.pop %v896
        %v898 = vmul.f32 %v859, 1.442695
        %v899 = vpow.pop %v898
        %v900 = vmul.f32 %v860, 1.442695
        %v901 = vpow.pop %v900
        %v902 = vmul.f32 %v861, 1.442695
        %v903 = vpow.pop %v902
        %v904 = vmul.f32 %v862, 1.442695
        %v905 = vpow.pop %v904
        %v906 = vmul.f32 %v863, 1.442695
        %v907 = vpow.pop %v906
        %v908 = vmul.f32 %v864, 1.442695
        %v909 = vpow.pop %v908
        %v910 = vmul.f32 %v865, 1.442695
        %v911 = vpow.pop %v910
        %v912 = vmul.f32 %v866, 1.442695
        %v913 = vpow.pop %v912
        %v914 = vmul.f32 %v867, 1.442695
        %v915 = vpow.pop %v914
        %v916 = vmul.f32 %v868, 1.442695
        %v917 = vpow.pop %v916
        %v918 = vmul.f32 %v869, 1.442695
        %v919 = vpow.pop %v918
        %v920 = vmul.f32 %v870, 1.442695
        %v921 = vpow.pop %v920
        %v922 = vmul.f32 %v871, 1.442695
        %v923 = vpow.pop %v922
        %v924 = vmul.f32 %v872, 1.442695
        %v925 = vpow.pop %v924
        %v926 = vmul.f32 %v873, 1.442695
        %v927 = vpow.pop %v926
        %v928 = vmul.f32 %v874, 1.442695
        %v929 = vpow.pop %v928
        %v930 = vmul.f32 %v875, 1.442695
        %v931 = vpow.pop %v930
        %v932 = vmul.f32 %v876, 1.442695
        %v933 = vpow.pop %v932
        %v934 = vmul.f32 %v877, 1.442695
        %v935 = vpow.pop %v934
        %v936 = vmul.f32 %v878, 1.442695
        %v937 = vpow.pop %v936
        %v938 = vmul.f32 %v879, 1.442695
        %v939 = vpow.pop %v938
        %v940 = vmul.f32 %v880, 1.442695
        %v941 = vpow.pop %v940
        %v942 = vmul.f32 %v881, 1.442695
        %v943 = vpow.pop %v942
        %v944 = vmul.f32 %v882, 1.442695
        %v945 = vpow.pop %v944
        %v946 = vmul.f32 %v883, 1.442695
        %v947 = vpow.pop %v946
        %v948 = vadd.f32 %v885, %v887
        %v949 = vadd.f32 %v948, %v889
        %v950 = vadd.f32 %v949, %v891
        %v951 = vadd.f32 %v950, %v893
        %v952 = vadd.f32 %v951, %v895
        %v953 = vadd.f32 %v952, %v897
        %v954 = vadd.f32 %v953, %v899
        %v955 = vadd.f32 %v954, %v901
        %v956 = vadd.f32 %v955, %v903
        %v957 = vadd.f32 %v956, %v905
        %v958 = vadd.f32 %v957, %v907
        %v959 = vadd.f32 %v958, %v909
        %v960 = vadd.f32 %v959, %v911
        %v961 = vadd.f32 %v960, %v913
        %v962 = vadd.f32 %v961, %v915
        %v963 = vadd.f32 %v962, %v917
        %v964 = vadd.f32 %v963, %v919
        %v965 = vadd.f32 %v964, %v921
        %v966 = vadd.f32 %v965, %v923
        %v967 = vadd.f32 %v966, %v925
        %v968 = vadd.f32 %v967, %v927
        %v969 = vadd.f32 %v968, %v929
        %v970 = vadd.f32 %v969, %v931
        %v971 = vadd.f32 %v970, %v933
        %v972 = vadd.f32 %v971, %v935
        %v973 = vadd.f32 %v972, %v937
        %v974 = vadd.f32 %v973, %v939
        %v975 = vadd.f32 %v974, %v941
        %v976 = vadd.f32 %v975, %v943
        %v977 = vadd.f32 %v976, %v945
        %v978 = vadd.f32 %v977, %v947
        %v979 = vrot.slane %v978, 4
        %v980 = vadd.f32 %v978, %v979
        %v981 = vrot.slane %v980, 2
        %v982 = vadd.f32 %v980, %v981
        %v983 = vrot.slane %v982, 1
        %v984 = vadd.f32 %v982, %v983
        %v985 = vrcp.pop %v984
        %v986 = vmul.f32 %v885, %v985
        %v987 = vmul.f32 %v887, %v985
        %v988 = vmul.f32 %v889, %v985
        %v989 = vmul.f32 %v891, %v985
        %v990 = vmul.f32 %v893, %v985
        %v991 = vmul.f32 %v895, %v985
        %v992 = vmul.f32 %v897, %v985
        %v993 = vmul.f32 %v899, %v985
        %v994 = vmul.f32 %v901, %v985
        %v995 = vmul.f32 %v903, %v985
        %v996 = vmul.f32 %v905, %v985
        %v997 = vmul.f32 %v907, %v985
        %v998 = vmul.f32 %v909, %v985
        %v999 = vmul.f32 %v911, %v985
        %v1000 = vmul.f32 %v913, %v985
        %v1001 = vmul.f32 %v915, %v985
        %v1002 = vmul.f32 %v917, %v985
        %v1003 = vmul.f32 %v919, %v985
        %v1004 = vmul.f32 %v921, %v985
        %v1005 = vmul.f32 %v923, %v985
        %v1006 = vmul.f32 %v925, %v985
        %v1007 = vmul.f32 %v927, %v985
        %v1008 = vmul.f32 %v929, %v985
        %v1009 = vmul.f32 %v931, %v985
        %v1010 = vmul.f32 %v933, %v985
        %v1011 = vmul.f32 %v935, %v985
        %v1012 = vmul.f32 %v937, %v985
        %v1013 = vmul.f32 %v939, %v985
        %v1014 = vmul.f32 %v941, %v985
        %v1015 = vmul.f32 %v943, %v985
        %v1016 = vmul.f32 %v945, %v985
        %v1017 = vmul.f32 %v947, %v985
        %v1018 = vpack.c.bf16 %v987, %v986
        %v1019 = vpack.c.bf16 %v989, %v988
        %v1020 = vpack.c.bf16 %v991, %v990
        %v1021 = vpack.c.bf16 %v993, %v992
        %v1022 = vpack.c.bf16 %v995, %v994
        %v1023 = vpack.c.bf16 %v997, %v996
        %v1024 = vpack.c.bf16 %v999, %v998
        %v1025 = vpack.c.bf16 %v1001, %v1000
        %v1026 = vpack.c.bf16 %v1003, %v1002
        %v1027 = vpack.c.bf16 %v1005, %v1004
        %v1028 = vpack.c.bf16 %v1007, %v1006
        %v1029 = vpack.c.bf16 %v1009, %v1008
        %v1030 = vpack.c.bf16 %v1011, %v1010
        %v1031 = vpack.c.bf16 %v1013, %v1012
        %v1032 = vpack.c.bf16 %v1015, %v1014
        %v1033 = vpack.c.bf16 %v1017, %v1016
        %v1035 = vunpack.c.l.b16 %v488
        %v1036 = vunpack.c.h.b16 %v488
        %v1037 = vpack.c.b16 %v1035, %v1035
        %v1038 = vpack.c.b16 %v1036, %v1036
        %1041 = vmatprep.subr.bf16.mxu0 0
        %1042 = vmatpush1.bf16.msra.mxu0 %v1018
        %1043 = vmatprep.subr.bf16.mxu0 0
        %1044 = vmatpush1.bf16.msra.mxu0 %v1019
        %1045 = vmatprep.subr.bf16.mxu0 0
        %1046 = vmatpush1.bf16.msra.mxu0 %v1020
        %1047 = vmatprep.subr.bf16.mxu0 0
        %1048 = vmatpush1.bf16.msra.mxu0 %v1021
        %1049 = vmatprep.subr.bf16.mxu0 0
        %1050 = vmatpush1.bf16.msra.mxu0 %v1022
        %1051 = vmatprep.subr.bf16.mxu0 0
        %1052 = vmatpush1.bf16.msra.mxu0 %v1023
        %1053 = vmatprep.subr.bf16.mxu0 0
        %1054 = vmatpush1.bf16.msra.mxu0 %v1024
        %1055 = vmatprep.subr.bf16.mxu0 0
        %1056 = vmatpush1.bf16.msra.mxu0 %v1025
        %1057 = vmatprep.subr.bf16.mxu0 0
        %1058 = vmatpush1.bf16.msra.mxu0 %v1026
        %1059 = vmatprep.subr.bf16.mxu0 0
        %1060 = vmatpush1.bf16.msra.mxu0 %v1027
        %1061 = vmatprep.subr.bf16.mxu0 0
        %1062 = vmatpush1.bf16.msra.mxu0 %v1028
        %1063 = vmatprep.subr.bf16.mxu0 0
        %1064 = vmatpush1.bf16.msra.mxu0 %v1029
        %1065 = vmatprep.subr.bf16.mxu0 0
        %1066 = vmatpush1.bf16.msra.mxu0 %v1030
        %1067 = vmatprep.subr.bf16.mxu0 0
        %1068 = vmatpush1.bf16.msra.mxu0 %v1031
        %1069 = vmatprep.subr.bf16.mxu0 0
        %1070 = vmatpush1.bf16.msra.mxu0 %v1032
        %1071 = vmatprep.subr.bf16.mxu0 0
        %1072 = vmatpush1.bf16.msra.mxu0 %v1033
        %1073 = vmatprep.mubr.bf16.mxu0 %v1038
        %1074 = vmatmul.mubr.bf16.gmra.mrb[0].mxu0 %v1037
        %v1075 = vpop.f32.mrb[0].mxu0
        %v1076 = vadd.f32 0.0, %v1075
        %v1077 = vpop.f32.mrb[0].mxu0
        %v1078 = vpop.f32.mrb[0].mxu0
        %v1079 = vpop.f32.mrb[0].mxu0
        %1080 = vdwg.mxu0
        %1081 = vst [vmem:[#allocation2] sm:$0xff] %v1076
        %v1082 = vld [vmem:[#allocation2] sm:$0xff]
        %v1083 = vld [vmem:[#allocation2 + $0x8] sm:$0xff]
        %v1084 = vld [vmem:[#allocation2 + $0x10] sm:$0xff]
        %v1085 = vld [vmem:[#allocation2 + $0x18] sm:$0xff]
        %v1086 = vld [vmem:[#allocation2 + $0x20] sm:$0xff]
        %v1087 = vld [vmem:[#allocation2 + $0x28] sm:$0xff]
        %v1088 = vld [vmem:[#allocation2 + $0x30] sm:$0xff]
        %v1089 = vld [vmem:[#allocation2 + $0x38] sm:$0xff]
        %v1090 = vld [vmem:[#allocation2 + $0x40] sm:$0xff]
        %v1091 = vld [vmem:[#allocation2 + $0x48] sm:$0xff]
        %v1092 = vld [vmem:[#allocation2 + $0x50] sm:$0xff]
        %v1093 = vld [vmem:[#allocation2 + $0x58] sm:$0xff]
        %v1094 = vld [vmem:[#allocation2 + $0x60] sm:$0xff]
        %v1095 = vld [vmem:[#allocation2 + $0x68] sm:$0xff]
        %v1096 = vld [vmem:[#allocation2 + $0x70] sm:$0xff]
        %v1097 = vld [vmem:[#allocation2 + $0x78] sm:$0xff]
        %1098 = vxpose.xlu0.b32.start [1/16] %v1082, 128
        %1099 = vxpose.xlu0.b32.cont [2/16] %v1083, 128
        %1100 = vxpose.xlu0.b32.cont [3/16] %v1084, 128
        %1101 = vxpose.xlu0.b32.cont [4/16] %v1085, 128
        %1102 = vxpose.xlu0.b32.cont [5/16] %v1086, 128
        %1103 = vxpose.xlu0.b32.cont [6/16] %v1087, 128
        %1104 = vxpose.xlu0.b32.cont [7/16] %v1088, 128
        %1105 = vxpose.xlu0.b32.cont [8/16] %v1089, 128
        %1106 = vxpose.xlu0.b32.cont [9/16] %v1090, 128
        %1107 = vxpose.xlu0.b32.cont [10/16] %v1091, 128
        %1108 = vxpose.xlu0.b32.cont [11/16] %v1092, 128
        %1109 = vxpose.xlu0.b32.cont [12/16] %v1093, 128
        %1110 = vxpose.xlu0.b32.cont [13/16] %v1094, 128
        %1111 = vxpose.xlu0.b32.cont [14/16] %v1095, 128
        %1112 = vxpose.xlu0.b32.cont [15/16] %v1096, 128
        %1113 = vxpose.xlu0.b32.end [16/16] %v1097, 128
        %v1114 = vpop.trf.xlu0
        %v1115 = vpop.trf.xlu0
        %v1116 = vpop.trf.xlu0
        %v1117 = vpop.trf.xlu0
        %v1118 = vpop.trf.xlu0
        %v1119 = vpop.trf.xlu0
        %v1120 = vpop.trf.xlu0
        %v1121 = vpop.trf.xlu0
        %v1122 = vpop.trf.xlu0
        %v1123 = vpop.trf.xlu0
        %v1124 = vpop.trf.xlu0
        %v1125 = vpop.trf.xlu0
        %v1126 = vpop.trf.xlu0
        %v1127 = vpop.trf.xlu0
        %v1128 = vpop.trf.xlu0
        %v1129 = vpop.trf.xlu0
        %v1130 = vld [vmem:[%s4] sm:$0x1]
        %v1132 = vlaneseq
        %v1133 = vshrl.u32 %v1132, 7
        %v1134 = vsub.s32 0, %v1133
        %v1135 = vrot.slane %v1130, %v1134
        %v1137 = vadd.f32 %v1114, %v1135
        %v1138 = vadd.f32 %v1115, %v1135
        %v1139 = vadd.f32 %v1116, %v1135
        %v1140 = vadd.f32 %v1117, %v1135
        %v1141 = vadd.f32 %v1118, %v1135
        %v1142 = vadd.f32 %v1119, %v1135
        %v1143 = vadd.f32 %v1120, %v1135
        %v1144 = vadd.f32 %v1121, %v1135
        %v1145 = vadd.f32 %v1122, %v1135
        %v1146 = vadd.f32 %v1123, %v1135
        %v1147 = vadd.f32 %v1124, %v1135
        %v1148 = vadd.f32 %v1125, %v1135
        %v1149 = vadd.f32 %v1126, %v1135
        %v1150 = vadd.f32 %v1127, %v1135
        %v1151 = vadd.f32 %v1128, %v1135
        %v1152 = vadd.f32 %v1129, %v1135
        %vm1153 = vcmp.gt.f32.partialorder %v1137, 0.0
        %vm1154 = vcmp.gt.f32.partialorder %v1138, 0.0
        %vm1155 = vcmp.gt.f32.partialorder %v1139, 0.0
        %vm1156 = vcmp.gt.f32.partialorder %v1140, 0.0
        %vm1157 = vcmp.gt.f32.partialorder %v1141, 0.0
        %vm1158 = vcmp.gt.f32.partialorder %v1142, 0.0
        %vm1159 = vcmp.gt.f32.partialorder %v1143, 0.0
        %vm1160 = vcmp.gt.f32.partialorder %v1144, 0.0
        %vm1161 = vcmp.gt.f32.partialorder %v1145, 0.0
        %vm1162 = vcmp.gt.f32.partialorder %v1146, 0.0
        %vm1163 = vcmp.gt.f32.partialorder %v1147, 0.0
        %vm1164 = vcmp.gt.f32.partialorder %v1148, 0.0
        %vm1165 = vcmp.gt.f32.partialorder %v1149, 0.0
        %vm1166 = vcmp.gt.f32.partialorder %v1150, 0.0
        %vm1167 = vcmp.gt.f32.partialorder %v1151, 0.0
        %vm1168 = vcmp.gt.f32.partialorder %v1152, 0.0
        %v1169 = vmul.f32 %v1137, 1.442695
        %v1170 = vpow.pop %v1169
        %v1171 = vmul.f32 %v1138, 1.442695
        %v1172 = vpow.pop %v1171
        %v1173 = vmul.f32 %v1139, 1.442695
        %v1174 = vpow.pop %v1173
        %v1175 = vmul.f32 %v1140, 1.442695
        %v1176 = vpow.pop %v1175
        %v1177 = vmul.f32 %v1141, 1.442695
        %v1178 = vpow.pop %v1177
        %v1179 = vmul.f32 %v1142, 1.442695
        %v1180 = vpow.pop %v1179
        %v1181 = vmul.f32 %v1143, 1.442695
        %v1182 = vpow.pop %v1181
        %v1183 = vmul.f32 %v1144, 1.442695
        %v1184 = vpow.pop %v1183
        %v1185 = vmul.f32 %v1145, 1.442695
        %v1186 = vpow.pop %v1185
        %v1187 = vmul.f32 %v1146, 1.442695
        %v1188 = vpow.pop %v1187
        %v1189 = vmul.f32 %v1147, 1.442695
        %v1190 = vpow.pop %v1189
        %v1191 = vmul.f32 %v1148, 1.442695
        %v1192 = vpow.pop %v1191
        %v1193 = vmul.f32 %v1149, 1.442695
        %v1194 = vpow.pop %v1193
        %v1195 = vmul.f32 %v1150, 1.442695
        %v1196 = vpow.pop %v1195
        %v1197 = vmul.f32 %v1151, 1.442695
        %v1198 = vpow.pop %v1197
        %v1199 = vmul.f32 %v1152, 1.442695
        %v1200 = vpow.pop %v1199
        %v1201 = vsub.f32 %v1170, 1.0
        %v1202 = vsub.f32 %v1172, 1.0
        %v1203 = vsub.f32 %v1174, 1.0
        %v1204 = vsub.f32 %v1176, 1.0
        %v1205 = vsub.f32 %v1178, 1.0
        %v1206 = vsub.f32 %v1180, 1.0
        %v1207 = vsub.f32 %v1182, 1.0
        %v1208 = vsub.f32 %v1184, 1.0
        %v1209 = vsub.f32 %v1186, 1.0
        %v1210 = vsub.f32 %v1188, 1.0
        %v1211 = vsub.f32 %v1190, 1.0
        %v1212 = vsub.f32 %v1192, 1.0
        %v1213 = vsub.f32 %v1194, 1.0
        %v1214 = vsub.f32 %v1196, 1.0
        %v1215 = vsub.f32 %v1198, 1.0
        %v1216 = vsub.f32 %v1200, 1.0
        %v1217 = vsel %vm1153, %v1137, %v1201
        %v1218 = vsel %vm1154, %v1138, %v1202
        %v1219 = vsel %vm1155, %v1139, %v1203
        %v1220 = vsel %vm1156, %v1140, %v1204
        %v1221 = vsel %vm1157, %v1141, %v1205
        %v1222 = vsel %vm1158, %v1142, %v1206
        %v1223 = vsel %vm1159, %v1143, %v1207
        %v1224 = vsel %vm1160, %v1144, %v1208
        %v1225 = vsel %vm1161, %v1145, %v1209
        %v1226 = vsel %vm1162, %v1146, %v1210
        %v1227 = vsel %vm1163, %v1147, %v1211
        %v1228 = vsel %vm1164, %v1148, %v1212
        %v1229 = vsel %vm1165, %v1149, %v1213
        %v1230 = vsel %vm1166, %v1150, %v1214
        %v1231 = vsel %vm1167, %v1151, %v1215
        %v1232 = vsel %vm1168, %v1152, %v1216
        %v1233 = vlaneseq
        %v1234 = vand.u32 %v1233, 127
        %vm1235 = vcmp.lt.s32.totalorder %v1234, 8
        %v1236 = vsel %vm1235, 1, 0
        %vm1237 = vcmp.eq.s32.totalorder %v1236, 1
        %v1238 = vsel %vm1237, %v1217, -1e+30
        %v1239 = vsel %vm1237, %v1218, -1e+30
        %v1240 = vsel %vm1237, %v1219, -1e+30
        %v1241 = vsel %vm1237, %v1220, -1e+30
        %v1242 = vsel %vm1237, %v1221, -1e+30
        %v1243 = vsel %vm1237, %v1222, -1e+30
        %v1244 = vsel %vm1237, %v1223, -1e+30
        %v1245 = vsel %vm1237, %v1224, -1e+30
        %v1246 = vsel %vm1237, %v1225, -1e+30
        %v1247 = vsel %vm1237, %v1226, -1e+30
        %v1248 = vsel %vm1237, %v1227, -1e+30
        %v1249 = vsel %vm1237, %v1228, -1e+30
        %v1250 = vsel %vm1237, %v1229, -1e+30
        %v1251 = vsel %vm1237, %v1230, -1e+30
        %v1252 = vsel %vm1237, %v1231, -1e+30
        %v1253 = vsel %vm1237, %v1232, -1e+30
        %1254 = vmax.xlane.f32.xlu0 %v1238
        %v1255 = vpop.xlane.xlu0 %1254
        %1256 = vmax.xlane.f32.xlu0 %v1239
        %v1257 = vpop.xlane.xlu0 %1256
        %1258 = vmax.xlane.f32.xlu0 %v1240
        %v1259 = vpop.xlane.xlu0 %1258
        %1260 = vmax.xlane.f32.xlu0 %v1241
        %v1261 = vpop.xlane.xlu0 %1260
        %1262 = vmax.xlane.f32.xlu0 %v1242
        %v1263 = vpop.xlane.xlu0 %1262
        %1264 = vmax.xlane.f32.xlu0 %v1243
        %v1265 = vpop.xlane.xlu0 %1264
        %1266 = vmax.xlane.f32.xlu0 %v1244
        %v1267 = vpop.xlane.xlu0 %1266
        %1268 = vmax.xlane.f32.xlu0 %v1245
        %v1269 = vpop.xlane.xlu0 %1268
        %1270 = vmax.xlane.f32.xlu0 %v1246
        %v1271 = vpop.xlane.xlu0 %1270
        %1272 = vmax.xlane.f32.xlu0 %v1247
        %v1273 = vpop.xlane.xlu0 %1272
        %1274 = vmax.xlane.f32.xlu0 %v1248
        %v1275 = vpop.xlane.xlu0 %1274
        %1276 = vmax.xlane.f32.xlu0 %v1249
        %v1277 = vpop.xlane.xlu0 %1276
        %1278 = vmax.xlane.f32.xlu0 %v1250
        %v1279 = vpop.xlane.xlu0 %1278
        %1280 = vmax.xlane.f32.xlu0 %v1251
        %v1281 = vpop.xlane.xlu0 %1280
        %1282 = vmax.xlane.f32.xlu0 %v1252
        %v1283 = vpop.xlane.xlu0 %1282
        %1284 = vmax.xlane.f32.xlu0 %v1253
        %v1285 = vpop.xlane.xlu0 %1284
        %v1286 = vsub.f32 %v1238, %v1255
        %v1287 = vsub.f32 %v1239, %v1257
        %v1288 = vsub.f32 %v1240, %v1259
        %v1289 = vsub.f32 %v1241, %v1261
        %v1290 = vsub.f32 %v1242, %v1263
        %v1291 = vsub.f32 %v1243, %v1265
        %v1292 = vsub.f32 %v1244, %v1267
        %v1293 = vsub.f32 %v1245, %v1269
        %v1294 = vsub.f32 %v1246, %v1271
        %v1295 = vsub.f32 %v1247, %v1273
        %v1296 = vsub.f32 %v1248, %v1275
        %v1297 = vsub.f32 %v1249, %v1277
        %v1298 = vsub.f32 %v1250, %v1279
        %v1299 = vsub.f32 %v1251, %v1281
        %v1300 = vsub.f32 %v1252, %v1283
        %v1301 = vsub.f32 %v1253, %v1285
        %v1302 = vmul.f32 %v1286, 1.442695
        %v1303 = vpow.pop %v1302
        %v1304 = vmul.f32 %v1287, 1.442695
        %v1305 = vpow.pop %v1304
        %v1306 = vmul.f32 %v1288, 1.442695
        %v1307 = vpow.pop %v1306
        %v1308 = vmul.f32 %v1289, 1.442695
        %v1309 = vpow.pop %v1308
        %v1310 = vmul.f32 %v1290, 1.442695
        %v1311 = vpow.pop %v1310
        %v1312 = vmul.f32 %v1291, 1.442695
        %v1313 = vpow.pop %v1312
        %v1314 = vmul.f32 %v1292, 1.442695
        %v1315 = vpow.pop %v1314
        %v1316 = vmul.f32 %v1293, 1.442695
        %v1317 = vpow.pop %v1316
        %v1318 = vmul.f32 %v1294, 1.442695
        %v1319 = vpow.pop %v1318
        %v1320 = vmul.f32 %v1295, 1.442695
        %v1321 = vpow.pop %v1320
        %v1322 = vmul.f32 %v1296, 1.442695
        %v1323 = vpow.pop %v1322
        %v1324 = vmul.f32 %v1297, 1.442695
        %v1325 = vpow.pop %v1324
        %v1326 = vmul.f32 %v1298, 1.442695
        %v1327 = vpow.pop %v1326
        %v1328 = vmul.f32 %v1299, 1.442695
        %v1329 = vpow.pop %v1328
        %v1330 = vmul.f32 %v1300, 1.442695
        %v1331 = vpow.pop %v1330
        %v1332 = vmul.f32 %v1301, 1.442695
        %v1333 = vpow.pop %v1332
        %1334 = vadd.xlane.f32.xlu0 %v1303
        %v1335 = vpop.xlane.xlu0 %1334
        %1336 = vadd.xlane.f32.xlu0 %v1305
        %v1337 = vpop.xlane.xlu0 %1336
        %1338 = vadd.xlane.f32.xlu0 %v1307
        %v1339 = vpop.xlane.xlu0 %1338
        %1340 = vadd.xlane.f32.xlu0 %v1309
        %v1341 = vpop.xlane.xlu0 %1340
        %1342 = vadd.xlane.f32.xlu0 %v1311
        %v1343 = vpop.xlane.xlu0 %1342
        %1344 = vadd.xlane.f32.xlu0 %v1313
        %v1345 = vpop.xlane.xlu0 %1344
        %1346 = vadd.xlane.f32.xlu0 %v1315
        %v1347 = vpop.xlane.xlu0 %1346
        %1348 = vadd.xlane.f32.xlu0 %v1317
        %v1349 = vpop.xlane.xlu0 %1348
        %1350 = vadd.xlane.f32.xlu0 %v1319
        %v1351 = vpop.xlane.xlu0 %1350
        %1352 = vadd.xlane.f32.xlu0 %v1321
        %v1353 = vpop.xlane.xlu0 %1352
        %1354 = vadd.xlane.f32.xlu0 %v1323
        %v1355 = vpop.xlane.xlu0 %1354
        %1356 = vadd.xlane.f32.xlu0 %v1325
        %v1357 = vpop.xlane.xlu0 %1356
        %1358 = vadd.xlane.f32.xlu0 %v1327
        %v1359 = vpop.xlane.xlu0 %1358
        %1360 = vadd.xlane.f32.xlu0 %v1329
        %v1361 = vpop.xlane.xlu0 %1360
        %1362 = vadd.xlane.f32.xlu0 %v1331
        %v1363 = vpop.xlane.xlu0 %1362
        %1364 = vadd.xlane.f32.xlu0 %v1333
        %v1365 = vpop.xlane.xlu0 %1364
        %v1366 = vlog2.pop %v1335
        %v1367 = vmul.f32 %v1366, 0.6931472
        %v1368 = vlog2.pop %v1337
        %v1369 = vmul.f32 %v1368, 0.6931472
        %v1370 = vlog2.pop %v1339
        %v1371 = vmul.f32 %v1370, 0.6931472
        %v1372 = vlog2.pop %v1341
        %v1373 = vmul.f32 %v1372, 0.6931472
        %v1374 = vlog2.pop %v1343
        %v1375 = vmul.f32 %v1374, 0.6931472
        %v1376 = vlog2.pop %v1345
        %v1377 = vmul.f32 %v1376, 0.6931472
        %v1378 = vlog2.pop %v1347
        %v1379 = vmul.f32 %v1378, 0.6931472
        %v1380 = vlog2.pop %v1349
        %v1381 = vmul.f32 %v1380, 0.6931472
        %v1382 = vlog2.pop %v1351
        %v1383 = vmul.f32 %v1382, 0.6931472
        %v1384 = vlog2.pop %v1353
        %v1385 = vmul.f32 %v1384, 0.6931472
        %v1386 = vlog2.pop %v1355
        %v1387 = vmul.f32 %v1386, 0.6931472
        %v1388 = vlog2.pop %v1357
        %v1389 = vmul.f32 %v1388, 0.6931472
        %v1390 = vlog2.pop %v1359
        %v1391 = vmul.f32 %v1390, 0.6931472
        %v1392 = vlog2.pop %v1361
        %v1393 = vmul.f32 %v1392, 0.6931472
        %v1394 = vlog2.pop %v1363
        %v1395 = vmul.f32 %v1394, 0.6931472
        %v1396 = vlog2.pop %v1365
        %v1397 = vmul.f32 %v1396, 0.6931472
        %v1398 = vsub.f32 %v1286, %v1367
        %v1399 = vsub.f32 %v1287, %v1369
        %v1400 = vsub.f32 %v1288, %v1371
        %v1401 = vsub.f32 %v1289, %v1373
        %v1402 = vsub.f32 %v1290, %v1375
        %v1403 = vsub.f32 %v1291, %v1377
        %v1404 = vsub.f32 %v1292, %v1379
        %v1405 = vsub.f32 %v1293, %v1381
        %v1406 = vsub.f32 %v1294, %v1383
        %v1407 = vsub.f32 %v1295, %v1385
        %v1408 = vsub.f32 %v1296, %v1387
        %v1409 = vsub.f32 %v1297, %v1389
        %v1410 = vsub.f32 %v1298, %v1391
        %v1411 = vsub.f32 %v1299, %v1393
        %v1412 = vsub.f32 %v1300, %v1395
        %v1413 = vsub.f32 %v1301, %v1397
        %1414 = vst [vmem:[%s300] sm:$0xff] %v1398
        %1415 = vst [vmem:[%s300 + $0x8] sm:$0xff] %v1399
        %1416 = vst [vmem:[%s300 + $0x10] sm:$0xff] %v1400
        %1417 = vst [vmem:[%s300 + $0x18] sm:$0xff] %v1401
        %1418 = vst [vmem:[%s300 + $0x20] sm:$0xff] %v1402
        %1419 = vst [vmem:[%s300 + $0x28] sm:$0xff] %v1403
        %1420 = vst [vmem:[%s300 + $0x30] sm:$0xff] %v1404
        %1421 = vst [vmem:[%s300 + $0x38] sm:$0xff] %v1405
        %1422 = vst [vmem:[%s300 + $0x40] sm:$0xff] %v1406
        %1423 = vst [vmem:[%s300 + $0x48] sm:$0xff] %v1407
        %1424 = vst [vmem:[%s300 + $0x50] sm:$0xff] %v1408
        %1425 = vst [vmem:[%s300 + $0x58] sm:$0xff] %v1409
        %1426 = vst [vmem:[%s300 + $0x60] sm:$0xff] %v1410
        %1427 = vst [vmem:[%s300 + $0x68] sm:$0xff] %v1411
        %1428 = vst [vmem:[%s300 + $0x70] sm:$0xff] %v1412
        %1429 = vst [vmem:[%s300 + $0x78] sm:$0xff] %v1413
        %s1430 = smul.u32 16, %s16
        %p1431 = scmp.lt.s32.totalorder %s1430, 31
        %s1432 = scalar_select %p1431, %s1430, 31
        %s1433 = smul.addr %s1432, 8
        %s1434 = scalar_lea.vmem %s5, %s1433
        // Predicated region
        $region79: #{_lambda_.7} parent=73 // pred_check
          %p1435 = pneg %p149
        $region80: #{_lambda_.7} parent=73 // pred_check_branch
          %1437 = sbr.rel (%p1435) target = $region82
        $region81: #{_lambda_.7} parent=73 // pred_region
          %s1438 = smul.u32 16, %s16
        $region82: #{_lambda_.7} parent=73 // pred_fallthru
          _
      $region74: #{_lambda_.7} parent=5 // pred_fallthru
        _
      %p1439 = scmp.le.s32.totalorder 2, %s11
      // Predicated region
      $region83: #{_lambda_.7} parent=5 // pred_check
        %p1440 = pneg %p1439
      $region84: #{_lambda_.7} parent=5 // pred_check_branch
        %1442 = sbr.rel (%p1440) target = $region86
      $region85: #{_lambda_.7} parent=5 // pred_region
        %s1443 = ssub.s32 %s11, 2
        // Predicated region
        $region87: #{_lambda_.7} parent=85 // pred_check
          %p1444 = pneg %p155
        $region88: #{_lambda_.7} parent=85 // pred_check_branch
          %1446 = sbr.rel (%p1444) target = $region90
        $region89: #{_lambda_.7} parent=85 // pred_region
          %s1447 = smul.u32 16, %s17
          %p1448 = scmp.lt.s32.totalorder %s1447, 31
          %s1449 = scalar_select %p1448, %s1447, 31
          %s1450 = smul.addr %s1449, 8
          %s1451 = scalar_lea.vmem %s5, %s1450
        $region90: #{_lambda_.7} parent=85 // pred_fallthru
          _
      $region86: #{_lambda_.7} parent=5 // pred_fallthru
        _
    $region6: #{_lambda_.7} parent=1 // loop_footer
      %s15 = sadd.s32 1, %s11
    $region7: #{_lambda_.7} parent=1 // loop_footer_branch
      %10 = sbr.rel target = $region3
    $region8: #{_lambda_.7} parent=1 // loop_exit
      _

</llo_original>
